<compile_context>
chip_gen: v7x
topology: tpu7x:2x2x1
jax: 0.10.0
libtpu: 0.0.40
codegen_flags: <defaults>
</compile_context>

<pallas_src>
import functools

import jax
import jax.numpy as jnp
from jax.experimental import pallas as pl
from jax.experimental.pallas import tpu as pltpu


# ------------------------------ Pallas kernel --------------------------------

def _inception_kernel(x_ref, wA_ref, bA_ref, w5_ref, b5_ref,
                      w3a_ref, b3a_ref, w3b_ref, b3b_ref, bp_ref,
                      o_ref, p_ref, *, H, W, C):
    """One image per grid step; everything channel-major (rows=C, lanes=H*W)."""
    HW = H * W

    # --- flattened-spatial border masks (lane index i = y*W + x) -------------
    idx = jax.lax.broadcasted_iota(jnp.int32, (1, HW), 1)
    if W & (W - 1) == 0:
        col = jnp.bitwise_and(idx, W - 1)
        row = jnp.right_shift(idx, W.bit_length() - 1)
    else:
        col = idx % W
        row = idx // W
    # f32 0/1 masks (avoids i1 broadcasts), keyed by spatial offset (pad <= 2).
    col_ok = {ox: ((col + ox >= 0) & (col + ox < W)).astype(jnp.float32)
              for ox in range(-2, 3)}
    row_ok = {oy: ((row + oy >= 0) & (row + oy < H)).astype(jnp.float32)
              for oy in range(-2, 3)}

    def shift(img, oy, ox):
        """img value at spatial (y+oy, x+ox); zero outside the image.

        A single XLU lane-roll of the (C, HW) map; positions whose source lies
        outside the HxW image (incl. x row-wrap) are zeroed via the mask.
        """
        if oy == 0 and ox == 0:
            return img
        o = oy * W + ox
        rolled = pltpu.roll(img, (-o) % HW, axis=1)
        return rolled * (col_ok[ox] * row_ok[oy])

    def conv_kxk(src, w_kxk_ref, b_kxk_ref, k):
        """'Same' KxK conv of src (C, HW) as one (C, k*k*C) @ (k*k*C, HW) matmul."""
        pad = k // 2
        kk_c = k * k * C
        for dy in range(k):
            for dx in range(k):
                blk = (dy * k + dx) * C
                # Lane-dense write: C full sublane rows x HW lanes.
                p_ref[blk:blk + C, :] = shift(src, dy - pad, dx - pad)
        return (jnp.dot(w_kxk_ref[...], p_ref[0:kk_c, :],
                        preferred_element_type=jnp.float32) + b_kxk_ref[...])

    # ---- all four 1x1 convs on x fused into one (4C, Cin) @ (Cin, HW) matmul
    x = x_ref[0]                                                   # (Cin, HW)
    y = (jnp.dot(wA_ref[...], x, preferred_element_type=jnp.float32)
         + bA_ref[...])                                            # (4C, HW)

    # branch1x1 -> output channels [0, C)
    o_ref[0, 0:C, :] = y[0:C, :].astype(o_ref.dtype)

    # branch5x5: 1x1 (already in y) -> 5x5 'same'
    out5 = conv_kxk(y[C:2 * C, :], w5_ref, b5_ref, 5)
    o_ref[0, C:2 * C, :] = out5.astype(o_ref.dtype)

    # branch3x3dbl: 1x1 -> 3x3 -> 3x3
    t = conv_kxk(y[2 * C:3 * C, :], w3a_ref, b3a_ref, 3)
    out3 = conv_kxk(t, w3b_ref, b3b_ref, 3)
    o_ref[0, 2 * C:3 * C, :] = out3.astype(o_ref.dtype)

    # branch_pool: avg_pool3x3(x) -> 1x1  ==  avg_pool3x3(1x1(x)) + bias
    # (exact: the branch is linear, zero padding, count_include_pad=True,
    #  bias added after pooling).  Separable 3x3 pool: x-pass then y-pass.
    yp = y[3 * C:4 * C, :]
    hsum = yp + shift(yp, 0, -1) + shift(yp, 0, 1)
    pooled = hsum + shift(hsum, -1, 0) + shift(hsum, 1, 0)
    o_ref[0, 3 * C:4 * C, :] = (pooled * (1.0 / 9.0)
                                + bp_ref[...]).astype(o_ref.dtype)


# ------------------------------ JAX wrapper -----------------------------------

def pack_params(params):
    """Pack per-branch HWIO weights into channel-major matmul matrices."""
    w1, b1 = params["branch1x1"]
    w51, b51 = params["branch5x5_1"]
    w52, b52 = params["branch5x5_2"]
    w31, b31 = params["branch3x3dbl_1"]
    w32, b32 = params["branch3x3dbl_2"]
    w33, b33 = params["branch3x3dbl_3"]
    wp, bp = params["branch_pool"]
    C = w1.shape[-1]
    Cin = w1.shape[-2]

    def t1(w):                         # (1,1,Cin,C) HWIO -> (C, Cin)
        return w.reshape(Cin, C).T

    def tk(w, k):                      # (k,k,C,C) HWIO -> (C, k*k*C), (dy,dx,cin) major
        return jnp.transpose(w, (3, 0, 1, 2)).reshape(C, k * k * C)

    # All four 1x1 convs on x in one matmul: rows [1x1 | 5x5_1 | 3x3_1 | pool].
    wA = jnp.concatenate([t1(w1), t1(w51), t1(w31), t1(wp)], axis=0)   # (4C, Cin)
    # Pool-branch bias is added after pooling (commutation is only exact then).
    bA = jnp.concatenate([b1, b51, b31, jnp.zeros_like(bp)]).reshape(4 * C, 1)
    return (wA, bA,
            tk(w52, 5), b52.reshape(C, 1),      # 5x5:  (16, 400)
            tk(w32, 3), b32.reshape(C, 1),      # 3x3a: (16, 144)
            tk(w33, 3), b33.reshape(C, 1),      # 3x3b: (16, 144)
            bp.reshape(C, 1))


def inception_forward(params, x_nchw):
    N, Cin, H, W = x_nchw.shape
    HW = H * W
    x2 = x_nchw.reshape(N, Cin, HW)        # free reshape: stays channel-major
    packed = pack_params(params)
    C4 = packed[0].shape[0]
    C = C4 // 4

    kernel = functools.partial(_inception_kernel, H=H, W=W, C=C)

    out = pl.pallas_call(
        kernel,
        out_shape=jax.ShapeDtypeStruct((N, C4, HW), x_nchw.dtype),
        grid=(N,),
        in_specs=[
            pl.BlockSpec((1, Cin, HW), lambda n: (n, 0, 0)),   # x (channel-major)
            pl.BlockSpec((C4, Cin), lambda n: (0, 0)),         # packed 1x1 w
            pl.BlockSpec((C4, 1), lambda n: (0, 0)),           # packed 1x1 b
            pl.BlockSpec((C, 25 * C), lambda n: (0, 0)),       # 5x5 w
            pl.BlockSpec((C, 1), lambda n: (0, 0)),            # 5x5 b
            pl.BlockSpec((C, 9 * C), lambda n: (0, 0)),        # 3x3a w
            pl.BlockSpec((C, 1), lambda n: (0, 0)),            # 3x3a b
            pl.BlockSpec((C, 9 * C), lambda n: (0, 0)),        # 3x3b w
            pl.BlockSpec((C, 1), lambda n: (0, 0)),            # 3x3b b
            pl.BlockSpec((C, 1), lambda n: (0, 0)),            # pool b (post-pool)
        ],
        out_specs=pl.BlockSpec((1, C4, HW), lambda n: (n, 0, 0)),
        scratch_shapes=[
            pltpu.VMEM((25 * C, HW), jnp.float32),   # shared im2col patch matrix
        ],
        compiler_params=pltpu.CompilerParams(
            dimension_semantics=("parallel",),       # v7x: one image per TC
        ),
    )(x2, *packed)

    return out.reshape(N, C4, H, W)                  # NCHW: free reshape, no transpose


# --------------------------- Parameter creation --------------------------------

def _kaiming_normal_conv(key, k, cin, cout):
    # torch kaiming_normal_(nonlinearity='relu', mode='fan_in'):
    #   std = sqrt(2 / fan_in), fan_in = cin * k * k.  Stored HWIO.
    fan_in = cin * k * k
    std = (2.0 / fan_in) ** 0.5
    return jax.random.normal(key, (k, k, cin, cout), dtype=jnp.float32) * std


def make_inception_params(key, in_channels, out_channels_branch=16):
    ks = jax.random.split(key, 7)
    c = out_channels_branch
    z = jnp.zeros((c,), jnp.float32)
    return {
        "branch1x1":      (_kaiming_normal_conv(ks[0], 1, in_channels, c), z),
        "branch5x5_1":    (_kaiming_normal_conv(ks[1], 1, in_channels, c), z),
        "branch5x5_2":    (_kaiming_normal_conv(ks[2], 5, c, c), z),
        "branch3x3dbl_1": (_kaiming_normal_conv(ks[3], 1, in_channels, c), z),
        "branch3x3dbl_2": (_kaiming_normal_conv(ks[4], 3, c, c), z),
        "branch3x3dbl_3": (_kaiming_normal_conv(ks[5], 3, c, c), z),
        "branch_pool":    (_kaiming_normal_conv(ks[6], 1, in_channels, c), z),
    }


# --------------------------- Reference (pure JAX) -------------------------------

def _ref_conv(x_nhwc, w_hwio, b):
    out = jax.lax.conv_general_dilated(
        x_nhwc, w_hwio, window_strides=(1, 1), padding="SAME",
        dimension_numbers=("NHWC", "HWIO", "NHWC"))
    return out + b[None, None, None, :]


def _ref_forward(params, x_nchw):
    x = jnp.transpose(x_nchw, (0, 2, 3, 1))
    b1 = _ref_conv(x, *params["branch1x1"])
    b5 = _ref_conv(x, *params["branch5x5_1"])
    b5 = _ref_conv(b5, *params["branch5x5_2"])
    b3 = _ref_conv(x, *params["branch3x3dbl_1"])
    b3 = _ref_conv(b3, *params["branch3x3dbl_2"])
    b3 = _ref_conv(b3, *params["branch3x3dbl_3"])
    xp = jnp.pad(x, ((0, 0), (1, 1), (1, 1), (0, 0)))
    pooled = sum(
        xp[:, dy:dy + x.shape[1], dx:dx + x.shape[2], :]
        for dy in range(3) for dx in range(3)
    ) / 9.0                                            # count_include_pad=True
    bp = _ref_conv(pooled, *params["branch_pool"])
    out = jnp.concatenate([b1, b5, b3, bp], axis=-1)
    return jnp.transpose(out, (0, 3, 1, 2))


# ----------------------------------- Main ---------------------------------------

if __name__ == "__main__":
    key = jax.random.PRNGKey(0)
    k_x, k_p = jax.random.split(key)

    N, C_in, H, W = 2, 4, 16, 16
    x = jax.random.normal(k_x, (N, C_in, H, W), dtype=jnp.float32)   # NCHW input
    params = make_inception_params(k_p, C_in)

    fwd = jax.jit(inception_forward)
    out = jax.block_until_ready(fwd(params, x))

    assert out.shape == (N, 64, H, W), out.shape
    ref = _ref_forward(params, x)
    assert jnp.allclose(out, ref, atol=1e-4, rtol=1e-4), \
        float(jnp.max(jnp.abs(out - ref)))

    # Extra check with non-zero biases to exercise the pool/1x1 commutation +
    # post-pool bias path (module init uses zero biases, which would hide it).
    bkeys = jax.random.split(jax.random.PRNGKey(1), len(params))
    params_b = {
        name: (w, 0.1 * jax.random.normal(k, b.shape, b.dtype))
        for (name, (w, b)), k in zip(params.items(), bkeys)
    }
    out_b = jax.block_until_ready(fwd(params_b, x))
    ref_b = _ref_forward(params_b, x)
    assert jnp.allclose(out_b, ref_b, atol=1e-4, rtol=1e-4), \
        float(jnp.max(jnp.abs(out_b - ref_b)))

    print("KERNEL_OK")
</pallas_src>

<mosaic_0001>
module attributes {stable_mosaic.version = 11 : i64} {
  func.func @_inception_kernel(%arg0: i32, %arg1: memref<1x4x256xf32, #tpu.memory_space<vmem>>, %arg2: memref<64x4xf32, #tpu.memory_space<vmem>>, %arg3: memref<64x1xf32, #tpu.memory_space<vmem>>, %arg4: memref<16x400xf32, #tpu.memory_space<vmem>>, %arg5: memref<16x1xf32, #tpu.memory_space<vmem>>, %arg6: memref<16x144xf32, #tpu.memory_space<vmem>>, %arg7: memref<16x1xf32, #tpu.memory_space<vmem>>, %arg8: memref<16x144xf32, #tpu.memory_space<vmem>>, %arg9: memref<16x1xf32, #tpu.memory_space<vmem>>, %arg10: memref<16x1xf32, #tpu.memory_space<vmem>>, %arg11: memref<1x64x256xf32, #tpu.memory_space<vmem>>, %arg12: memref<400x256xf32, #tpu.memory_space<vmem>>) attributes {dimension_semantics = [#tpu.dimension_semantics<parallel>], iteration_bounds = array<i64: 2>, scalar_prefetch = 0 : i64, scratch_operands = 1 : i64, tpu.core_type = #tpu.core_type<tc>, window_params = [{transform_indices = @transform_0, window_bounds = array<i64: 1, 4, 256>}, {pipeline_mode = #tpu.pipeline_mode<synchronous>, transform_indices = @transform_1, window_bounds = array<i64: 64, 4>}, {pipeline_mode = #tpu.pipeline_mode<synchronous>, transform_indices = @transform_2, window_bounds = array<i64: 64, 1>}, {pipeline_mode = #tpu.pipeline_mode<synchronous>, transform_indices = @transform_3, window_bounds = array<i64: 16, 400>}, {pipeline_mode = #tpu.pipeline_mode<synchronous>, transform_indices = @transform_4, window_bounds = array<i64: 16, 1>}, {pipeline_mode = #tpu.pipeline_mode<synchronous>, transform_indices = @transform_5, window_bounds = array<i64: 16, 144>}, {pipeline_mode = #tpu.pipeline_mode<synchronous>, transform_indices = @transform_6, window_bounds = array<i64: 16, 1>}, {pipeline_mode = #tpu.pipeline_mode<synchronous>, transform_indices = @transform_7, window_bounds = array<i64: 16, 144>}, {pipeline_mode = #tpu.pipeline_mode<synchronous>, transform_indices = @transform_8, window_bounds = array<i64: 16, 1>}, {pipeline_mode = #tpu.pipeline_mode<synchronous>, transform_indices = @transform_9, window_bounds = array<i64: 16, 1>}, {transform_indices = @transform_10, window_bounds = array<i64: 1, 64, 256>}]} {
    %0 = tpu.iota {dimensions = array<i32: 1>} : vector<1x256xi32>
    %c15_i32 = arith.constant 15 : i32
    %1 = vector.broadcast %c15_i32 : i32 to vector<1x256xi32>
    %2 = arith.andi %0, %1 : vector<1x256xi32>
    %c4_i32 = arith.constant 4 : i32
    %3 = vector.broadcast %c4_i32 : i32 to vector<1x256xi32>
    %4 = arith.shrsi %0, %3 : vector<1x256xi32>
    %c-2_i32 = arith.constant -2 : i32
    %5 = vector.broadcast %c-2_i32 : i32 to vector<1x256xi32>
    %6 = arith.addi %2, %5 : vector<1x256xi32>
    %c0_i32 = arith.constant 0 : i32
    %7 = vector.broadcast %c0_i32 : i32 to vector<1x256xi32>
    %8 = arith.cmpi sge, %6, %7 : vector<1x256xi32>
    %c-2_i32_0 = arith.constant -2 : i32
    %9 = vector.broadcast %c-2_i32_0 : i32 to vector<1x256xi32>
    %10 = arith.addi %2, %9 : vector<1x256xi32>
    %c16_i32 = arith.constant 16 : i32
    %11 = vector.broadcast %c16_i32 : i32 to vector<1x256xi32>
    %12 = arith.cmpi slt, %10, %11 : vector<1x256xi32>
    %13 = arith.andi %8, %12 : vector<1x256xi1>
    %14 = arith.extui %13 : vector<1x256xi1> to vector<1x256xi32>
    %15 = arith.sitofp %14 : vector<1x256xi32> to vector<1x256xf32>
    %c-1_i32 = arith.constant -1 : i32
    %16 = vector.broadcast %c-1_i32 : i32 to vector<1x256xi32>
    %17 = arith.addi %2, %16 : vector<1x256xi32>
    %c0_i32_1 = arith.constant 0 : i32
    %18 = vector.broadcast %c0_i32_1 : i32 to vector<1x256xi32>
    %19 = arith.cmpi sge, %17, %18 : vector<1x256xi32>
    %c-1_i32_2 = arith.constant -1 : i32
    %20 = vector.broadcast %c-1_i32_2 : i32 to vector<1x256xi32>
    %21 = arith.addi %2, %20 : vector<1x256xi32>
    %c16_i32_3 = arith.constant 16 : i32
    %22 = vector.broadcast %c16_i32_3 : i32 to vector<1x256xi32>
    %23 = arith.cmpi slt, %21, %22 : vector<1x256xi32>
    %24 = arith.andi %19, %23 : vector<1x256xi1>
    %25 = arith.extui %24 : vector<1x256xi1> to vector<1x256xi32>
    %26 = arith.sitofp %25 : vector<1x256xi32> to vector<1x256xf32>
    %c0_i32_4 = arith.constant 0 : i32
    %27 = vector.broadcast %c0_i32_4 : i32 to vector<1x256xi32>
    %28 = arith.addi %2, %27 : vector<1x256xi32>
    %c0_i32_5 = arith.constant 0 : i32
    %29 = vector.broadcast %c0_i32_5 : i32 to vector<1x256xi32>
    %30 = arith.cmpi sge, %28, %29 : vector<1x256xi32>
    %c0_i32_6 = arith.constant 0 : i32
    %31 = vector.broadcast %c0_i32_6 : i32 to vector<1x256xi32>
    %32 = arith.addi %2, %31 : vector<1x256xi32>
    %c16_i32_7 = arith.constant 16 : i32
    %33 = vector.broadcast %c16_i32_7 : i32 to vector<1x256xi32>
    %34 = arith.cmpi slt, %32, %33 : vector<1x256xi32>
    %35 = arith.andi %30, %34 : vector<1x256xi1>
    %36 = arith.extui %35 : vector<1x256xi1> to vector<1x256xi32>
    %37 = arith.sitofp %36 : vector<1x256xi32> to vector<1x256xf32>
    %c1_i32 = arith.constant 1 : i32
    %38 = vector.broadcast %c1_i32 : i32 to vector<1x256xi32>
    %39 = arith.addi %2, %38 : vector<1x256xi32>
    %c0_i32_8 = arith.constant 0 : i32
    %40 = vector.broadcast %c0_i32_8 : i32 to vector<1x256xi32>
    %41 = arith.cmpi sge, %39, %40 : vector<1x256xi32>
    %c1_i32_9 = arith.constant 1 : i32
    %42 = vector.broadcast %c1_i32_9 : i32 to vector<1x256xi32>
    %43 = arith.addi %2, %42 : vector<1x256xi32>
    %c16_i32_10 = arith.constant 16 : i32
    %44 = vector.broadcast %c16_i32_10 : i32 to vector<1x256xi32>
    %45 = arith.cmpi slt, %43, %44 : vector<1x256xi32>
    %46 = arith.andi %41, %45 : vector<1x256xi1>
    %47 = arith.extui %46 : vector<1x256xi1> to vector<1x256xi32>
    %48 = arith.sitofp %47 : vector<1x256xi32> to vector<1x256xf32>
    %c2_i32 = arith.constant 2 : i32
    %49 = vector.broadcast %c2_i32 : i32 to vector<1x256xi32>
    %50 = arith.addi %2, %49 : vector<1x256xi32>
    %c0_i32_11 = arith.constant 0 : i32
    %51 = vector.broadcast %c0_i32_11 : i32 to vector<1x256xi32>
    %52 = arith.cmpi sge, %50, %51 : vector<1x256xi32>
    %c2_i32_12 = arith.constant 2 : i32
    %53 = vector.broadcast %c2_i32_12 : i32 to vector<1x256xi32>
    %54 = arith.addi %2, %53 : vector<1x256xi32>
    %c16_i32_13 = arith.constant 16 : i32
    %55 = vector.broadcast %c16_i32_13 : i32 to vector<1x256xi32>
    %56 = arith.cmpi slt, %54, %55 : vector<1x256xi32>
    %57 = arith.andi %52, %56 : vector<1x256xi1>
    %58 = arith.extui %57 : vector<1x256xi1> to vector<1x256xi32>
    %59 = arith.sitofp %58 : vector<1x256xi32> to vector<1x256xf32>
    %c-2_i32_14 = arith.constant -2 : i32
    %60 = vector.broadcast %c-2_i32_14 : i32 to vector<1x256xi32>
    %61 = arith.addi %4, %60 : vector<1x256xi32>
    %c0_i32_15 = arith.constant 0 : i32
    %62 = vector.broadcast %c0_i32_15 : i32 to vector<1x256xi32>
    %63 = arith.cmpi sge, %61, %62 : vector<1x256xi32>
    %c-2_i32_16 = arith.constant -2 : i32
    %64 = vector.broadcast %c-2_i32_16 : i32 to vector<1x256xi32>
    %65 = arith.addi %4, %64 : vector<1x256xi32>
    %c16_i32_17 = arith.constant 16 : i32
    %66 = vector.broadcast %c16_i32_17 : i32 to vector<1x256xi32>
    %67 = arith.cmpi slt, %65, %66 : vector<1x256xi32>
    %68 = arith.andi %63, %67 : vector<1x256xi1>
    %69 = arith.extui %68 : vector<1x256xi1> to vector<1x256xi32>
    %70 = arith.sitofp %69 : vector<1x256xi32> to vector<1x256xf32>
    %c-1_i32_18 = arith.constant -1 : i32
    %71 = vector.broadcast %c-1_i32_18 : i32 to vector<1x256xi32>
    %72 = arith.addi %4, %71 : vector<1x256xi32>
    %c0_i32_19 = arith.constant 0 : i32
    %73 = vector.broadcast %c0_i32_19 : i32 to vector<1x256xi32>
    %74 = arith.cmpi sge, %72, %73 : vector<1x256xi32>
    %c-1_i32_20 = arith.constant -1 : i32
    %75 = vector.broadcast %c-1_i32_20 : i32 to vector<1x256xi32>
    %76 = arith.addi %4, %75 : vector<1x256xi32>
    %c16_i32_21 = arith.constant 16 : i32
    %77 = vector.broadcast %c16_i32_21 : i32 to vector<1x256xi32>
    %78 = arith.cmpi slt, %76, %77 : vector<1x256xi32>
    %79 = arith.andi %74, %78 : vector<1x256xi1>
    %80 = arith.extui %79 : vector<1x256xi1> to vector<1x256xi32>
    %81 = arith.sitofp %80 : vector<1x256xi32> to vector<1x256xf32>
    %c0_i32_22 = arith.constant 0 : i32
    %82 = vector.broadcast %c0_i32_22 : i32 to vector<1x256xi32>
    %83 = arith.addi %4, %82 : vector<1x256xi32>
    %c0_i32_23 = arith.constant 0 : i32
    %84 = vector.broadcast %c0_i32_23 : i32 to vector<1x256xi32>
    %85 = arith.cmpi sge, %83, %84 : vector<1x256xi32>
    %c0_i32_24 = arith.constant 0 : i32
    %86 = vector.broadcast %c0_i32_24 : i32 to vector<1x256xi32>
    %87 = arith.addi %4, %86 : vector<1x256xi32>
    %c16_i32_25 = arith.constant 16 : i32
    %88 = vector.broadcast %c16_i32_25 : i32 to vector<1x256xi32>
    %89 = arith.cmpi slt, %87, %88 : vector<1x256xi32>
    %90 = arith.andi %85, %89 : vector<1x256xi1>
    %91 = arith.extui %90 : vector<1x256xi1> to vector<1x256xi32>
    %92 = arith.sitofp %91 : vector<1x256xi32> to vector<1x256xf32>
    %c1_i32_26 = arith.constant 1 : i32
    %93 = vector.broadcast %c1_i32_26 : i32 to vector<1x256xi32>
    %94 = arith.addi %4, %93 : vector<1x256xi32>
    %c0_i32_27 = arith.constant 0 : i32
    %95 = vector.broadcast %c0_i32_27 : i32 to vector<1x256xi32>
    %96 = arith.cmpi sge, %94, %95 : vector<1x256xi32>
    %c1_i32_28 = arith.constant 1 : i32
    %97 = vector.broadcast %c1_i32_28 : i32 to vector<1x256xi32>
    %98 = arith.addi %4, %97 : vector<1x256xi32>
    %c16_i32_29 = arith.constant 16 : i32
    %99 = vector.broadcast %c16_i32_29 : i32 to vector<1x256xi32>
    %100 = arith.cmpi slt, %98, %99 : vector<1x256xi32>
    %101 = arith.andi %96, %100 : vector<1x256xi1>
    %102 = arith.extui %101 : vector<1x256xi1> to vector<1x256xi32>
    %103 = arith.sitofp %102 : vector<1x256xi32> to vector<1x256xf32>
    %c2_i32_30 = arith.constant 2 : i32
    %104 = vector.broadcast %c2_i32_30 : i32 to vector<1x256xi32>
    %105 = arith.addi %4, %104 : vector<1x256xi32>
    %c0_i32_31 = arith.constant 0 : i32
    %106 = vector.broadcast %c0_i32_31 : i32 to vector<1x256xi32>
    %107 = arith.cmpi sge, %105, %106 : vector<1x256xi32>
    %c2_i32_32 = arith.constant 2 : i32
    %108 = vector.broadcast %c2_i32_32 : i32 to vector<1x256xi32>
    %109 = arith.addi %4, %108 : vector<1x256xi32>
    %c16_i32_33 = arith.constant 16 : i32
    %110 = vector.broadcast %c16_i32_33 : i32 to vector<1x256xi32>
    %111 = arith.cmpi slt, %109, %110 : vector<1x256xi32>
    %112 = arith.andi %107, %111 : vector<1x256xi1>
    %113 = arith.extui %112 : vector<1x256xi1> to vector<1x256xi32>
    %114 = arith.sitofp %113 : vector<1x256xi32> to vector<1x256xf32>
    %c0 = arith.constant 0 : index
    %c0_34 = arith.constant 0 : index
    %c0_35 = arith.constant 0 : index
    %115 = vector.load %arg1[%c0, %c0_34, %c0_35] : memref<1x4x256xf32, #tpu.memory_space<vmem>>, vector<1x4x256xf32>
    %116 = vector.shape_cast %115 : vector<1x4x256xf32> to vector<4x256xf32>
    %c0_36 = arith.constant 0 : index
    %c0_37 = arith.constant 0 : index
    %117 = vector.load %arg2[%c0_36, %c0_37] : memref<64x4xf32, #tpu.memory_space<vmem>>, vector<64x4xf32>
    %cst = arith.constant dense<0.000000e+00> : vector<64x256xf32>
    %118 = tpu.matmul %117, %116, %cst {dimension_numbers = #tpu.dot_dimension_numbers<[1], [0], [0], [1], [0, 0, 1, 1], [], []>} : vector<64x4xf32>, vector<4x256xf32>, vector<64x256xf32> -> vector<64x256xf32>
    %c0_38 = arith.constant 0 : index
    %c0_39 = arith.constant 0 : index
    %119 = vector.load %arg3[%c0_38, %c0_39] : memref<64x1xf32, #tpu.memory_space<vmem>>, vector<64x1xf32>
    %120 = vector.broadcast %119 : vector<64x1xf32> to vector<64x256xf32>
    %121 = arith.addf %118, %120 : vector<64x256xf32>
    %122 = vector.extract_strided_slice %121 {offsets = [0, 0], sizes = [16, 256], strides = [1, 1]} : vector<64x256xf32> to vector<16x256xf32>
    %c0_40 = arith.constant 0 : index
    %c0_41 = arith.constant 0 : index
    %c0_42 = arith.constant 0 : index
    %123 = vector.load %arg11[%c0_40, %c0_41, %c0_42] : memref<1x64x256xf32, #tpu.memory_space<vmem>>, vector<1x16x256xf32>
    %124 = vector.shape_cast %123 : vector<1x16x256xf32> to vector<16x256xf32>
    %125 = vector.shape_cast %122 : vector<16x256xf32> to vector<1x16x256xf32>
    tpu.vector_store %arg11[%c0_40, %c0_41, %c0_42], %125 {strides = array<i32>} : memref<1x64x256xf32, #tpu.memory_space<vmem>>, vector<1x16x256xf32>,
    %126 = vector.extract_strided_slice %121 {offsets = [16, 0], sizes = [16, 256], strides = [1, 1]} : vector<64x256xf32> to vector<16x256xf32>
    %c34_i32 = arith.constant 34 : i32
    %127 = tpu.dynamic_rotate %126 by %c34_i32 dim 1 : vector<16x256xf32>, i32 -> vector<16x256xf32>
    %128 = arith.mulf %15, %70 : vector<1x256xf32>
    %129 = vector.broadcast %128 : vector<1x256xf32> to vector<16x256xf32>
    %130 = arith.mulf %127, %129 : vector<16x256xf32>
    %c0_43 = arith.constant 0 : index
    %c0_44 = arith.constant 0 : index
    %131 = vector.load %arg12[%c0_43, %c0_44] : memref<400x256xf32, #tpu.memory_space<vmem>>, vector<16x256xf32>
    tpu.vector_store %arg12[%c0_43, %c0_44], %130 {strides = array<i32>} : memref<400x256xf32, #tpu.memory_space<vmem>>, vector<16x256xf32>,
    %c33_i32 = arith.constant 33 : i32
    %132 = tpu.dynamic_rotate %126 by %c33_i32 dim 1 : vector<16x256xf32>, i32 -> vector<16x256xf32>
    %133 = arith.mulf %26, %70 : vector<1x256xf32>
    %134 = vector.broadcast %133 : vector<1x256xf32> to vector<16x256xf32>
    %135 = arith.mulf %132, %134 : vector<16x256xf32>
    %c16 = arith.constant 16 : index
    %c0_45 = arith.constant 0 : index
    %136 = vector.load %arg12[%c16, %c0_45] : memref<400x256xf32, #tpu.memory_space<vmem>>, vector<16x256xf32>
    tpu.vector_store %arg12[%c16, %c0_45], %135 {strides = array<i32>} : memref<400x256xf32, #tpu.memory_space<vmem>>, vector<16x256xf32>,
    %c32_i32 = arith.constant 32 : i32
    %137 = tpu.dynamic_rotate %126 by %c32_i32 dim 1 : vector<16x256xf32>, i32 -> vector<16x256xf32>
    %138 = arith.mulf %37, %70 : vector<1x256xf32>
    %139 = vector.broadcast %138 : vector<1x256xf32> to vector<16x256xf32>
    %140 = arith.mulf %137, %139 : vector<16x256xf32>
    %c32 = arith.constant 32 : index
    %c0_46 = arith.constant 0 : index
    %141 = vector.load %arg12[%c32, %c0_46] : memref<400x256xf32, #tpu.memory_space<vmem>>, vector<16x256xf32>
    tpu.vector_store %arg12[%c32, %c0_46], %140 {strides = array<i32>} : memref<400x256xf32, #tpu.memory_space<vmem>>, vector<16x256xf32>,
    %c31_i32 = arith.constant 31 : i32
    %142 = tpu.dynamic_rotate %126 by %c31_i32 dim 1 : vector<16x256xf32>, i32 -> vector<16x256xf32>
    %143 = arith.mulf %48, %70 : vector<1x256xf32>
    %144 = vector.broadcast %143 : vector<1x256xf32> to vector<16x256xf32>
    %145 = arith.mulf %142, %144 : vector<16x256xf32>
    %c48 = arith.constant 48 : index
    %c0_47 = arith.constant 0 : index
    %146 = vector.load %arg12[%c48, %c0_47] : memref<400x256xf32, #tpu.memory_space<vmem>>, vector<16x256xf32>
    tpu.vector_store %arg12[%c48, %c0_47], %145 {strides = array<i32>} : memref<400x256xf32, #tpu.memory_space<vmem>>, vector<16x256xf32>,
    %c30_i32 = arith.constant 30 : i32
    %147 = tpu.dynamic_rotate %126 by %c30_i32 dim 1 : vector<16x256xf32>, i32 -> vector<16x256xf32>
    %148 = arith.mulf %59, %70 : vector<1x256xf32>
    %149 = vector.broadcast %148 : vector<1x256xf32> to vector<16x256xf32>
    %150 = arith.mulf %147, %149 : vector<16x256xf32>
    %c64 = arith.constant 64 : index
    %c0_48 = arith.constant 0 : index
    %151 = vector.load %arg12[%c64, %c0_48] : memref<400x256xf32, #tpu.memory_space<vmem>>, vector<16x256xf32>
    tpu.vector_store %arg12[%c64, %c0_48], %150 {strides = array<i32>} : memref<400x256xf32, #tpu.memory_space<vmem>>, vector<16x256xf32>,
    %c18_i32 = arith.constant 18 : i32
    %152 = tpu.dynamic_rotate %126 by %c18_i32 dim 1 : vector<16x256xf32>, i32 -> vector<16x256xf32>
    %153 = arith.mulf %15, %81 : vector<1x256xf32>
    %154 = vector.broadcast %153 : vector<1x256xf32> to vector<16x256xf32>
    %155 = arith.mulf %152, %154 : vector<16x256xf32>
    %c80 = arith.constant 80 : index
    %c0_49 = arith.constant 0 : index
    %156 = vector.load %arg12[%c80, %c0_49] : memref<400x256xf32, #tpu.memory_space<vmem>>, vector<16x256xf32>
    tpu.vector_store %arg12[%c80, %c0_49], %155 {strides = array<i32>} : memref<400x256xf32, #tpu.memory_space<vmem>>, vector<16x256xf32>,
    %c17_i32 = arith.constant 17 : i32
    %157 = tpu.dynamic_rotate %126 by %c17_i32 dim 1 : vector<16x256xf32>, i32 -> vector<16x256xf32>
    %158 = arith.mulf %26, %81 : vector<1x256xf32>
    %159 = vector.broadcast %158 : vector<1x256xf32> to vector<16x256xf32>
    %160 = arith.mulf %157, %159 : vector<16x256xf32>
    %c96 = arith.constant 96 : index
    %c0_50 = arith.constant 0 : index
    %161 = vector.load %arg12[%c96, %c0_50] : memref<400x256xf32, #tpu.memory_space<vmem>>, vector<16x256xf32>
    tpu.vector_store %arg12[%c96, %c0_50], %160 {strides = array<i32>} : memref<400x256xf32, #tpu.memory_space<vmem>>, vector<16x256xf32>,
    %c16_i32_51 = arith.constant 16 : i32
    %162 = tpu.dynamic_rotate %126 by %c16_i32_51 dim 1 : vector<16x256xf32>, i32 -> vector<16x256xf32>
    %163 = arith.mulf %37, %81 : vector<1x256xf32>
    %164 = vector.broadcast %163 : vector<1x256xf32> to vector<16x256xf32>
    %165 = arith.mulf %162, %164 : vector<16x256xf32>
    %c112 = arith.constant 112 : index
    %c0_52 = arith.constant 0 : index
    %166 = vector.load %arg12[%c112, %c0_52] : memref<400x256xf32, #tpu.memory_space<vmem>>, vector<16x256xf32>
    tpu.vector_store %arg12[%c112, %c0_52], %165 {strides = array<i32>} : memref<400x256xf32, #tpu.memory_space<vmem>>, vector<16x256xf32>,
    %c15_i32_53 = arith.constant 15 : i32
    %167 = tpu.dynamic_rotate %126 by %c15_i32_53 dim 1 : vector<16x256xf32>, i32 -> vector<16x256xf32>
    %168 = arith.mulf %48, %81 : vector<1x256xf32>
    %169 = vector.broadcast %168 : vector<1x256xf32> to vector<16x256xf32>
    %170 = arith.mulf %167, %169 : vector<16x256xf32>
    %c128 = arith.constant 128 : index
    %c0_54 = arith.constant 0 : index
    %171 = vector.load %arg12[%c128, %c0_54] : memref<400x256xf32, #tpu.memory_space<vmem>>, vector<16x256xf32>
    tpu.vector_store %arg12[%c128, %c0_54], %170 {strides = array<i32>} : memref<400x256xf32, #tpu.memory_space<vmem>>, vector<16x256xf32>,
    %c14_i32 = arith.constant 14 : i32
    %172 = tpu.dynamic_rotate %126 by %c14_i32 dim 1 : vector<16x256xf32>, i32 -> vector<16x256xf32>
    %173 = arith.mulf %59, %81 : vector<1x256xf32>
    %174 = vector.broadcast %173 : vector<1x256xf32> to vector<16x256xf32>
    %175 = arith.mulf %172, %174 : vector<16x256xf32>
    %c144 = arith.constant 144 : index
    %c0_55 = arith.constant 0 : index
    %176 = vector.load %arg12[%c144, %c0_55] : memref<400x256xf32, #tpu.memory_space<vmem>>, vector<16x256xf32>
    tpu.vector_store %arg12[%c144, %c0_55], %175 {strides = array<i32>} : memref<400x256xf32, #tpu.memory_space<vmem>>, vector<16x256xf32>,
    %c2_i32_56 = arith.constant 2 : i32
    %177 = tpu.dynamic_rotate %126 by %c2_i32_56 dim 1 : vector<16x256xf32>, i32 -> vector<16x256xf32>
    %178 = arith.mulf %15, %92 : vector<1x256xf32>
    %179 = vector.broadcast %178 : vector<1x256xf32> to vector<16x256xf32>
    %180 = arith.mulf %177, %179 : vector<16x256xf32>
    %c160 = arith.constant 160 : index
    %c0_57 = arith.constant 0 : index
    %181 = vector.load %arg12[%c160, %c0_57] : memref<400x256xf32, #tpu.memory_space<vmem>>, vector<16x256xf32>
    tpu.vector_store %arg12[%c160, %c0_57], %180 {strides = array<i32>} : memref<400x256xf32, #tpu.memory_space<vmem>>, vector<16x256xf32>,
    %c1_i32_58 = arith.constant 1 : i32
    %182 = tpu.dynamic_rotate %126 by %c1_i32_58 dim 1 : vector<16x256xf32>, i32 -> vector<16x256xf32>
    %183 = arith.mulf %26, %92 : vector<1x256xf32>
    %184 = vector.broadcast %183 : vector<1x256xf32> to vector<16x256xf32>
    %185 = arith.mulf %182, %184 : vector<16x256xf32>
    %c176 = arith.constant 176 : index
    %c0_59 = arith.constant 0 : index
    %186 = vector.load %arg12[%c176, %c0_59] : memref<400x256xf32, #tpu.memory_space<vmem>>, vector<16x256xf32>
    tpu.vector_store %arg12[%c176, %c0_59], %185 {strides = array<i32>} : memref<400x256xf32, #tpu.memory_space<vmem>>, vector<16x256xf32>,
    %c192 = arith.constant 192 : index
    %c0_60 = arith.constant 0 : index
    %187 = vector.load %arg12[%c192, %c0_60] : memref<400x256xf32, #tpu.memory_space<vmem>>, vector<16x256xf32>
    tpu.vector_store %arg12[%c192, %c0_60], %126 {strides = array<i32>} : memref<400x256xf32, #tpu.memory_space<vmem>>, vector<16x256xf32>,
    %c255_i32 = arith.constant 255 : i32
    %188 = tpu.dynamic_rotate %126 by %c255_i32 dim 1 : vector<16x256xf32>, i32 -> vector<16x256xf32>
    %189 = arith.mulf %48, %92 : vector<1x256xf32>
    %190 = vector.broadcast %189 : vector<1x256xf32> to vector<16x256xf32>
    %191 = arith.mulf %188, %190 : vector<16x256xf32>
    %c208 = arith.constant 208 : index
    %c0_61 = arith.constant 0 : index
    %192 = vector.load %arg12[%c208, %c0_61] : memref<400x256xf32, #tpu.memory_space<vmem>>, vector<16x256xf32>
    tpu.vector_store %arg12[%c208, %c0_61], %191 {strides = array<i32>} : memref<400x256xf32, #tpu.memory_space<vmem>>, vector<16x256xf32>,
    %c254_i32 = arith.constant 254 : i32
    %193 = tpu.dynamic_rotate %126 by %c254_i32 dim 1 : vector<16x256xf32>, i32 -> vector<16x256xf32>
    %194 = arith.mulf %59, %92 : vector<1x256xf32>
    %195 = vector.broadcast %194 : vector<1x256xf32> to vector<16x256xf32>
    %196 = arith.mulf %193, %195 : vector<16x256xf32>
    %c224 = arith.constant 224 : index
    %c0_62 = arith.constant 0 : index
    %197 = vector.load %arg12[%c224, %c0_62] : memref<400x256xf32, #tpu.memory_space<vmem>>, vector<16x256xf32>
    tpu.vector_store %arg12[%c224, %c0_62], %196 {strides = array<i32>} : memref<400x256xf32, #tpu.memory_space<vmem>>, vector<16x256xf32>,
    %c242_i32 = arith.constant 242 : i32
    %198 = tpu.dynamic_rotate %126 by %c242_i32 dim 1 : vector<16x256xf32>, i32 -> vector<16x256xf32>
    %199 = arith.mulf %15, %103 : vector<1x256xf32>
    %200 = vector.broadcast %199 : vector<1x256xf32> to vector<16x256xf32>
    %201 = arith.mulf %198, %200 : vector<16x256xf32>
    %c240 = arith.constant 240 : index
    %c0_63 = arith.constant 0 : index
    %202 = vector.load %arg12[%c240, %c0_63] : memref<400x256xf32, #tpu.memory_space<vmem>>, vector<16x256xf32>
    tpu.vector_store %arg12[%c240, %c0_63], %201 {strides = array<i32>} : memref<400x256xf32, #tpu.memory_space<vmem>>, vector<16x256xf32>,
    %c241_i32 = arith.constant 241 : i32
    %203 = tpu.dynamic_rotate %126 by %c241_i32 dim 1 : vector<16x256xf32>, i32 -> vector<16x256xf32>
    %204 = arith.mulf %26, %103 : vector<1x256xf32>
    %205 = vector.broadcast %204 : vector<1x256xf32> to vector<16x256xf32>
    %206 = arith.mulf %203, %205 : vector<16x256xf32>
    %c256 = arith.constant 256 : index
    %c0_64 = arith.constant 0 : index
    %207 = vector.load %arg12[%c256, %c0_64] : memref<400x256xf32, #tpu.memory_space<vmem>>, vector<16x256xf32>
    tpu.vector_store %arg12[%c256, %c0_64], %206 {strides = array<i32>} : memref<400x256xf32, #tpu.memory_space<vmem>>, vector<16x256xf32>,
    %c240_i32 = arith.constant 240 : i32
    %208 = tpu.dynamic_rotate %126 by %c240_i32 dim 1 : vector<16x256xf32>, i32 -> vector<16x256xf32>
    %209 = arith.mulf %37, %103 : vector<1x256xf32>
    %210 = vector.broadcast %209 : vector<1x256xf32> to vector<16x256xf32>
    %211 = arith.mulf %208, %210 : vector<16x256xf32>
    %c272 = arith.constant 272 : index
    %c0_65 = arith.constant 0 : index
    %212 = vector.load %arg12[%c272, %c0_65] : memref<400x256xf32, #tpu.memory_space<vmem>>, vector<16x256xf32>
    tpu.vector_store %arg12[%c272, %c0_65], %211 {strides = array<i32>} : memref<400x256xf32, #tpu.memory_space<vmem>>, vector<16x256xf32>,
    %c239_i32 = arith.constant 239 : i32
    %213 = tpu.dynamic_rotate %126 by %c239_i32 dim 1 : vector<16x256xf32>, i32 -> vector<16x256xf32>
    %214 = arith.mulf %48, %103 : vector<1x256xf32>
    %215 = vector.broadcast %214 : vector<1x256xf32> to vector<16x256xf32>
    %216 = arith.mulf %213, %215 : vector<16x256xf32>
    %c288 = arith.constant 288 : index
    %c0_66 = arith.constant 0 : index
    %217 = vector.load %arg12[%c288, %c0_66] : memref<400x256xf32, #tpu.memory_space<vmem>>, vector<16x256xf32>
    tpu.vector_store %arg12[%c288, %c0_66], %216 {strides = array<i32>} : memref<400x256xf32, #tpu.memory_space<vmem>>, vector<16x256xf32>,
    %c238_i32 = arith.constant 238 : i32
    %218 = tpu.dynamic_rotate %126 by %c238_i32 dim 1 : vector<16x256xf32>, i32 -> vector<16x256xf32>
    %219 = arith.mulf %59, %103 : vector<1x256xf32>
    %220 = vector.broadcast %219 : vector<1x256xf32> to vector<16x256xf32>
    %221 = arith.mulf %218, %220 : vector<16x256xf32>
    %c304 = arith.constant 304 : index
    %c0_67 = arith.constant 0 : index
    %222 = vector.load %arg12[%c304, %c0_67] : memref<400x256xf32, #tpu.memory_space<vmem>>, vector<16x256xf32>
    tpu.vector_store %arg12[%c304, %c0_67], %221 {strides = array<i32>} : memref<400x256xf32, #tpu.memory_space<vmem>>, vector<16x256xf32>,
    %c226_i32 = arith.constant 226 : i32
    %223 = tpu.dynamic_rotate %126 by %c226_i32 dim 1 : vector<16x256xf32>, i32 -> vector<16x256xf32>
    %224 = arith.mulf %15, %114 : vector<1x256xf32>
    %225 = vector.broadcast %224 : vector<1x256xf32> to vector<16x256xf32>
    %226 = arith.mulf %223, %225 : vector<16x256xf32>
    %c320 = arith.constant 320 : index
    %c0_68 = arith.constant 0 : index
    %227 = vector.load %arg12[%c320, %c0_68] : memref<400x256xf32, #tpu.memory_space<vmem>>, vector<16x256xf32>
    tpu.vector_store %arg12[%c320, %c0_68], %226 {strides = array<i32>} : memref<400x256xf32, #tpu.memory_space<vmem>>, vector<16x256xf32>,
    %c225_i32 = arith.constant 225 : i32
    %228 = tpu.dynamic_rotate %126 by %c225_i32 dim 1 : vector<16x256xf32>, i32 -> vector<16x256xf32>
    %229 = arith.mulf %26, %114 : vector<1x256xf32>
    %230 = vector.broadcast %229 : vector<1x256xf32> to vector<16x256xf32>
    %231 = arith.mulf %228, %230 : vector<16x256xf32>
    %c336 = arith.constant 336 : index
    %c0_69 = arith.constant 0 : index
    %232 = vector.load %arg12[%c336, %c0_69] : memref<400x256xf32, #tpu.memory_space<vmem>>, vector<16x256xf32>
    tpu.vector_store %arg12[%c336, %c0_69], %231 {strides = array<i32>} : memref<400x256xf32, #tpu.memory_space<vmem>>, vector<16x256xf32>,
    %c224_i32 = arith.constant 224 : i32
    %233 = tpu.dynamic_rotate %126 by %c224_i32 dim 1 : vector<16x256xf32>, i32 -> vector<16x256xf32>
    %234 = arith.mulf %37, %114 : vector<1x256xf32>
    %235 = vector.broadcast %234 : vector<1x256xf32> to vector<16x256xf32>
    %236 = arith.mulf %233, %235 : vector<16x256xf32>
    %c352 = arith.constant 352 : index
    %c0_70 = arith.constant 0 : index
    %237 = vector.load %arg12[%c352, %c0_70] : memref<400x256xf32, #tpu.memory_space<vmem>>, vector<16x256xf32>
    tpu.vector_store %arg12[%c352, %c0_70], %236 {strides = array<i32>} : memref<400x256xf32, #tpu.memory_space<vmem>>, vector<16x256xf32>,
    %c223_i32 = arith.constant 223 : i32
    %238 = tpu.dynamic_rotate %126 by %c223_i32 dim 1 : vector<16x256xf32>, i32 -> vector<16x256xf32>
    %239 = arith.mulf %48, %114 : vector<1x256xf32>
    %240 = vector.broadcast %239 : vector<1x256xf32> to vector<16x256xf32>
    %241 = arith.mulf %238, %240 : vector<16x256xf32>
    %c368 = arith.constant 368 : index
    %c0_71 = arith.constant 0 : index
    %242 = vector.load %arg12[%c368, %c0_71] : memref<400x256xf32, #tpu.memory_space<vmem>>, vector<16x256xf32>
    tpu.vector_store %arg12[%c368, %c0_71], %241 {strides = array<i32>} : memref<400x256xf32, #tpu.memory_space<vmem>>, vector<16x256xf32>,
    %c222_i32 = arith.constant 222 : i32
    %243 = tpu.dynamic_rotate %126 by %c222_i32 dim 1 : vector<16x256xf32>, i32 -> vector<16x256xf32>
    %244 = arith.mulf %59, %114 : vector<1x256xf32>
    %245 = vector.broadcast %244 : vector<1x256xf32> to vector<16x256xf32>
    %246 = arith.mulf %243, %245 : vector<16x256xf32>
    %c384 = arith.constant 384 : index
    %c0_72 = arith.constant 0 : index
    %247 = vector.load %arg12[%c384, %c0_72] : memref<400x256xf32, #tpu.memory_space<vmem>>, vector<16x256xf32>
    tpu.vector_store %arg12[%c384, %c0_72], %246 {strides = array<i32>} : memref<400x256xf32, #tpu.memory_space<vmem>>, vector<16x256xf32>,
    %c0_73 = arith.constant 0 : index
    %c0_74 = arith.constant 0 : index
    %248 = vector.load %arg4[%c0_73, %c0_74] : memref<16x400xf32, #tpu.memory_space<vmem>>, vector<16x400xf32>
    %c0_75 = arith.constant 0 : index
    %c0_76 = arith.constant 0 : index
    %249 = vector.load %arg12[%c0_75, %c0_76] : memref<400x256xf32, #tpu.memory_space<vmem>>, vector<400x256xf32>
    %cst_77 = arith.constant dense<0.000000e+00> : vector<16x256xf32>
    %250 = tpu.matmul %248, %249, %cst_77 {dimension_numbers = #tpu.dot_dimension_numbers<[1], [0], [0], [1], [0, 0, 1, 1], [], []>} : vector<16x400xf32>, vector<400x256xf32>, vector<16x256xf32> -> vector<16x256xf32>
    %c0_78 = arith.constant 0 : index
    %c0_79 = arith.constant 0 : index
    %251 = vector.load %arg5[%c0_78, %c0_79] : memref<16x1xf32, #tpu.memory_space<vmem>>, vector<16x1xf32>
    %252 = vector.broadcast %251 : vector<16x1xf32> to vector<16x256xf32>
    %253 = arith.addf %250, %252 : vector<16x256xf32>
    %c0_80 = arith.constant 0 : index
    %c16_81 = arith.constant 16 : index
    %c0_82 = arith.constant 0 : index
    %254 = vector.load %arg11[%c0_80, %c16_81, %c0_82] : memref<1x64x256xf32, #tpu.memory_space<vmem>>, vector<1x16x256xf32>
    %255 = vector.shape_cast %254 : vector<1x16x256xf32> to vector<16x256xf32>
    %256 = vector.shape_cast %253 : vector<16x256xf32> to vector<1x16x256xf32>
    tpu.vector_store %arg11[%c0_80, %c16_81, %c0_82], %256 {strides = array<i32>} : memref<1x64x256xf32, #tpu.memory_space<vmem>>, vector<1x16x256xf32>,
    %257 = vector.extract_strided_slice %121 {offsets = [32, 0], sizes = [16, 256], strides = [1, 1]} : vector<64x256xf32> to vector<16x256xf32>
    %c17_i32_83 = arith.constant 17 : i32
    %258 = tpu.dynamic_rotate %257 by %c17_i32_83 dim 1 : vector<16x256xf32>, i32 -> vector<16x256xf32>
    %259 = arith.mulf %26, %81 : vector<1x256xf32>
    %260 = vector.broadcast %259 : vector<1x256xf32> to vector<16x256xf32>
    %261 = arith.mulf %258, %260 : vector<16x256xf32>
    %c0_84 = arith.constant 0 : index
    %c0_85 = arith.constant 0 : index
    %262 = vector.load %arg12[%c0_84, %c0_85] : memref<400x256xf32, #tpu.memory_space<vmem>>, vector<16x256xf32>
    tpu.vector_store %arg12[%c0_84, %c0_85], %261 {strides = array<i32>} : memref<400x256xf32, #tpu.memory_space<vmem>>, vector<16x256xf32>,
    %c16_i32_86 = arith.constant 16 : i32
    %263 = tpu.dynamic_rotate %257 by %c16_i32_86 dim 1 : vector<16x256xf32>, i32 -> vector<16x256xf32>
    %264 = arith.mulf %37, %81 : vector<1x256xf32>
    %265 = vector.broadcast %264 : vector<1x256xf32> to vector<16x256xf32>
    %266 = arith.mulf %263, %265 : vector<16x256xf32>
    %c16_87 = arith.constant 16 : index
    %c0_88 = arith.constant 0 : index
    %267 = vector.load %arg12[%c16_87, %c0_88] : memref<400x256xf32, #tpu.memory_space<vmem>>, vector<16x256xf32>
    tpu.vector_store %arg12[%c16_87, %c0_88], %266 {strides = array<i32>} : memref<400x256xf32, #tpu.memory_space<vmem>>, vector<16x256xf32>,
    %c15_i32_89 = arith.constant 15 : i32
    %268 = tpu.dynamic_rotate %257 by %c15_i32_89 dim 1 : vector<16x256xf32>, i32 -> vector<16x256xf32>
    %269 = arith.mulf %48, %81 : vector<1x256xf32>
    %270 = vector.broadcast %269 : vector<1x256xf32> to vector<16x256xf32>
    %271 = arith.mulf %268, %270 : vector<16x256xf32>
    %c32_90 = arith.constant 32 : index
    %c0_91 = arith.constant 0 : index
    %272 = vector.load %arg12[%c32_90, %c0_91] : memref<400x256xf32, #tpu.memory_space<vmem>>, vector<16x256xf32>
    tpu.vector_store %arg12[%c32_90, %c0_91], %271 {strides = array<i32>} : memref<400x256xf32, #tpu.memory_space<vmem>>, vector<16x256xf32>,
    %c1_i32_92 = arith.constant 1 : i32
    %273 = tpu.dynamic_rotate %257 by %c1_i32_92 dim 1 : vector<16x256xf32>, i32 -> vector<16x256xf32>
    %274 = arith.mulf %26, %92 : vector<1x256xf32>
    %275 = vector.broadcast %274 : vector<1x256xf32> to vector<16x256xf32>
    %276 = arith.mulf %273, %275 : vector<16x256xf32>
    %c48_93 = arith.constant 48 : index
    %c0_94 = arith.constant 0 : index
    %277 = vector.load %arg12[%c48_93, %c0_94] : memref<400x256xf32, #tpu.memory_space<vmem>>, vector<16x256xf32>
    tpu.vector_store %arg12[%c48_93, %c0_94], %276 {strides = array<i32>} : memref<400x256xf32, #tpu.memory_space<vmem>>, vector<16x256xf32>,
    %c64_95 = arith.constant 64 : index
    %c0_96 = arith.constant 0 : index
    %278 = vector.load %arg12[%c64_95, %c0_96] : memref<400x256xf32, #tpu.memory_space<vmem>>, vector<16x256xf32>
    tpu.vector_store %arg12[%c64_95, %c0_96], %257 {strides = array<i32>} : memref<400x256xf32, #tpu.memory_space<vmem>>, vector<16x256xf32>,
    %c255_i32_97 = arith.constant 255 : i32
    %279 = tpu.dynamic_rotate %257 by %c255_i32_97 dim 1 : vector<16x256xf32>, i32 -> vector<16x256xf32>
    %280 = arith.mulf %48, %92 : vector<1x256xf32>
    %281 = vector.broadcast %280 : vector<1x256xf32> to vector<16x256xf32>
    %282 = arith.mulf %279, %281 : vector<16x256xf32>
    %c80_98 = arith.constant 80 : index
    %c0_99 = arith.constant 0 : index
    %283 = vector.load %arg12[%c80_98, %c0_99] : memref<400x256xf32, #tpu.memory_space<vmem>>, vector<16x256xf32>
    tpu.vector_store %arg12[%c80_98, %c0_99], %282 {strides = array<i32>} : memref<400x256xf32, #tpu.memory_space<vmem>>, vector<16x256xf32>,
    %c241_i32_100 = arith.constant 241 : i32
    %284 = tpu.dynamic_rotate %257 by %c241_i32_100 dim 1 : vector<16x256xf32>, i32 -> vector<16x256xf32>
    %285 = arith.mulf %26, %103 : vector<1x256xf32>
    %286 = vector.broadcast %285 : vector<1x256xf32> to vector<16x256xf32>
    %287 = arith.mulf %284, %286 : vector<16x256xf32>
    %c96_101 = arith.constant 96 : index
    %c0_102 = arith.constant 0 : index
    %288 = vector.load %arg12[%c96_101, %c0_102] : memref<400x256xf32, #tpu.memory_space<vmem>>, vector<16x256xf32>
    tpu.vector_store %arg12[%c96_101, %c0_102], %287 {strides = array<i32>} : memref<400x256xf32, #tpu.memory_space<vmem>>, vector<16x256xf32>,
    %c240_i32_103 = arith.constant 240 : i32
    %289 = tpu.dynamic_rotate %257 by %c240_i32_103 dim 1 : vector<16x256xf32>, i32 -> vector<16x256xf32>
    %290 = arith.mulf %37, %103 : vector<1x256xf32>
    %291 = vector.broadcast %290 : vector<1x256xf32> to vector<16x256xf32>
    %292 = arith.mulf %289, %291 : vector<16x256xf32>
    %c112_104 = arith.constant 112 : index
    %c0_105 = arith.constant 0 : index
    %293 = vector.load %arg12[%c112_104, %c0_105] : memref<400x256xf32, #tpu.memory_space<vmem>>, vector<16x256xf32>
    tpu.vector_store %arg12[%c112_104, %c0_105], %292 {strides = array<i32>} : memref<400x256xf32, #tpu.memory_space<vmem>>, vector<16x256xf32>,
    %c239_i32_106 = arith.constant 239 : i32
    %294 = tpu.dynamic_rotate %257 by %c239_i32_106 dim 1 : vector<16x256xf32>, i32 -> vector<16x256xf32>
    %295 = arith.mulf %48, %103 : vector<1x256xf32>
    %296 = vector.broadcast %295 : vector<1x256xf32> to vector<16x256xf32>
    %297 = arith.mulf %294, %296 : vector<16x256xf32>
    %c128_107 = arith.constant 128 : index
    %c0_108 = arith.constant 0 : index
    %298 = vector.load %arg12[%c128_107, %c0_108] : memref<400x256xf32, #tpu.memory_space<vmem>>, vector<16x256xf32>
    tpu.vector_store %arg12[%c128_107, %c0_108], %297 {strides = array<i32>} : memref<400x256xf32, #tpu.memory_space<vmem>>, vector<16x256xf32>,
    %c0_109 = arith.constant 0 : index
    %c0_110 = arith.constant 0 : index
    %299 = vector.load %arg6[%c0_109, %c0_110] : memref<16x144xf32, #tpu.memory_space<vmem>>, vector<16x144xf32>
    %c0_111 = arith.constant 0 : index
    %c0_112 = arith.constant 0 : index
    %300 = vector.load %arg12[%c0_111, %c0_112] : memref<400x256xf32, #tpu.memory_space<vmem>>, vector<144x256xf32>
    %cst_113 = arith.constant dense<0.000000e+00> : vector<16x256xf32>
    %301 = tpu.matmul %299, %300, %cst_113 {dimension_numbers = #tpu.dot_dimension_numbers<[1], [0], [0], [1], [0, 0, 1, 1], [], []>} : vector<16x144xf32>, vector<144x256xf32>, vector<16x256xf32> -> vector<16x256xf32>
    %c0_114 = arith.constant 0 : index
    %c0_115 = arith.constant 0 : index
    %302 = vector.load %arg7[%c0_114, %c0_115] : memref<16x1xf32, #tpu.memory_space<vmem>>, vector<16x1xf32>
    %303 = vector.broadcast %302 : vector<16x1xf32> to vector<16x256xf32>
    %304 = arith.addf %301, %303 : vector<16x256xf32>
    %c17_i32_116 = arith.constant 17 : i32
    %305 = tpu.dynamic_rotate %304 by %c17_i32_116 dim 1 : vector<16x256xf32>, i32 -> vector<16x256xf32>
    %306 = arith.mulf %26, %81 : vector<1x256xf32>
    %307 = vector.broadcast %306 : vector<1x256xf32> to vector<16x256xf32>
    %308 = arith.mulf %305, %307 : vector<16x256xf32>
    %c0_117 = arith.constant 0 : index
    %c0_118 = arith.constant 0 : index
    %309 = vector.load %arg12[%c0_117, %c0_118] : memref<400x256xf32, #tpu.memory_space<vmem>>, vector<16x256xf32>
    tpu.vector_store %arg12[%c0_117, %c0_118], %308 {strides = array<i32>} : memref<400x256xf32, #tpu.memory_space<vmem>>, vector<16x256xf32>,
    %c16_i32_119 = arith.constant 16 : i32
    %310 = tpu.dynamic_rotate %304 by %c16_i32_119 dim 1 : vector<16x256xf32>, i32 -> vector<16x256xf32>
    %311 = arith.mulf %37, %81 : vector<1x256xf32>
    %312 = vector.broadcast %311 : vector<1x256xf32> to vector<16x256xf32>
    %313 = arith.mulf %310, %312 : vector<16x256xf32>
    %c16_120 = arith.constant 16 : index
    %c0_121 = arith.constant 0 : index
    %314 = vector.load %arg12[%c16_120, %c0_121] : memref<400x256xf32, #tpu.memory_space<vmem>>, vector<16x256xf32>
    tpu.vector_store %arg12[%c16_120, %c0_121], %313 {strides = array<i32>} : memref<400x256xf32, #tpu.memory_space<vmem>>, vector<16x256xf32>,
    %c15_i32_122 = arith.constant 15 : i32
    %315 = tpu.dynamic_rotate %304 by %c15_i32_122 dim 1 : vector<16x256xf32>, i32 -> vector<16x256xf32>
    %316 = arith.mulf %48, %81 : vector<1x256xf32>
    %317 = vector.broadcast %316 : vector<1x256xf32> to vector<16x256xf32>
    %318 = arith.mulf %315, %317 : vector<16x256xf32>
    %c32_123 = arith.constant 32 : index
    %c0_124 = arith.constant 0 : index
    %319 = vector.load %arg12[%c32_123, %c0_124] : memref<400x256xf32, #tpu.memory_space<vmem>>, vector<16x256xf32>
    tpu.vector_store %arg12[%c32_123, %c0_124], %318 {strides = array<i32>} : memref<400x256xf32, #tpu.memory_space<vmem>>, vector<16x256xf32>,
    %c1_i32_125 = arith.constant 1 : i32
    %320 = tpu.dynamic_rotate %304 by %c1_i32_125 dim 1 : vector<16x256xf32>, i32 -> vector<16x256xf32>
    %321 = arith.mulf %26, %92 : vector<1x256xf32>
    %322 = vector.broadcast %321 : vector<1x256xf32> to vector<16x256xf32>
    %323 = arith.mulf %320, %322 : vector<16x256xf32>
    %c48_126 = arith.constant 48 : index
    %c0_127 = arith.constant 0 : index
    %324 = vector.load %arg12[%c48_126, %c0_127] : memref<400x256xf32, #tpu.memory_space<vmem>>, vector<16x256xf32>
    tpu.vector_store %arg12[%c48_126, %c0_127], %323 {strides = array<i32>} : memref<400x256xf32, #tpu.memory_space<vmem>>, vector<16x256xf32>,
    %c64_128 = arith.constant 64 : index
    %c0_129 = arith.constant 0 : index
    %325 = vector.load %arg12[%c64_128, %c0_129] : memref<400x256xf32, #tpu.memory_space<vmem>>, vector<16x256xf32>
    tpu.vector_store %arg12[%c64_128, %c0_129], %304 {strides = array<i32>} : memref<400x256xf32, #tpu.memory_space<vmem>>, vector<16x256xf32>,
    %c255_i32_130 = arith.constant 255 : i32
    %326 = tpu.dynamic_rotate %304 by %c255_i32_130 dim 1 : vector<16x256xf32>, i32 -> vector<16x256xf32>
    %327 = arith.mulf %48, %92 : vector<1x256xf32>
    %328 = vector.broadcast %327 : vector<1x256xf32> to vector<16x256xf32>
    %329 = arith.mulf %326, %328 : vector<16x256xf32>
    %c80_131 = arith.constant 80 : index
    %c0_132 = arith.constant 0 : index
    %330 = vector.load %arg12[%c80_131, %c0_132] : memref<400x256xf32, #tpu.memory_space<vmem>>, vector<16x256xf32>
    tpu.vector_store %arg12[%c80_131, %c0_132], %329 {strides = array<i32>} : memref<400x256xf32, #tpu.memory_space<vmem>>, vector<16x256xf32>,
    %c241_i32_133 = arith.constant 241 : i32
    %331 = tpu.dynamic_rotate %304 by %c241_i32_133 dim 1 : vector<16x256xf32>, i32 -> vector<16x256xf32>
    %332 = arith.mulf %26, %103 : vector<1x256xf32>
    %333 = vector.broadcast %332 : vector<1x256xf32> to vector<16x256xf32>
    %334 = arith.mulf %331, %333 : vector<16x256xf32>
    %c96_134 = arith.constant 96 : index
    %c0_135 = arith.constant 0 : index
    %335 = vector.load %arg12[%c96_134, %c0_135] : memref<400x256xf32, #tpu.memory_space<vmem>>, vector<16x256xf32>
    tpu.vector_store %arg12[%c96_134, %c0_135], %334 {strides = array<i32>} : memref<400x256xf32, #tpu.memory_space<vmem>>, vector<16x256xf32>,
    %c240_i32_136 = arith.constant 240 : i32
    %336 = tpu.dynamic_rotate %304 by %c240_i32_136 dim 1 : vector<16x256xf32>, i32 -> vector<16x256xf32>
    %337 = arith.mulf %37, %103 : vector<1x256xf32>
    %338 = vector.broadcast %337 : vector<1x256xf32> to vector<16x256xf32>
    %339 = arith.mulf %336, %338 : vector<16x256xf32>
    %c112_137 = arith.constant 112 : index
    %c0_138 = arith.constant 0 : index
    %340 = vector.load %arg12[%c112_137, %c0_138] : memref<400x256xf32, #tpu.memory_space<vmem>>, vector<16x256xf32>
    tpu.vector_store %arg12[%c112_137, %c0_138], %339 {strides = array<i32>} : memref<400x256xf32, #tpu.memory_space<vmem>>, vector<16x256xf32>,
    %c239_i32_139 = arith.constant 239 : i32
    %341 = tpu.dynamic_rotate %304 by %c239_i32_139 dim 1 : vector<16x256xf32>, i32 -> vector<16x256xf32>
    %342 = arith.mulf %48, %103 : vector<1x256xf32>
    %343 = vector.broadcast %342 : vector<1x256xf32> to vector<16x256xf32>
    %344 = arith.mulf %341, %343 : vector<16x256xf32>
    %c128_140 = arith.constant 128 : index
    %c0_141 = arith.constant 0 : index
    %345 = vector.load %arg12[%c128_140, %c0_141] : memref<400x256xf32, #tpu.memory_space<vmem>>, vector<16x256xf32>
    tpu.vector_store %arg12[%c128_140, %c0_141], %344 {strides = array<i32>} : memref<400x256xf32, #tpu.memory_space<vmem>>, vector<16x256xf32>,
    %c0_142 = arith.constant 0 : index
    %c0_143 = arith.constant 0 : index
    %346 = vector.load %arg8[%c0_142, %c0_143] : memref<16x144xf32, #tpu.memory_space<vmem>>, vector<16x144xf32>
    %c0_144 = arith.constant 0 : index
    %c0_145 = arith.constant 0 : index
    %347 = vector.load %arg12[%c0_144, %c0_145] : memref<400x256xf32, #tpu.memory_space<vmem>>, vector<144x256xf32>
    %cst_146 = arith.constant dense<0.000000e+00> : vector<16x256xf32>
    %348 = tpu.matmul %346, %347, %cst_146 {dimension_numbers = #tpu.dot_dimension_numbers<[1], [0], [0], [1], [0, 0, 1, 1], [], []>} : vector<16x144xf32>, vector<144x256xf32>, vector<16x256xf32> -> vector<16x256xf32>
    %c0_147 = arith.constant 0 : index
    %c0_148 = arith.constant 0 : index
    %349 = vector.load %arg9[%c0_147, %c0_148] : memref<16x1xf32, #tpu.memory_space<vmem>>, vector<16x1xf32>
    %350 = vector.broadcast %349 : vector<16x1xf32> to vector<16x256xf32>
    %351 = arith.addf %348, %350 : vector<16x256xf32>
    %c0_149 = arith.constant 0 : index
    %c32_150 = arith.constant 32 : index
    %c0_151 = arith.constant 0 : index
    %352 = vector.load %arg11[%c0_149, %c32_150, %c0_151] : memref<1x64x256xf32, #tpu.memory_space<vmem>>, vector<1x16x256xf32>
    %353 = vector.shape_cast %352 : vector<1x16x256xf32> to vector<16x256xf32>
    %354 = vector.shape_cast %351 : vector<16x256xf32> to vector<1x16x256xf32>
    tpu.vector_store %arg11[%c0_149, %c32_150, %c0_151], %354 {strides = array<i32>} : memref<1x64x256xf32, #tpu.memory_space<vmem>>, vector<1x16x256xf32>,
    %355 = vector.extract_strided_slice %121 {offsets = [48, 0], sizes = [16, 256], strides = [1, 1]} : vector<64x256xf32> to vector<16x256xf32>
    %c1_i32_152 = arith.constant 1 : i32
    %356 = tpu.dynamic_rotate %355 by %c1_i32_152 dim 1 : vector<16x256xf32>, i32 -> vector<16x256xf32>
    %357 = arith.mulf %26, %92 : vector<1x256xf32>
    %358 = vector.broadcast %357 : vector<1x256xf32> to vector<16x256xf32>
    %359 = arith.mulf %356, %358 : vector<16x256xf32>
    %360 = arith.addf %355, %359 : vector<16x256xf32>
    %c255_i32_153 = arith.constant 255 : i32
    %361 = tpu.dynamic_rotate %355 by %c255_i32_153 dim 1 : vector<16x256xf32>, i32 -> vector<16x256xf32>
    %362 = arith.mulf %48, %92 : vector<1x256xf32>
    %363 = vector.broadcast %362 : vector<1x256xf32> to vector<16x256xf32>
    %364 = arith.mulf %361, %363 : vector<16x256xf32>
    %365 = arith.addf %360, %364 : vector<16x256xf32>
    %c16_i32_154 = arith.constant 16 : i32
    %366 = tpu.dynamic_rotate %365 by %c16_i32_154 dim 1 : vector<16x256xf32>, i32 -> vector<16x256xf32>
    %367 = arith.mulf %37, %81 : vector<1x256xf32>
    %368 = vector.broadcast %367 : vector<1x256xf32> to vector<16x256xf32>
    %369 = arith.mulf %366, %368 : vector<16x256xf32>
    %370 = arith.addf %365, %369 : vector<16x256xf32>
    %c240_i32_155 = arith.constant 240 : i32
    %371 = tpu.dynamic_rotate %365 by %c240_i32_155 dim 1 : vector<16x256xf32>, i32 -> vector<16x256xf32>
    %372 = arith.mulf %37, %103 : vector<1x256xf32>
    %373 = vector.broadcast %372 : vector<1x256xf32> to vector<16x256xf32>
    %374 = arith.mulf %371, %373 : vector<16x256xf32>
    %375 = arith.addf %370, %374 : vector<16x256xf32>
    %cst_156 = arith.constant 0.111111112 : f32
    %376 = vector.broadcast %cst_156 : f32 to vector<16x256xf32>
    %377 = arith.mulf %375, %376 : vector<16x256xf32>
    %c0_157 = arith.constant 0 : index
    %c0_158 = arith.constant 0 : index
    %378 = vector.load %arg10[%c0_157, %c0_158] : memref<16x1xf32, #tpu.memory_space<vmem>>, vector<16x1xf32>
    %379 = vector.broadcast %378 : vector<16x1xf32> to vector<16x256xf32>
    %380 = arith.addf %377, %379 : vector<16x256xf32>
    %c0_159 = arith.constant 0 : index
    %c48_160 = arith.constant 48 : index
    %c0_161 = arith.constant 0 : index
    %381 = vector.load %arg11[%c0_159, %c48_160, %c0_161] : memref<1x64x256xf32, #tpu.memory_space<vmem>>, vector<1x16x256xf32>
    %382 = vector.shape_cast %381 : vector<1x16x256xf32> to vector<16x256xf32>
    %383 = vector.shape_cast %380 : vector<16x256xf32> to vector<1x16x256xf32>
    tpu.vector_store %arg11[%c0_159, %c48_160, %c0_161], %383 {strides = array<i32>} : memref<1x64x256xf32, #tpu.memory_space<vmem>>, vector<1x16x256xf32>,
    return
  }
  func.func @transform_0(%arg0: i32) -> (i32, i32, i32) {
    %c0_i32 = arith.constant 0 : i32
    %c0_i32_0 = arith.constant 0 : i32
    %c0_i32_1 = arith.constant 0 : i32
    return %arg0, %c0_i32, %c0_i32_0 : i32, i32, i32
  }
  func.func @transform_1(%arg0: i32) -> (i32, i32) {
    %c0_i32 = arith.constant 0 : i32
    %c0_i32_0 = arith.constant 0 : i32
    %c0_i32_1 = arith.constant 0 : i32
    return %c0_i32, %c0_i32_0 : i32, i32
  }
  func.func @transform_2(%arg0: i32) -> (i32, i32) {
    %c0_i32 = arith.constant 0 : i32
    %c0_i32_0 = arith.constant 0 : i32
    %c0_i32_1 = arith.constant 0 : i32
    return %c0_i32, %c0_i32_0 : i32, i32
  }
  func.func @transform_3(%arg0: i32) -> (i32, i32) {
    %c0_i32 = arith.constant 0 : i32
    %c0_i32_0 = arith.constant 0 : i32
    %c0_i32_1 = arith.constant 0 : i32
    return %c0_i32, %c0_i32_0 : i32, i32
  }
  func.func @transform_4(%arg0: i32) -> (i32, i32) {
    %c0_i32 = arith.constant 0 : i32
    %c0_i32_0 = arith.constant 0 : i32
    %c0_i32_1 = arith.constant 0 : i32
    return %c0_i32, %c0_i32_0 : i32, i32
  }
  func.func @transform_5(%arg0: i32) -> (i32, i32) {
    %c0_i32 = arith.constant 0 : i32
    %c0_i32_0 = arith.constant 0 : i32
    %c0_i32_1 = arith.constant 0 : i32
    return %c0_i32, %c0_i32_0 : i32, i32
  }
  func.func @transform_6(%arg0: i32) -> (i32, i32) {
    %c0_i32 = arith.constant 0 : i32
    %c0_i32_0 = arith.constant 0 : i32
    %c0_i32_1 = arith.constant 0 : i32
    return %c0_i32, %c0_i32_0 : i32, i32
  }
  func.func @transform_7(%arg0: i32) -> (i32, i32) {
    %c0_i32 = arith.constant 0 : i32
    %c0_i32_0 = arith.constant 0 : i32
    %c0_i32_1 = arith.constant 0 : i32
    return %c0_i32, %c0_i32_0 : i32, i32
  }
  func.func @transform_8(%arg0: i32) -> (i32, i32) {
    %c0_i32 = arith.constant 0 : i32
    %c0_i32_0 = arith.constant 0 : i32
    %c0_i32_1 = arith.constant 0 : i32
    return %c0_i32, %c0_i32_0 : i32, i32
  }
  func.func @transform_9(%arg0: i32) -> (i32, i32) {
    %c0_i32 = arith.constant 0 : i32
    %c0_i32_0 = arith.constant 0 : i32
    %c0_i32_1 = arith.constant 0 : i32
    return %c0_i32, %c0_i32_0 : i32, i32
  }
  func.func @transform_10(%arg0: i32) -> (i32, i32, i32) {
    %c0_i32 = arith.constant 0 : i32
    %c0_i32_0 = arith.constant 0 : i32
    %c0_i32_1 = arith.constant 0 : i32
    return %arg0, %c0_i32, %c0_i32_0 : i32, i32, i32
  }
}

</mosaic_0001>

<llo_original>
// kernel: inception_forward.1
$region0: #{inception_forward.1}
  #allocation0 [shape = 'u32[]', space=smem, size = 0x4, offset = 0x4, fixed_abs, tag = 'smem constant byte address 0x4 - core index']
  #allocation1 [shape = 'u32[144,128]{1,0:T(1,128)}', space=vmem, size = 0x12000, scoped, tag = 'internal scratch']
  #allocation2 [shape = 'f32[400,256]{1,0:T(8,128)}', space=vmem, size = 0x64000, scoped, tag = 'scratch operand']
  %s0 = inlined_call_operand.vmem [shape: f32[2,4,256], index: 0, kind: input, shape index: {}]
  %s1 = inlined_call_operand.vmem [shape: f32[64,4], index: 1, kind: input, shape index: {}]
  %s2 = inlined_call_operand.vmem [shape: f32[64,1], index: 2, kind: input, shape index: {}]
  %s3 = inlined_call_operand.vmem [shape: f32[16,400], index: 3, kind: input, shape index: {}]
  %s4 = inlined_call_operand.vmem [shape: f32[16,1], index: 4, kind: input, shape index: {}]
  %s5 = inlined_call_operand.vmem [shape: f32[16,144], index: 5, kind: input, shape index: {}]
  %s6 = inlined_call_operand.vmem [shape: f32[16,1], index: 6, kind: input, shape index: {}]
  %s7 = inlined_call_operand.vmem [shape: f32[16,144], index: 7, kind: input, shape index: {}]
  %s8 = inlined_call_operand.vmem [shape: f32[16,1], index: 8, kind: input, shape index: {}]
  %s9 = inlined_call_operand.vmem [shape: f32[16,1], index: 9, kind: input, shape index: {}]
  %s10 = inlined_call_operand.vmem [shape: f32[2,64,256], index: 10, kind: output, shape index: {}]
  %s11 = sld [smem:[#allocation0]]
  $region73: #{inception_forward.1} parent=0
    _
  %s13 = ssub.s32 1, %s11
  %s14 = scalar_select 0, %s13, %s11
  loop: start=0, step=1, limit=4
  $region2: #{inception_forward.1} parent=0 // loop_pre_header
    _
  $region3: #{inception_forward.1} parent=0 // loop_header
    %s16 = sphi 0, %s20
    %p17 = scmp.ge.s32.totalorder %s16, 4
    %s26 = sphi 0, %s28
    %s29 = sphi 0, %s26
    %s30 = sphi 0, %s29
    %s46 = sphi 0, %s30
    %s50 = sphi 0, %s50
    %s52 = sphi 0, %s50
    %s53 = sphi 0, %s52
    %s67 = sphi 0, %s53
    %s71 = sphi 0, %s71
    %s73 = sphi 0, %s71
    %s74 = sphi 0, %s73
    %s88 = sphi 0, %s74
    %s92 = sphi 0, %s92
    %s94 = sphi 0, %s92
    %s95 = sphi 0, %s94
    %s109 = sphi 0, %s95
    %s113 = sphi 0, %s113
    %s115 = sphi 0, %s113
    %s116 = sphi 0, %s115
    %s130 = sphi 0, %s116
    %s134 = sphi 0, %s134
    %s136 = sphi 0, %s134
    %s137 = sphi 0, %s136
    %s151 = sphi 0, %s137
    %s155 = sphi 0, %s155
    %s157 = sphi 0, %s155
    %s158 = sphi 0, %s157
    %s172 = sphi 0, %s158
    %s176 = sphi 0, %s176
    %s178 = sphi 0, %s176
    %s179 = sphi 0, %s178
    %s193 = sphi 0, %s179
    %s197 = sphi 0, %s197
    %s199 = sphi 0, %s197
    %s200 = sphi 0, %s199
    %s214 = sphi 0, %s200
    %s218 = sphi 0, %s218
    %s220 = sphi 0, %s218
    %s221 = sphi 0, %s220
    %s235 = sphi 0, %s221
    %s241 = sphi 0, %s243
    %s244 = sphi 0, %s241
    %s245 = sphi 0, %s244
    %s261 = sphi 0, %s245
  $region4: #{inception_forward.1} parent=0 // loop_header_branch
    %19 = sbr.rel (%p17) target = $region8
  $region5: #{inception_forward.1} parent=0 // loop_body
    %s21 = ssub.s32 %s16, 1
    %s22 = ssub.s32 %s16, 2
    %s23 = sadd.s32 %s16, 1
    %s24 = ssub.s32 %s16, %s23
    %p25 = scmp.eq.s32.totalorder %s24, 0
    %s27 = sadd.s32 %s26, 1
    %s28 = scalar_select %p25, %s26, %s27
    %p31 = pneg %p25
    %p32 = scmp.eq.s32.totalorder %s16, 1
    %p33 = por %p31, %p32
    %p34 = scmp.ne.s32.totalorder %s26, %s29
    %p35 = scmp.eq.s32.totalorder %s16, 0
    %p36 = por %p34, %p35
    %p37 = scmp.ne.s32.totalorder %s26, %s29
    %p38 = scmp.eq.s32.totalorder %s21, 1
    %p39 = por %p37, %p38
    %p40 = scmp.ne.s32.totalorder %s29, %s30
    %p41 = scmp.eq.s32.totalorder %s21, 0
    %p42 = por %p40, %p41
    %p43 = scmp.ne.s32.totalorder %s29, %s30
    %p44 = scmp.eq.s32.totalorder %s22, 1
    %p45 = por %p43, %p44
    %p47 = scmp.ne.s32.totalorder %s30, %s46
    %p48 = scmp.eq.s32.totalorder %s22, 0
    %p49 = por %p47, %p48
    %s51 = sadd.s32 %s50, 1
    %p54 = scmp.eq.s32.totalorder %s16, 1
    %p55 = scmp.ne.s32.totalorder %s50, %s52
    %p56 = scmp.eq.s32.totalorder %s16, 0
    %p57 = por %p55, %p56
    %p58 = scmp.ne.s32.totalorder %s50, %s52
    %p59 = scmp.eq.s32.totalorder %s21, 1
    %p60 = por %p58, %p59
    %p61 = scmp.ne.s32.totalorder %s52, %s53
    %p62 = scmp.eq.s32.totalorder %s21, 0
    %p63 = por %p61, %p62
    %p64 = scmp.ne.s32.totalorder %s52, %s53
    %p65 = scmp.eq.s32.totalorder %s22, 1
    %p66 = por %p64, %p65
    %p68 = scmp.ne.s32.totalorder %s53, %s67
    %p69 = scmp.eq.s32.totalorder %s22, 0
    %p70 = por %p68, %p69
    %s72 = sadd.s32 %s71, 1
    %p75 = scmp.eq.s32.totalorder %s16, 1
    %p76 = scmp.ne.s32.totalorder %s71, %s73
    %p77 = scmp.eq.s32.totalorder %s16, 0
    %p78 = por %p76, %p77
    %p79 = scmp.ne.s32.totalorder %s71, %s73
    %p80 = scmp.eq.s32.totalorder %s21, 1
    %p81 = por %p79, %p80
    %p82 = scmp.ne.s32.totalorder %s73, %s74
    %p83 = scmp.eq.s32.totalorder %s21, 0
    %p84 = por %p82, %p83
    %p85 = scmp.ne.s32.totalorder %s73, %s74
    %p86 = scmp.eq.s32.totalorder %s22, 1
    %p87 = por %p85, %p86
    %p89 = scmp.ne.s32.totalorder %s74, %s88
    %p90 = scmp.eq.s32.totalorder %s22, 0
    %p91 = por %p89, %p90
    %s93 = sadd.s32 %s92, 1
    %p96 = scmp.eq.s32.totalorder %s16, 1
    %p97 = scmp.ne.s32.totalorder %s92, %s94
    %p98 = scmp.eq.s32.totalorder %s16, 0
    %p99 = por %p97, %p98
    %p100 = scmp.ne.s32.totalorder %s92, %s94
    %p101 = scmp.eq.s32.totalorder %s21, 1
    %p102 = por %p100, %p101
    %p103 = scmp.ne.s32.totalorder %s94, %s95
    %p104 = scmp.eq.s32.totalorder %s21, 0
    %p105 = por %p103, %p104
    %p106 = scmp.ne.s32.totalorder %s94, %s95
    %p107 = scmp.eq.s32.totalorder %s22, 1
    %p108 = por %p106, %p107
    %p110 = scmp.ne.s32.totalorder %s95, %s109
    %p111 = scmp.eq.s32.totalorder %s22, 0
    %p112 = por %p110, %p111
    %s114 = sadd.s32 %s113, 1
    %p117 = scmp.eq.s32.totalorder %s16, 1
    %p118 = scmp.ne.s32.totalorder %s113, %s115
    %p119 = scmp.eq.s32.totalorder %s16, 0
    %p120 = por %p118, %p119
    %p121 = scmp.ne.s32.totalorder %s113, %s115
    %p122 = scmp.eq.s32.totalorder %s21, 1
    %p123 = por %p121, %p122
    %p124 = scmp.ne.s32.totalorder %s115, %s116
    %p125 = scmp.eq.s32.totalorder %s21, 0
    %p126 = por %p124, %p125
    %p127 = scmp.ne.s32.totalorder %s115, %s116
    %p128 = scmp.eq.s32.totalorder %s22, 1
    %p129 = por %p127, %p128
    %p131 = scmp.ne.s32.totalorder %s116, %s130
    %p132 = scmp.eq.s32.totalorder %s22, 0
    %p133 = por %p131, %p132
    %s135 = sadd.s32 %s134, 1
    %p138 = scmp.eq.s32.totalorder %s16, 1
    %p139 = scmp.ne.s32.totalorder %s134, %s136
    %p140 = scmp.eq.s32.totalorder %s16, 0
    %p141 = por %p139, %p140
    %p142 = scmp.ne.s32.totalorder %s134, %s136
    %p143 = scmp.eq.s32.totalorder %s21, 1
    %p144 = por %p142, %p143
    %p145 = scmp.ne.s32.totalorder %s136, %s137
    %p146 = scmp.eq.s32.totalorder %s21, 0
    %p147 = por %p145, %p146
    %p148 = scmp.ne.s32.totalorder %s136, %s137
    %p149 = scmp.eq.s32.totalorder %s22, 1
    %p150 = por %p148, %p149
    %p152 = scmp.ne.s32.totalorder %s137, %s151
    %p153 = scmp.eq.s32.totalorder %s22, 0
    %p154 = por %p152, %p153
    %s156 = sadd.s32 %s155, 1
    %p159 = scmp.eq.s32.totalorder %s16, 1
    %p160 = scmp.ne.s32.totalorder %s155, %s157
    %p161 = scmp.eq.s32.totalorder %s16, 0
    %p162 = por %p160, %p161
    %p163 = scmp.ne.s32.totalorder %s155, %s157
    %p164 = scmp.eq.s32.totalorder %s21, 1
    %p165 = por %p163, %p164
    %p166 = scmp.ne.s32.totalorder %s157, %s158
    %p167 = scmp.eq.s32.totalorder %s21, 0
    %p168 = por %p166, %p167
    %p169 = scmp.ne.s32.totalorder %s157, %s158
    %p170 = scmp.eq.s32.totalorder %s22, 1
    %p171 = por %p169, %p170
    %p173 = scmp.ne.s32.totalorder %s158, %s172
    %p174 = scmp.eq.s32.totalorder %s22, 0
    %p175 = por %p173, %p174
    %s177 = sadd.s32 %s176, 1
    %p180 = scmp.eq.s32.totalorder %s16, 1
    %p181 = scmp.ne.s32.totalorder %s176, %s178
    %p182 = scmp.eq.s32.totalorder %s16, 0
    %p183 = por %p181, %p182
    %p184 = scmp.ne.s32.totalorder %s176, %s178
    %p185 = scmp.eq.s32.totalorder %s21, 1
    %p186 = por %p184, %p185
    %p187 = scmp.ne.s32.totalorder %s178, %s179
    %p188 = scmp.eq.s32.totalorder %s21, 0
    %p189 = por %p187, %p188
    %p190 = scmp.ne.s32.totalorder %s178, %s179
    %p191 = scmp.eq.s32.totalorder %s22, 1
    %p192 = por %p190, %p191
    %p194 = scmp.ne.s32.totalorder %s179, %s193
    %p195 = scmp.eq.s32.totalorder %s22, 0
    %p196 = por %p194, %p195
    %s198 = sadd.s32 %s197, 1
    %p201 = scmp.eq.s32.totalorder %s16, 1
    %p202 = scmp.ne.s32.totalorder %s197, %s199
    %p203 = scmp.eq.s32.totalorder %s16, 0
    %p204 = por %p202, %p203
    %p205 = scmp.ne.s32.totalorder %s197, %s199
    %p206 = scmp.eq.s32.totalorder %s21, 1
    %p207 = por %p205, %p206
    %p208 = scmp.ne.s32.totalorder %s199, %s200
    %p209 = scmp.eq.s32.totalorder %s21, 0
    %p210 = por %p208, %p209
    %p211 = scmp.ne.s32.totalorder %s199, %s200
    %p212 = scmp.eq.s32.totalorder %s22, 1
    %p213 = por %p211, %p212
    %p215 = scmp.ne.s32.totalorder %s200, %s214
    %p216 = scmp.eq.s32.totalorder %s22, 0
    %p217 = por %p215, %p216
    %s219 = sadd.s32 %s218, 1
    %p222 = scmp.eq.s32.totalorder %s16, 1
    %p223 = scmp.ne.s32.totalorder %s218, %s220
    %p224 = scmp.eq.s32.totalorder %s16, 0
    %p225 = por %p223, %p224
    %p226 = scmp.ne.s32.totalorder %s218, %s220
    %p227 = scmp.eq.s32.totalorder %s21, 1
    %p228 = por %p226, %p227
    %p229 = scmp.ne.s32.totalorder %s220, %s221
    %p230 = scmp.eq.s32.totalorder %s21, 0
    %p231 = por %p229, %p230
    %p232 = scmp.ne.s32.totalorder %s220, %s221
    %p233 = scmp.eq.s32.totalorder %s22, 1
    %p234 = por %p232, %p233
    %p236 = scmp.ne.s32.totalorder %s221, %s235
    %p237 = scmp.eq.s32.totalorder %s22, 0
    %p238 = por %p236, %p237
    %s239 = ssub.s32 %s16, %s23
    %p240 = scmp.eq.s32.totalorder %s239, 0
    %s242 = sadd.s32 %s241, 1
    %s243 = scalar_select %p240, %s241, %s242
    %p246 = pneg %p240
    %p247 = scmp.eq.s32.totalorder %s16, 1
    %p248 = por %p246, %p247
    %p249 = scmp.ne.s32.totalorder %s241, %s244
    %p250 = scmp.eq.s32.totalorder %s16, 0
    %p251 = por %p249, %p250
    %p252 = scmp.ne.s32.totalorder %s241, %s244
    %p253 = scmp.eq.s32.totalorder %s21, 1
    %p254 = por %p252, %p253
    %p255 = scmp.ne.s32.totalorder %s244, %s245
    %p256 = scmp.eq.s32.totalorder %s21, 0
    %p257 = por %p255, %p256
    %p258 = scmp.ne.s32.totalorder %s244, %s245
    %p259 = scmp.eq.s32.totalorder %s22, 1
    %p260 = por %p258, %p259
    %p262 = scmp.ne.s32.totalorder %s245, %s261
    %p263 = scmp.eq.s32.totalorder %s22, 0
    %p264 = por %p262, %p263
    %p265 = scmp.le.s32.totalorder 1, %s16
    %p266 = scmp.lt.s32.totalorder %s16, 3
    %p267 = pnand %p265, %p266
    %p268 = pneg %p267
    // Predicated region
    $region9: #{inception_forward.1} parent=5 // pred_check
      _
    $region10: #{inception_forward.1} parent=5 // pred_check_branch
      %270 = sbr.rel (%p267) target = $region12
    $region11: #{inception_forward.1} parent=5 // pred_region
      %s271 = ssub.s32 %s16, 1
      // Predicated region
      $region13: #{inception_forward.1} parent=11 // pred_check
        %p272 = pneg %p63
      $region14: #{inception_forward.1} parent=11 // pred_check_branch
        %274 = sbr.rel (%p272) target = $region16
      $region15: #{inception_forward.1} parent=11 // pred_region
        _
      $region16: #{inception_forward.1} parent=11 // pred_fallthru
        _
      // Predicated region
      $region17: #{inception_forward.1} parent=11 // pred_check
        %p275 = pneg %p84
      $region18: #{inception_forward.1} parent=11 // pred_check_branch
        %277 = sbr.rel (%p275) target = $region20
      $region19: #{inception_forward.1} parent=11 // pred_region
        _
      $region20: #{inception_forward.1} parent=11 // pred_fallthru
        _
      // Predicated region
      $region21: #{inception_forward.1} parent=11 // pred_check
        %p278 = pneg %p105
      $region22: #{inception_forward.1} parent=11 // pred_check_branch
        %280 = sbr.rel (%p278) target = $region24
      $region23: #{inception_forward.1} parent=11 // pred_region
        _
      $region24: #{inception_forward.1} parent=11 // pred_fallthru
        _
      // Predicated region
      $region25: #{inception_forward.1} parent=11 // pred_check
        %p281 = pneg %p126
      $region26: #{inception_forward.1} parent=11 // pred_check_branch
        %283 = sbr.rel (%p281) target = $region28
      $region27: #{inception_forward.1} parent=11 // pred_region
        _
      $region28: #{inception_forward.1} parent=11 // pred_fallthru
        _
      // Predicated region
      $region29: #{inception_forward.1} parent=11 // pred_check
        %p284 = pneg %p147
      $region30: #{inception_forward.1} parent=11 // pred_check_branch
        %286 = sbr.rel (%p284) target = $region32
      $region31: #{inception_forward.1} parent=11 // pred_region
        _
      $region32: #{inception_forward.1} parent=11 // pred_fallthru
        _
      // Predicated region
      $region33: #{inception_forward.1} parent=11 // pred_check
        %p287 = pneg %p168
      $region34: #{inception_forward.1} parent=11 // pred_check_branch
        %289 = sbr.rel (%p287) target = $region36
      $region35: #{inception_forward.1} parent=11 // pred_region
        _
      $region36: #{inception_forward.1} parent=11 // pred_fallthru
        _
      // Predicated region
      $region37: #{inception_forward.1} parent=11 // pred_check
        %p290 = pneg %p189
      $region38: #{inception_forward.1} parent=11 // pred_check_branch
        %292 = sbr.rel (%p290) target = $region40
      $region39: #{inception_forward.1} parent=11 // pred_region
        _
      $region40: #{inception_forward.1} parent=11 // pred_fallthru
        _
      // Predicated region
      $region41: #{inception_forward.1} parent=11 // pred_check
        %p293 = pneg %p210
      $region42: #{inception_forward.1} parent=11 // pred_check_branch
        %295 = sbr.rel (%p293) target = $region44
      $region43: #{inception_forward.1} parent=11 // pred_region
        _
      $region44: #{inception_forward.1} parent=11 // pred_fallthru
        _
      // Predicated region
      $region45: #{inception_forward.1} parent=11 // pred_check
        %p296 = pneg %p231
      $region46: #{inception_forward.1} parent=11 // pred_check_branch
        %298 = sbr.rel (%p296) target = $region48
      $region47: #{inception_forward.1} parent=11 // pred_region
        _
      $region48: #{inception_forward.1} parent=11 // pred_fallthru
        _
    $region12: #{inception_forward.1} parent=5 // pred_fallthru
      _
    %p299 = scmp.lt.s32.totalorder %s16, 2
    // Predicated region
    $region49: #{inception_forward.1} parent=5 // pred_check
      %p300 = pneg %p299
    $region50: #{inception_forward.1} parent=5 // pred_check_branch
      %302 = sbr.rel (%p300) target = $region52
    $region51: #{inception_forward.1} parent=5 // pred_region
      // Predicated region
      $region53: #{inception_forward.1} parent=51 // pred_check
        %p303 = pneg %p36
      $region54: #{inception_forward.1} parent=51 // pred_check_branch
        %305 = sbr.rel (%p303) target = $region56
      $region55: #{inception_forward.1} parent=51 // pred_region
        %p306 = scmp.lt.s32.totalorder %s16, 1
        %s307 = scalar_select %p306, %s16, 1
        %s308 = smul.addr %s307, 2
        %s309 = smul.addr %s308, 4
        %s310 = scalar_lea.vmem %s0, %s309
      $region56: #{inception_forward.1} parent=51 // pred_fallthru
        _
    $region52: #{inception_forward.1} parent=5 // pred_fallthru
      _
    %p311 = scmp.le.s32.totalorder 1, %s16
    %p312 = scmp.lt.s32.totalorder %s16, 3
    %p313 = pnand %p311, %p312
    %p314 = pneg %p313
    // Predicated region
    $region57: #{inception_forward.1} parent=5 // pred_check
      _
    $region58: #{inception_forward.1} parent=5 // pred_check_branch
      %316 = sbr.rel (%p313) target = $region60
    $region59: #{inception_forward.1} parent=5 // pred_region
      %s317 = ssub.s32 %s16, 1
      %p318 = scmp.lt.s32.totalorder %s21, 1
      %s319 = scalar_select %p318, %s21, 1
      %s320 = smul.addr %s319, 2
      %s321 = smul.addr %s320, 4
      %s322 = scalar_lea.vmem %s0, %s321
      %p323 = pneg %p42
      %p324 = pneg %p39
      %p325 = pneg %p63
      %p326 = pneg %p60
      %p327 = pneg %p84
      %p328 = pneg %p81
      %p329 = pneg %p105
      %p330 = pneg %p102
      %p331 = pneg %p126
      %p332 = pneg %p123
      %p333 = pneg %p147
      %p334 = pneg %p144
      %p335 = pneg %p168
      %p336 = pneg %p165
      %p337 = pneg %p189
      %p338 = pneg %p186
      %p339 = pneg %p210
      %p340 = pneg %p207
      %p341 = pneg %p231
      %p342 = pneg %p228
      %p343 = pneg %p257
      %p344 = pneg %p254
      %p345 = scmp.lt.s32.totalorder %s21, 1
      %s346 = scalar_select %p345, %s21, 1
      %s347 = smul.addr %s346, 16
      %s348 = smul.addr %s347, 8
      %s349 = scalar_lea.vmem %s10, %s348
      %p350 = scmp.lt.s32.totalorder %s21, 1
      %s351 = scalar_select %p350, %s21, 1
      %s352 = smul.addr %s351, 2
      %s353 = smul.addr %s352, 4
      %s354 = scalar_lea.vmem %s0, %s353
      %p355 = scmp.lt.s32.totalorder %s21, 1
      %s356 = scalar_select %p355, %s21, 1
      %s357 = smul.addr %s356, 16
      %s358 = smul.addr %s357, 8
      %s359 = scalar_lea.vmem %s10, %s358
      %v360 = vlaneseq
      %v361 = vand.u32 %v360, 127
      %v362 = vadd.s32 %v361, 128
      %v363 = vand.u32 %v361, 15
      %v364 = vand.u32 %v362, 15
      %v365 = vshra.s32 %v361, 4
      %v366 = vshra.s32 %v362, 4
      %v367 = vadd.s32 %v363, 4294967294
      %v368 = vadd.s32 %v364, 4294967294
      %vm369 = vcmp.ge.s32.totalorder %v367, 0
      %vm370 = vcmp.ge.s32.totalorder %v368, 0
      %vm371 = vcmp.lt.s32.totalorder %v367, 16
      %vm372 = vcmp.lt.s32.totalorder %v368, 16
      %vm373 = vmand %vm369, %vm371
      %vm374 = vmand %vm370, %vm372
      %v375 = vsel %vm373, 1, 0
      %v376 = vsel %vm374, 1, 0
      %v377 = vcvt.s32.f32 %v375
      %v378 = vcvt.s32.f32 %v376
      %v379 = vadd.s32 %v363, 4294967295
      %v380 = vadd.s32 %v364, 4294967295
      %vm381 = vcmp.ge.s32.totalorder %v379, 0
      %vm382 = vcmp.ge.s32.totalorder %v380, 0
      %vm383 = vcmp.lt.s32.totalorder %v379, 16
      %vm384 = vcmp.lt.s32.totalorder %v380, 16
      %vm385 = vmand %vm381, %vm383
      %vm386 = vmand %vm382, %vm384
      %v387 = vsel %vm385, 1, 0
      %v388 = vsel %vm386, 1, 0
      %v389 = vcvt.s32.f32 %v387
      %v390 = vcvt.s32.f32 %v388
      %vm391 = vcmp.ge.s32.totalorder %v363, 0
      %vm392 = vcmp.ge.s32.totalorder %v364, 0
      %vm393 = vcmp.lt.s32.totalorder %v363, 16
      %vm394 = vcmp.lt.s32.totalorder %v364, 16
      %vm395 = vmand %vm391, %vm393
      %vm396 = vmand %vm392, %vm394
      %v397 = vsel %vm395, 1, 0
      %v398 = vsel %vm396, 1, 0
      %v399 = vcvt.s32.f32 %v397
      %v400 = vcvt.s32.f32 %v398
      %v401 = vadd.s32 %v363, 1
      %v402 = vadd.s32 %v364, 1
      %vm403 = vcmp.ge.s32.totalorder %v401, 0
      %vm404 = vcmp.ge.s32.totalorder %v402, 0
      %vm405 = vcmp.lt.s32.totalorder %v401, 16
      %vm406 = vcmp.lt.s32.totalorder %v402, 16
      %vm407 = vmand %vm403, %vm405
      %vm408 = vmand %vm404, %vm406
      %v409 = vsel %vm407, 1, 0
      %v410 = vsel %vm408, 1, 0
      %v411 = vcvt.s32.f32 %v409
      %v412 = vcvt.s32.f32 %v410
      %v413 = vadd.s32 %v363, 2
      %v414 = vadd.s32 %v364, 2
      %vm415 = vcmp.ge.s32.totalorder %v413, 0
      %vm416 = vcmp.ge.s32.totalorder %v414, 0
      %vm417 = vcmp.lt.s32.totalorder %v413, 16
      %vm418 = vcmp.lt.s32.totalorder %v414, 16
      %vm419 = vmand %vm415, %vm417
      %vm420 = vmand %vm416, %vm418
      %v421 = vsel %vm419, 1, 0
      %v422 = vsel %vm420, 1, 0
      %v423 = vcvt.s32.f32 %v421
      %v424 = vcvt.s32.f32 %v422
      %v425 = vadd.s32 %v365, 4294967294
      %v426 = vadd.s32 %v366, 4294967294
      %vm427 = vcmp.ge.s32.totalorder %v425, 0
      %vm428 = vcmp.ge.s32.totalorder %v426, 0
      %vm429 = vcmp.lt.s32.totalorder %v425, 16
      %vm430 = vcmp.lt.s32.totalorder %v426, 16
      %vm431 = vmand %vm427, %vm429
      %vm432 = vmand %vm428, %vm430
      %v433 = vsel %vm431, 1, 0
      %v434 = vsel %vm432, 1, 0
      %v435 = vcvt.s32.f32 %v433
      %v436 = vcvt.s32.f32 %v434
      %v437 = vadd.s32 %v365, 4294967295
      %v438 = vadd.s32 %v366, 4294967295
      %vm439 = vcmp.ge.s32.totalorder %v437, 0
      %vm440 = vcmp.ge.s32.totalorder %v438, 0
      %vm441 = vcmp.lt.s32.totalorder %v437, 16
      %vm442 = vcmp.lt.s32.totalorder %v438, 16
      %vm443 = vmand %vm439, %vm441
      %vm444 = vmand %vm440, %vm442
      %v445 = vsel %vm443, 1, 0
      %v446 = vsel %vm444, 1, 0
      %v447 = vcvt.s32.f32 %v445
      %v448 = vcvt.s32.f32 %v446
      %vm449 = vcmp.ge.s32.totalorder %v365, 0
      %vm450 = vcmp.ge.s32.totalorder %v366, 0
      %vm451 = vcmp.lt.s32.totalorder %v365, 16
      %vm452 = vcmp.lt.s32.totalorder %v366, 16
      %vm453 = vmand %vm449, %vm451
      %vm454 = vmand %vm450, %vm452
      %v455 = vsel %vm453, 1, 0
      %v456 = vsel %vm454, 1, 0
      %v457 = vcvt.s32.f32 %v455
      %v458 = vcvt.s32.f32 %v456
      %v459 = vadd.s32 %v365, 1
      %v460 = vadd.s32 %v366, 1
      %vm461 = vcmp.ge.s32.totalorder %v459, 0
      %vm462 = vcmp.ge.s32.totalorder %v460, 0
      %vm463 = vcmp.lt.s32.totalorder %v459, 16
      %vm464 = vcmp.lt.s32.totalorder %v460, 16
      %vm465 = vmand %vm461, %vm463
      %vm466 = vmand %vm462, %vm464
      %v467 = vsel %vm465, 1, 0
      %v468 = vsel %vm466, 1, 0
      %v469 = vcvt.s32.f32 %v467
      %v470 = vcvt.s32.f32 %v468
      %v471 = vadd.s32 %v365, 2
      %v472 = vadd.s32 %v366, 2
      %vm473 = vcmp.ge.s32.totalorder %v471, 0
      %vm474 = vcmp.ge.s32.totalorder %v472, 0
      %vm475 = vcmp.lt.s32.totalorder %v471, 16
      %vm476 = vcmp.lt.s32.totalorder %v472, 16
      %vm477 = vmand %vm473, %vm475
      %vm478 = vmand %vm474, %vm476
      %v479 = vsel %vm477, 1, 0
      %v480 = vsel %vm478, 1, 0
      %v481 = vcvt.s32.f32 %v479
      %v482 = vcvt.s32.f32 %v480
      %v483 = vld [vmem:[%s354] sm:$0xff]
      %v484 = vld [vmem:[%s1] sm:$0xff]
      %v485 = vld [vmem:[%s1 + $0x8] sm:$0xff]
      %v486 = vld [vmem:[%s1 + $0x10] sm:$0xff]
      %v487 = vld [vmem:[%s1 + $0x18] sm:$0xff]
      %v488 = vld [vmem:[%s1 + $0x20] sm:$0xff]
      %v489 = vld [vmem:[%s1 + $0x28] sm:$0xff]
      %v490 = vld [vmem:[%s1 + $0x30] sm:$0xff]
      %v491 = vld [vmem:[%s1 + $0x38] sm:$0xff]
      %v492 = vld [vmem:[%s2] sm:$0xff]
      %v493 = vld [vmem:[%s2 + $0x8] sm:$0xff]
      %v494 = vld [vmem:[%s2 + $0x10] sm:$0xff]
      %v495 = vld [vmem:[%s2 + $0x18] sm:$0xff]
      %v496 = vld [vmem:[%s2 + $0x20] sm:$0xff]
      %v497 = vld [vmem:[%s2 + $0x28] sm:$0xff]
      %v498 = vld [vmem:[%s2 + $0x30] sm:$0xff]
      %v499 = vld [vmem:[%s2 + $0x38] sm:$0xff]
      %501 = vset.pattern.permute.xlu0 0
      %502 = vperm.xlu0 %501, %v492
      %v503 = vpop.permute.xlu0 %502
      %506 = vset.pattern.permute.xlu0 0
      %507 = vperm.xlu0 %506, %v493
      %v508 = vpop.permute.xlu0 %507
      %511 = vset.pattern.permute.xlu0 0
      %512 = vperm.xlu0 %511, %v494
      %v513 = vpop.permute.xlu0 %512
      %516 = vset.pattern.permute.xlu0 0
      %517 = vperm.xlu0 %516, %v495
      %v518 = vpop.permute.xlu0 %517
      %521 = vset.pattern.permute.xlu0 0
      %522 = vperm.xlu0 %521, %v496
      %v523 = vpop.permute.xlu0 %522
      %526 = vset.pattern.permute.xlu0 0
      %527 = vperm.xlu0 %526, %v497
      %v528 = vpop.permute.xlu0 %527
      %531 = vset.pattern.permute.xlu0 0
      %532 = vperm.xlu0 %531, %v498
      %v533 = vpop.permute.xlu0 %532
      %536 = vset.pattern.permute.xlu0 0
      %537 = vperm.xlu0 %536, %v499
      %v538 = vpop.permute.xlu0 %537
      %v541 = vcombine.high %v483, %v483
      %vm542 = vcmask 31744
      %v544 = vsel %vm542, %v484, 0
      %v547 = vsel %vm542, %v485, 0
      %v550 = vsel %vm542, %v486, 0
      %v553 = vsel %vm542, %v487, 0
      %v556 = vsel %vm542, %v488, 0
      %v559 = vsel %vm542, %v489, 0
      %v562 = vsel %vm542, %v490, 0
      %v565 = vsel %vm542, %v491, 0
      %vm567 = vcmask 1043456
      %v568 = vsel %vm567, %v483, 0
      %v570 = vsel %vm567, %v541, 0
      %572 = vmatprep.subr.mxu0 %v570
      %573 = vmatpush1.msra.mxu0 %v568
      %574 = vmatprep.subr.mxu0 0.0
      %575 = vmatpush1.msra.mxu0 0.0
      %576 = vmatprep.subr.mxu0 0.0
      %577 = vmatpush1.msra.mxu0 0.0
      %578 = vmatprep.subr.mxu0 0.0
      %579 = vmatpush1.msra.mxu0 0.0
      %580 = vmatprep.subr.mxu0 0.0
      %581 = vmatpush1.msra.mxu0 0.0
      %582 = vmatprep.subr.mxu0 0.0
      %583 = vmatpush1.msra.mxu0 0.0
      %584 = vmatprep.subr.mxu0 0.0
      %585 = vmatpush1.msra.mxu0 0.0
      %586 = vmatprep.subr.mxu0 0.0
      %587 = vmatpush1.msra.mxu0 0.0
      %588 = vmatprep.subr.mxu0 0.0
      %589 = vmatpush1.msra.mxu0 0.0
      %590 = vmatprep.subr.mxu0 0.0
      %591 = vmatpush1.msra.mxu0 0.0
      %592 = vmatprep.subr.mxu0 0.0
      %593 = vmatpush1.msra.mxu0 0.0
      %594 = vmatprep.subr.mxu0 0.0
      %595 = vmatpush1.msra.mxu0 0.0
      %596 = vmatprep.subr.mxu0 0.0
      %597 = vmatpush1.msra.mxu0 0.0
      %598 = vmatprep.subr.mxu0 0.0
      %599 = vmatpush1.msra.mxu0 0.0
      %600 = vmatprep.subr.mxu0 0.0
      %601 = vmatpush1.msra.mxu0 0.0
      %602 = vmatprep.subr.mxu0 0.0
      %603 = vmatpush1.msra.mxu0 0.0
      %604 = vmatprep.subr.mxu0 0.0
      %605 = vmatpush1.msra.mxu0 0.0
      %606 = vmatprep.subr.mxu0 0.0
      %607 = vmatpush1.msra.mxu0 0.0
      %608 = vmatprep.subr.mxu0 0.0
      %609 = vmatpush1.msra.mxu0 0.0
      %610 = vmatprep.subr.mxu0 0.0
      %611 = vmatpush1.msra.mxu0 0.0
      %612 = vmatprep.subr.mxu0 0.0
      %613 = vmatpush1.msra.mxu0 0.0
      %614 = vmatprep.subr.mxu0 0.0
      %615 = vmatpush1.msra.mxu0 0.0
      %616 = vmatprep.subr.mxu0 0.0
      %617 = vmatpush1.msra.mxu0 0.0
      %618 = vmatprep.subr.mxu0 0.0
      %619 = vmatpush1.msra.mxu0 0.0
      %620 = vmatprep.subr.mxu0 0.0
      %621 = vmatpush1.msra.mxu0 0.0
      %622 = vmatprep.subr.mxu0 0.0
      %623 = vmatpush1.msra.mxu0 0.0
      %624 = vmatprep.subr.mxu0 0.0
      %625 = vmatpush1.msra.mxu0 0.0
      %626 = vmatprep.subr.mxu0 0.0
      %627 = vmatpush1.msra.mxu0 0.0
      %628 = vmatprep.subr.mxu0 0.0
      %629 = vmatpush1.msra.mxu0 0.0
      %630 = vmatprep.subr.mxu0 0.0
      %631 = vmatpush1.msra.mxu0 0.0
      %632 = vmatprep.subr.mxu0 0.0
      %633 = vmatpush1.msra.mxu0 0.0
      %634 = vmatprep.subr.mxu0 0.0
      %635 = vmatpush1.msra.mxu0 0.0
      %636 = vmatprep.mubr.f32.mxu0 0.0
      %637 = vmatmul.mubr.f32.gmra.mrb[0].mxu0 %v544
      %v638 = vpop.f32.mrb[0].mxu0
      %v639 = vadd.f32 %v503, %v638
      %v640 = vpop.f32.mrb[0].mxu0
      %v641 = vadd.f32 %v503, %v640
      %642 = vmatprep.mubr.f32.mxu0 0.0
      %643 = vmatmul.mubr.f32.gmra.mrb[0].mxu0 %v547
      %v644 = vpop.f32.mrb[0].mxu0
      %v645 = vadd.f32 %v508, %v644
      %v646 = vpop.f32.mrb[0].mxu0
      %v647 = vadd.f32 %v508, %v646
      %648 = vmatprep.mubr.f32.mxu0 0.0
      %649 = vmatmul.mubr.f32.gmra.mrb[0].mxu0 %v550
      %v650 = vpop.f32.mrb[0].mxu0
      %v651 = vadd.f32 %v513, %v650
      %v652 = vpop.f32.mrb[0].mxu0
      %v653 = vadd.f32 %v513, %v652
      %654 = vmatprep.mubr.f32.mxu0 0.0
      %655 = vmatmul.mubr.f32.gmra.mrb[0].mxu0 %v553
      %v656 = vpop.f32.mrb[0].mxu0
      %v657 = vadd.f32 %v518, %v656
      %v658 = vpop.f32.mrb[0].mxu0
      %v659 = vadd.f32 %v518, %v658
      %660 = vmatprep.mubr.f32.mxu0 0.0
      %661 = vmatmul.mubr.f32.gmra.mrb[0].mxu0 %v556
      %v662 = vpop.f32.mrb[0].mxu0
      %v663 = vadd.f32 %v523, %v662
      %v664 = vpop.f32.mrb[0].mxu0
      %v665 = vadd.f32 %v523, %v664
      %666 = vmatprep.mubr.f32.mxu0 0.0
      %667 = vmatmul.mubr.f32.gmra.mrb[0].mxu0 %v559
      %v668 = vpop.f32.mrb[0].mxu0
      %v669 = vadd.f32 %v528, %v668
      %v670 = vpop.f32.mrb[0].mxu0
      %v671 = vadd.f32 %v528, %v670
      %672 = vmatprep.mubr.f32.mxu0 0.0
      %673 = vmatmul.mubr.f32.gmra.mrb[0].mxu0 %v562
      %v674 = vpop.f32.mrb[0].mxu0
      %v675 = vadd.f32 %v533, %v674
      %v676 = vpop.f32.mrb[0].mxu0
      %v677 = vadd.f32 %v533, %v676
      %678 = vmatprep.mubr.f32.mxu0 0.0
      %679 = vmatmul.mubr.f32.gmra.mrb[0].mxu0 %v565
      %v680 = vpop.f32.mrb[0].mxu0
      %v681 = vadd.f32 %v538, %v680
      %v682 = vpop.f32.mrb[0].mxu0
      %v683 = vadd.f32 %v538, %v682
      %684 = vdwg.mxu0
      %685 = vst [vmem:[%s359] sm:$0xff] %v639
      %686 = vst [vmem:[%s359 + $0x8] sm:$0xff] %v641
      %687 = vst [vmem:[%s359 + $0x10] sm:$0xff] %v645
      %688 = vst [vmem:[%s359 + $0x18] sm:$0xff] %v647
      %689 = vrot.lane.b32.xlu0 %v651, 34
      %v690 = vpop.permute.xlu0 %689
      %691 = vrot.lane.b32.xlu0 %v657, 34
      %v692 = vpop.permute.xlu0 %691
      %693 = vrot.lane.b32.xlu0 %v653, 34
      %v694 = vpop.permute.xlu0 %693
      %695 = vrot.lane.b32.xlu0 %v659, 34
      %v696 = vpop.permute.xlu0 %695
      %vm697 = vcmp.lt.s32.totalorder %v361, 34
      %v698 = vsel %vm697, %v690, %v694
      %v699 = vsel %vm697, %v692, %v696
      %v700 = vsel %vm697, %v694, %v690
      %v701 = vsel %vm697, %v696, %v692
      %v702 = vmul.f32 %v377, %v435
      %v703 = vmul.f32 %v378, %v436
      %v704 = vmul.f32 %v700, %v702
      %v705 = vmul.f32 %v698, %v703
      %v706 = vmul.f32 %v701, %v702
      %v707 = vmul.f32 %v699, %v703
      %708 = vst [vmem:[#allocation2] sm:$0xff] %v704
      %709 = vst [vmem:[#allocation2 + $0x8] sm:$0xff] %v705
      %710 = vst [vmem:[#allocation2 + $0x10] sm:$0xff] %v706
      %711 = vst [vmem:[#allocation2 + $0x18] sm:$0xff] %v707
      %712 = vrot.lane.b32.xlu0 %v651, 33
      %v713 = vpop.permute.xlu0 %712
      %714 = vrot.lane.b32.xlu0 %v657, 33
      %v715 = vpop.permute.xlu0 %714
      %716 = vrot.lane.b32.xlu0 %v653, 33
      %v717 = vpop.permute.xlu0 %716
      %718 = vrot.lane.b32.xlu0 %v659, 33
      %v719 = vpop.permute.xlu0 %718
      %vm720 = vcmp.lt.s32.totalorder %v361, 33
      %v721 = vsel %vm720, %v713, %v717
      %v722 = vsel %vm720, %v715, %v719
      %v723 = vsel %vm720, %v717, %v713
      %v724 = vsel %vm720, %v719, %v715
      %v725 = vmul.f32 %v389, %v435
      %v726 = vmul.f32 %v390, %v436
      %v727 = vmul.f32 %v723, %v725
      %v728 = vmul.f32 %v721, %v726
      %v729 = vmul.f32 %v724, %v725
      %v730 = vmul.f32 %v722, %v726
      %731 = vst [vmem:[#allocation2 + $0x20] sm:$0xff] %v727
      %732 = vst [vmem:[#allocation2 + $0x28] sm:$0xff] %v728
      %733 = vst [vmem:[#allocation2 + $0x30] sm:$0xff] %v729
      %734 = vst [vmem:[#allocation2 + $0x38] sm:$0xff] %v730
      %735 = vrot.lane.b32.xlu0 %v651, 32
      %v736 = vpop.permute.xlu0 %735
      %737 = vrot.lane.b32.xlu0 %v657, 32
      %v738 = vpop.permute.xlu0 %737
      %739 = vrot.lane.b32.xlu0 %v653, 32
      %v740 = vpop.permute.xlu0 %739
      %741 = vrot.lane.b32.xlu0 %v659, 32
      %v742 = vpop.permute.xlu0 %741
      %vm743 = vcmp.lt.s32.totalorder %v361, 32
      %v744 = vsel %vm743, %v736, %v740
      %v745 = vsel %vm743, %v738, %v742
      %v746 = vsel %vm743, %v740, %v736
      %v747 = vsel %vm743, %v742, %v738
      %v748 = vmul.f32 %v399, %v435
      %v749 = vmul.f32 %v400, %v436
      %v750 = vmul.f32 %v746, %v748
      %v751 = vmul.f32 %v744, %v749
      %v752 = vmul.f32 %v747, %v748
      %v753 = vmul.f32 %v745, %v749
      %754 = vst [vmem:[#allocation2 + $0x40] sm:$0xff] %v750
      %755 = vst [vmem:[#allocation2 + $0x48] sm:$0xff] %v751
      %756 = vst [vmem:[#allocation2 + $0x50] sm:$0xff] %v752
      %757 = vst [vmem:[#allocation2 + $0x58] sm:$0xff] %v753
      %758 = vrot.lane.b32.xlu0 %v651, 31
      %v759 = vpop.permute.xlu0 %758
      %760 = vrot.lane.b32.xlu0 %v657, 31
      %v761 = vpop.permute.xlu0 %760
      %762 = vrot.lane.b32.xlu0 %v653, 31
      %v763 = vpop.permute.xlu0 %762
      %764 = vrot.lane.b32.xlu0 %v659, 31
      %v765 = vpop.permute.xlu0 %764
      %vm766 = vcmp.lt.s32.totalorder %v361, 31
      %v767 = vsel %vm766, %v759, %v763
      %v768 = vsel %vm766, %v761, %v765
      %v769 = vsel %vm766, %v763, %v759
      %v770 = vsel %vm766, %v765, %v761
      %v771 = vmul.f32 %v411, %v435
      %v772 = vmul.f32 %v412, %v436
      %v773 = vmul.f32 %v769, %v771
      %v774 = vmul.f32 %v767, %v772
      %v775 = vmul.f32 %v770, %v771
      %v776 = vmul.f32 %v768, %v772
      %777 = vst [vmem:[#allocation2 + $0x60] sm:$0xff] %v773
      %778 = vst [vmem:[#allocation2 + $0x68] sm:$0xff] %v774
      %779 = vst [vmem:[#allocation2 + $0x70] sm:$0xff] %v775
      %780 = vst [vmem:[#allocation2 + $0x78] sm:$0xff] %v776
      %781 = vrot.lane.b32.xlu0 %v651, 30
      %v782 = vpop.permute.xlu0 %781
      %783 = vrot.lane.b32.xlu0 %v657, 30
      %v784 = vpop.permute.xlu0 %783
      %785 = vrot.lane.b32.xlu0 %v653, 30
      %v786 = vpop.permute.xlu0 %785
      %787 = vrot.lane.b32.xlu0 %v659, 30
      %v788 = vpop.permute.xlu0 %787
      %vm789 = vcmp.lt.s32.totalorder %v361, 30
      %v790 = vsel %vm789, %v782, %v786
      %v791 = vsel %vm789, %v784, %v788
      %v792 = vsel %vm789, %v786, %v782
      %v793 = vsel %vm789, %v788, %v784
      %v794 = vmul.f32 %v423, %v435
      %v795 = vmul.f32 %v424, %v436
      %v796 = vmul.f32 %v792, %v794
      %v797 = vmul.f32 %v790, %v795
      %v798 = vmul.f32 %v793, %v794
      %v799 = vmul.f32 %v791, %v795
      %800 = vst [vmem:[#allocation2 + $0x80] sm:$0xff] %v796
      %801 = vst [vmem:[#allocation2 + $0x88] sm:$0xff] %v797
      %802 = vst [vmem:[#allocation2 + $0x90] sm:$0xff] %v798
      %803 = vst [vmem:[#allocation2 + $0x98] sm:$0xff] %v799
      %804 = vrot.lane.b32.xlu0 %v651, 18
      %v805 = vpop.permute.xlu0 %804
      %806 = vrot.lane.b32.xlu0 %v657, 18
      %v807 = vpop.permute.xlu0 %806
      %808 = vrot.lane.b32.xlu0 %v653, 18
      %v809 = vpop.permute.xlu0 %808
      %810 = vrot.lane.b32.xlu0 %v659, 18
      %v811 = vpop.permute.xlu0 %810
      %vm812 = vcmp.lt.s32.totalorder %v361, 18
      %v813 = vsel %vm812, %v805, %v809
      %v814 = vsel %vm812, %v807, %v811
      %v815 = vsel %vm812, %v809, %v805
      %v816 = vsel %vm812, %v811, %v807
      %v817 = vmul.f32 %v377, %v447
      %v818 = vmul.f32 %v378, %v448
      %v819 = vmul.f32 %v815, %v817
      %v820 = vmul.f32 %v813, %v818
      %v821 = vmul.f32 %v816, %v817
      %v822 = vmul.f32 %v814, %v818
      %823 = vst [vmem:[#allocation2 + $0xa0] sm:$0xff] %v819
      %824 = vst [vmem:[#allocation2 + $0xa8] sm:$0xff] %v820
      %825 = vst [vmem:[#allocation2 + $0xb0] sm:$0xff] %v821
      %826 = vst [vmem:[#allocation2 + $0xb8] sm:$0xff] %v822
      %827 = vrot.lane.b32.xlu0 %v651, 17
      %v828 = vpop.permute.xlu0 %827
      %829 = vrot.lane.b32.xlu0 %v657, 17
      %v830 = vpop.permute.xlu0 %829
      %831 = vrot.lane.b32.xlu0 %v653, 17
      %v832 = vpop.permute.xlu0 %831
      %833 = vrot.lane.b32.xlu0 %v659, 17
      %v834 = vpop.permute.xlu0 %833
      %vm835 = vcmp.lt.s32.totalorder %v361, 17
      %v836 = vsel %vm835, %v828, %v832
      %v837 = vsel %vm835, %v830, %v834
      %v838 = vsel %vm835, %v832, %v828
      %v839 = vsel %vm835, %v834, %v830
      %v840 = vmul.f32 %v389, %v447
      %v841 = vmul.f32 %v390, %v448
      %v842 = vmul.f32 %v838, %v840
      %v843 = vmul.f32 %v836, %v841
      %v844 = vmul.f32 %v839, %v840
      %v845 = vmul.f32 %v837, %v841
      %846 = vst [vmem:[#allocation2 + $0xc0] sm:$0xff] %v842
      %847 = vst [vmem:[#allocation2 + $0xc8] sm:$0xff] %v843
      %848 = vst [vmem:[#allocation2 + $0xd0] sm:$0xff] %v844
      %849 = vst [vmem:[#allocation2 + $0xd8] sm:$0xff] %v845
      %850 = vrot.lane.b32.xlu0 %v651, 16
      %v851 = vpop.permute.xlu0 %850
      %852 = vrot.lane.b32.xlu0 %v657, 16
      %v853 = vpop.permute.xlu0 %852
      %854 = vrot.lane.b32.xlu0 %v653, 16
      %v855 = vpop.permute.xlu0 %854
      %856 = vrot.lane.b32.xlu0 %v659, 16
      %v857 = vpop.permute.xlu0 %856
      %vm858 = vcmp.lt.s32.totalorder %v361, 16
      %v859 = vsel %vm858, %v851, %v855
      %v860 = vsel %vm858, %v853, %v857
      %v861 = vsel %vm858, %v855, %v851
      %v862 = vsel %vm858, %v857, %v853
      %v863 = vmul.f32 %v399, %v447
      %v864 = vmul.f32 %v400, %v448
      %v865 = vmul.f32 %v861, %v863
      %v866 = vmul.f32 %v859, %v864
      %v867 = vmul.f32 %v862, %v863
      %v868 = vmul.f32 %v860, %v864
      %869 = vst [vmem:[#allocation2 + $0xe0] sm:$0xff] %v865
      %870 = vst [vmem:[#allocation2 + $0xe8] sm:$0xff] %v866
      %871 = vst [vmem:[#allocation2 + $0xf0] sm:$0xff] %v867
      %872 = vst [vmem:[#allocation2 + $0xf8] sm:$0xff] %v868
      %873 = vrot.lane.b32.xlu0 %v651, 15
      %v874 = vpop.permute.xlu0 %873
      %875 = vrot.lane.b32.xlu0 %v657, 15
      %v876 = vpop.permute.xlu0 %875
      %877 = vrot.lane.b32.xlu0 %v653, 15
      %v878 = vpop.permute.xlu0 %877
      %879 = vrot.lane.b32.xlu0 %v659, 15
      %v880 = vpop.permute.xlu0 %879
      %vm881 = vcmp.lt.s32.totalorder %v361, 15
      %v882 = vsel %vm881, %v874, %v878
      %v883 = vsel %vm881, %v876, %v880
      %v884 = vsel %vm881, %v878, %v874
      %v885 = vsel %vm881, %v880, %v876
      %v886 = vmul.f32 %v411, %v447
      %v887 = vmul.f32 %v412, %v448
      %v888 = vmul.f32 %v884, %v886
      %v889 = vmul.f32 %v882, %v887
      %v890 = vmul.f32 %v885, %v886
      %v891 = vmul.f32 %v883, %v887
      %892 = vst [vmem:[#allocation2 + $0x100] sm:$0xff] %v888
      %893 = vst [vmem:[#allocation2 + $0x108] sm:$0xff] %v889
      %894 = vst [vmem:[#allocation2 + $0x110] sm:$0xff] %v890
      %895 = vst [vmem:[#allocation2 + $0x118] sm:$0xff] %v891
      %896 = vrot.lane.b32.xlu0 %v651, 14
      %v897 = vpop.permute.xlu0 %896
      %898 = vrot.lane.b32.xlu0 %v657, 14
      %v899 = vpop.permute.xlu0 %898
      %900 = vrot.lane.b32.xlu0 %v653, 14
      %v901 = vpop.permute.xlu0 %900
      %902 = vrot.lane.b32.xlu0 %v659, 14
      %v903 = vpop.permute.xlu0 %902
      %vm904 = vcmp.lt.s32.totalorder %v361, 14
      %v905 = vsel %vm904, %v897, %v901
      %v906 = vsel %vm904, %v899, %v903
      %v907 = vsel %vm904, %v901, %v897
      %v908 = vsel %vm904, %v903, %v899
      %v909 = vmul.f32 %v423, %v447
      %v910 = vmul.f32 %v424, %v448
      %v911 = vmul.f32 %v907, %v909
      %v912 = vmul.f32 %v905, %v910
      %v913 = vmul.f32 %v908, %v909
      %v914 = vmul.f32 %v906, %v910
      %915 = vst [vmem:[#allocation2 + $0x120] sm:$0xff] %v911
      %916 = vst [vmem:[#allocation2 + $0x128] sm:$0xff] %v912
      %917 = vst [vmem:[#allocation2 + $0x130] sm:$0xff] %v913
      %918 = vst [vmem:[#allocation2 + $0x138] sm:$0xff] %v914
      %919 = vrot.lane.b32.xlu0 %v651, 2
      %v920 = vpop.permute.xlu0 %919
      %921 = vrot.lane.b32.xlu0 %v657, 2
      %v922 = vpop.permute.xlu0 %921
      %923 = vrot.lane.b32.xlu0 %v653, 2
      %v924 = vpop.permute.xlu0 %923
      %925 = vrot.lane.b32.xlu0 %v659, 2
      %v926 = vpop.permute.xlu0 %925
      %vm927 = vcmp.lt.s32.totalorder %v361, 2
      %v928 = vsel %vm927, %v920, %v924
      %v929 = vsel %vm927, %v922, %v926
      %v930 = vsel %vm927, %v924, %v920
      %v931 = vsel %vm927, %v926, %v922
      %v932 = vmul.f32 %v377, %v457
      %v933 = vmul.f32 %v378, %v458
      %v934 = vmul.f32 %v930, %v932
      %v935 = vmul.f32 %v928, %v933
      %v936 = vmul.f32 %v931, %v932
      %v937 = vmul.f32 %v929, %v933
      %938 = vst [vmem:[#allocation2 + $0x140] sm:$0xff] %v934
      %939 = vst [vmem:[#allocation2 + $0x148] sm:$0xff] %v935
      %940 = vst [vmem:[#allocation2 + $0x150] sm:$0xff] %v936
      %941 = vst [vmem:[#allocation2 + $0x158] sm:$0xff] %v937
      %942 = vrot.lane.b32.xlu0 %v651, 1
      %v943 = vpop.permute.xlu0 %942
      %944 = vrot.lane.b32.xlu0 %v657, 1
      %v945 = vpop.permute.xlu0 %944
      %946 = vrot.lane.b32.xlu0 %v653, 1
      %v947 = vpop.permute.xlu0 %946
      %948 = vrot.lane.b32.xlu0 %v659, 1
      %v949 = vpop.permute.xlu0 %948
      %vm950 = vcmp.lt.s32.totalorder %v361, 1
      %v951 = vsel %vm950, %v943, %v947
      %v952 = vsel %vm950, %v945, %v949
      %v953 = vsel %vm950, %v947, %v943
      %v954 = vsel %vm950, %v949, %v945
      %v955 = vmul.f32 %v389, %v457
      %v956 = vmul.f32 %v390, %v458
      %v957 = vmul.f32 %v953, %v955
      %v958 = vmul.f32 %v951, %v956
      %v959 = vmul.f32 %v954, %v955
      %v960 = vmul.f32 %v952, %v956
      %961 = vst [vmem:[#allocation2 + $0x160] sm:$0xff] %v957
      %962 = vst [vmem:[#allocation2 + $0x168] sm:$0xff] %v958
      %963 = vst [vmem:[#allocation2 + $0x170] sm:$0xff] %v959
      %964 = vst [vmem:[#allocation2 + $0x178] sm:$0xff] %v960
      %965 = vst [vmem:[#allocation2 + $0x180] sm:$0xff] %v651
      %966 = vst [vmem:[#allocation2 + $0x188] sm:$0xff] %v653
      %967 = vst [vmem:[#allocation2 + $0x190] sm:$0xff] %v657
      %968 = vst [vmem:[#allocation2 + $0x198] sm:$0xff] %v659
      %969 = vrot.lane.b32.xlu0 %v651, 127
      %v970 = vpop.permute.xlu0 %969
      %971 = vrot.lane.b32.xlu0 %v657, 127
      %v972 = vpop.permute.xlu0 %971
      %973 = vrot.lane.b32.xlu0 %v653, 127
      %v974 = vpop.permute.xlu0 %973
      %975 = vrot.lane.b32.xlu0 %v659, 127
      %v976 = vpop.permute.xlu0 %975
      %vm977 = vcmp.lt.s32.totalorder %v361, 127
      %v978 = vsel %vm977, %v970, %v974
      %v979 = vsel %vm977, %v972, %v976
      %v980 = vsel %vm977, %v974, %v970
      %v981 = vsel %vm977, %v976, %v972
      %v982 = vmul.f32 %v411, %v457
      %v983 = vmul.f32 %v412, %v458
      %v984 = vmul.f32 %v978, %v982
      %v985 = vmul.f32 %v980, %v983
      %v986 = vmul.f32 %v979, %v982
      %v987 = vmul.f32 %v981, %v983
      %988 = vst [vmem:[#allocation2 + $0x1a0] sm:$0xff] %v984
      %989 = vst [vmem:[#allocation2 + $0x1a8] sm:$0xff] %v985
      %990 = vst [vmem:[#allocation2 + $0x1b0] sm:$0xff] %v986
      %991 = vst [vmem:[#allocation2 + $0x1b8] sm:$0xff] %v987
      %992 = vrot.lane.b32.xlu0 %v651, 126
      %v993 = vpop.permute.xlu0 %992
      %994 = vrot.lane.b32.xlu0 %v657, 126
      %v995 = vpop.permute.xlu0 %994
      %996 = vrot.lane.b32.xlu0 %v653, 126
      %v997 = vpop.permute.xlu0 %996
      %998 = vrot.lane.b32.xlu0 %v659, 126
      %v999 = vpop.permute.xlu0 %998
      %vm1000 = vcmp.lt.s32.totalorder %v361, 126
      %v1001 = vsel %vm1000, %v993, %v997
      %v1002 = vsel %vm1000, %v995, %v999
      %v1003 = vsel %vm1000, %v997, %v993
      %v1004 = vsel %vm1000, %v999, %v995
      %v1005 = vmul.f32 %v423, %v457
      %v1006 = vmul.f32 %v424, %v458
      %v1007 = vmul.f32 %v1001, %v1005
      %v1008 = vmul.f32 %v1003, %v1006
      %v1009 = vmul.f32 %v1002, %v1005
      %v1010 = vmul.f32 %v1004, %v1006
      %1011 = vst [vmem:[#allocation2 + $0x1c0] sm:$0xff] %v1007
      %1012 = vst [vmem:[#allocation2 + $0x1c8] sm:$0xff] %v1008
      %1013 = vst [vmem:[#allocation2 + $0x1d0] sm:$0xff] %v1009
      %1014 = vst [vmem:[#allocation2 + $0x1d8] sm:$0xff] %v1010
      %1015 = vrot.lane.b32.xlu0 %v651, 114
      %v1016 = vpop.permute.xlu0 %1015
      %1017 = vrot.lane.b32.xlu0 %v657, 114
      %v1018 = vpop.permute.xlu0 %1017
      %1019 = vrot.lane.b32.xlu0 %v653, 114
      %v1020 = vpop.permute.xlu0 %1019
      %1021 = vrot.lane.b32.xlu0 %v659, 114
      %v1022 = vpop.permute.xlu0 %1021
      %vm1023 = vcmp.lt.s32.totalorder %v361, 114
      %v1024 = vsel %vm1023, %v1016, %v1020
      %v1025 = vsel %vm1023, %v1018, %v1022
      %v1026 = vsel %vm1023, %v1020, %v1016
      %v1027 = vsel %vm1023, %v1022, %v1018
      %v1028 = vmul.f32 %v377, %v469
      %v1029 = vmul.f32 %v378, %v470
      %v1030 = vmul.f32 %v1024, %v1028
      %v1031 = vmul.f32 %v1026, %v1029
      %v1032 = vmul.f32 %v1025, %v1028
      %v1033 = vmul.f32 %v1027, %v1029
      %1034 = vst [vmem:[#allocation2 + $0x1e0] sm:$0xff] %v1030
      %1035 = vst [vmem:[#allocation2 + $0x1e8] sm:$0xff] %v1031
      %1036 = vst [vmem:[#allocation2 + $0x1f0] sm:$0xff] %v1032
      %1037 = vst [vmem:[#allocation2 + $0x1f8] sm:$0xff] %v1033
      %1038 = vrot.lane.b32.xlu0 %v651, 113
      %v1039 = vpop.permute.xlu0 %1038
      %1040 = vrot.lane.b32.xlu0 %v657, 113
      %v1041 = vpop.permute.xlu0 %1040
      %1042 = vrot.lane.b32.xlu0 %v653, 113
      %v1043 = vpop.permute.xlu0 %1042
      %1044 = vrot.lane.b32.xlu0 %v659, 113
      %v1045 = vpop.permute.xlu0 %1044
      %vm1046 = vcmp.lt.s32.totalorder %v361, 113
      %v1047 = vsel %vm1046, %v1039, %v1043
      %v1048 = vsel %vm1046, %v1041, %v1045
      %v1049 = vsel %vm1046, %v1043, %v1039
      %v1050 = vsel %vm1046, %v1045, %v1041
      %v1051 = vmul.f32 %v389, %v469
      %v1052 = vmul.f32 %v390, %v470
      %v1053 = vmul.f32 %v1047, %v1051
      %v1054 = vmul.f32 %v1049, %v1052
      %v1055 = vmul.f32 %v1048, %v1051
      %v1056 = vmul.f32 %v1050, %v1052
      %1057 = vst [vmem:[#allocation2 + $0x200] sm:$0xff] %v1053
      %1058 = vst [vmem:[#allocation2 + $0x208] sm:$0xff] %v1054
      %1059 = vst [vmem:[#allocation2 + $0x210] sm:$0xff] %v1055
      %1060 = vst [vmem:[#allocation2 + $0x218] sm:$0xff] %v1056
      %1061 = vrot.lane.b32.xlu0 %v651, 112
      %v1062 = vpop.permute.xlu0 %1061
      %1063 = vrot.lane.b32.xlu0 %v657, 112
      %v1064 = vpop.permute.xlu0 %1063
      %1065 = vrot.lane.b32.xlu0 %v653, 112
      %v1066 = vpop.permute.xlu0 %1065
      %1067 = vrot.lane.b32.xlu0 %v659, 112
      %v1068 = vpop.permute.xlu0 %1067
      %vm1069 = vcmp.lt.s32.totalorder %v361, 112
      %v1070 = vsel %vm1069, %v1062, %v1066
      %v1071 = vsel %vm1069, %v1064, %v1068
      %v1072 = vsel %vm1069, %v1066, %v1062
      %v1073 = vsel %vm1069, %v1068, %v1064
      %v1074 = vmul.f32 %v399, %v469
      %v1075 = vmul.f32 %v400, %v470
      %v1076 = vmul.f32 %v1070, %v1074
      %v1077 = vmul.f32 %v1072, %v1075
      %v1078 = vmul.f32 %v1071, %v1074
      %v1079 = vmul.f32 %v1073, %v1075
      %1080 = vst [vmem:[#allocation2 + $0x220] sm:$0xff] %v1076
      %1081 = vst [vmem:[#allocation2 + $0x228] sm:$0xff] %v1077
      %1082 = vst [vmem:[#allocation2 + $0x230] sm:$0xff] %v1078
      %1083 = vst [vmem:[#allocation2 + $0x238] sm:$0xff] %v1079
      %1084 = vrot.lane.b32.xlu0 %v651, 111
      %v1085 = vpop.permute.xlu0 %1084
      %1086 = vrot.lane.b32.xlu0 %v657, 111
      %v1087 = vpop.permute.xlu0 %1086
      %1088 = vrot.lane.b32.xlu0 %v653, 111
      %v1089 = vpop.permute.xlu0 %1088
      %1090 = vrot.lane.b32.xlu0 %v659, 111
      %v1091 = vpop.permute.xlu0 %1090
      %vm1092 = vcmp.lt.s32.totalorder %v361, 111
      %v1093 = vsel %vm1092, %v1085, %v1089
      %v1094 = vsel %vm1092, %v1087, %v1091
      %v1095 = vsel %vm1092, %v1089, %v1085
      %v1096 = vsel %vm1092, %v1091, %v1087
      %v1097 = vmul.f32 %v411, %v469
      %v1098 = vmul.f32 %v412, %v470
      %v1099 = vmul.f32 %v1093, %v1097
      %v1100 = vmul.f32 %v1095, %v1098
      %v1101 = vmul.f32 %v1094, %v1097
      %v1102 = vmul.f32 %v1096, %v1098
      %1103 = vst [vmem:[#allocation2 + $0x240] sm:$0xff] %v1099
      %1104 = vst [vmem:[#allocation2 + $0x248] sm:$0xff] %v1100
      %1105 = vst [vmem:[#allocation2 + $0x250] sm:$0xff] %v1101
      %1106 = vst [vmem:[#allocation2 + $0x258] sm:$0xff] %v1102
      %1107 = vrot.lane.b32.xlu0 %v651, 110
      %v1108 = vpop.permute.xlu0 %1107
      %1109 = vrot.lane.b32.xlu0 %v657, 110
      %v1110 = vpop.permute.xlu0 %1109
      %1111 = vrot.lane.b32.xlu0 %v653, 110
      %v1112 = vpop.permute.xlu0 %1111
      %1113 = vrot.lane.b32.xlu0 %v659, 110
      %v1114 = vpop.permute.xlu0 %1113
      %vm1115 = vcmp.lt.s32.totalorder %v361, 110
      %v1116 = vsel %vm1115, %v1108, %v1112
      %v1117 = vsel %vm1115, %v1110, %v1114
      %v1118 = vsel %vm1115, %v1112, %v1108
      %v1119 = vsel %vm1115, %v1114, %v1110
      %v1120 = vmul.f32 %v423, %v469
      %v1121 = vmul.f32 %v424, %v470
      %v1122 = vmul.f32 %v1116, %v1120
      %v1123 = vmul.f32 %v1118, %v1121
      %v1124 = vmul.f32 %v1117, %v1120
      %v1125 = vmul.f32 %v1119, %v1121
      %1126 = vst [vmem:[#allocation2 + $0x260] sm:$0xff] %v1122
      %1127 = vst [vmem:[#allocation2 + $0x268] sm:$0xff] %v1123
      %1128 = vst [vmem:[#allocation2 + $0x270] sm:$0xff] %v1124
      %1129 = vst [vmem:[#allocation2 + $0x278] sm:$0xff] %v1125
      %1130 = vrot.lane.b32.xlu0 %v651, 98
      %v1131 = vpop.permute.xlu0 %1130
      %1132 = vrot.lane.b32.xlu0 %v657, 98
      %v1133 = vpop.permute.xlu0 %1132
      %1134 = vrot.lane.b32.xlu0 %v653, 98
      %v1135 = vpop.permute.xlu0 %1134
      %1136 = vrot.lane.b32.xlu0 %v659, 98
      %v1137 = vpop.permute.xlu0 %1136
      %vm1138 = vcmp.lt.s32.totalorder %v361, 98
      %v1139 = vsel %vm1138, %v1131, %v1135
      %v1140 = vsel %vm1138, %v1133, %v1137
      %v1141 = vsel %vm1138, %v1135, %v1131
      %v1142 = vsel %vm1138, %v1137, %v1133
      %v1143 = vmul.f32 %v377, %v481
      %v1144 = vmul.f32 %v378, %v482
      %v1145 = vmul.f32 %v1139, %v1143
      %v1146 = vmul.f32 %v1141, %v1144
      %v1147 = vmul.f32 %v1140, %v1143
      %v1148 = vmul.f32 %v1142, %v1144
      %1149 = vst [vmem:[#allocation2 + $0x280] sm:$0xff] %v1145
      %1150 = vst [vmem:[#allocation2 + $0x288] sm:$0xff] %v1146
      %1151 = vst [vmem:[#allocation2 + $0x290] sm:$0xff] %v1147
      %1152 = vst [vmem:[#allocation2 + $0x298] sm:$0xff] %v1148
      %1153 = vrot.lane.b32.xlu0 %v651, 97
      %v1154 = vpop.permute.xlu0 %1153
      %1155 = vrot.lane.b32.xlu0 %v657, 97
      %v1156 = vpop.permute.xlu0 %1155
      %1157 = vrot.lane.b32.xlu0 %v653, 97
      %v1158 = vpop.permute.xlu0 %1157
      %1159 = vrot.lane.b32.xlu0 %v659, 97
      %v1160 = vpop.permute.xlu0 %1159
      %vm1161 = vcmp.lt.s32.totalorder %v361, 97
      %v1162 = vsel %vm1161, %v1154, %v1158
      %v1163 = vsel %vm1161, %v1156, %v1160
      %v1164 = vsel %vm1161, %v1158, %v1154
      %v1165 = vsel %vm1161, %v1160, %v1156
      %v1166 = vmul.f32 %v389, %v481
      %v1167 = vmul.f32 %v390, %v482
      %v1168 = vmul.f32 %v1162, %v1166
      %v1169 = vmul.f32 %v1164, %v1167
      %v1170 = vmul.f32 %v1163, %v1166
      %v1171 = vmul.f32 %v1165, %v1167
      %1172 = vst [vmem:[#allocation2 + $0x2a0] sm:$0xff] %v1168
      %1173 = vst [vmem:[#allocation2 + $0x2a8] sm:$0xff] %v1169
      %1174 = vst [vmem:[#allocation2 + $0x2b0] sm:$0xff] %v1170
      %1175 = vst [vmem:[#allocation2 + $0x2b8] sm:$0xff] %v1171
      %1176 = vrot.lane.b32.xlu0 %v651, 96
      %v1177 = vpop.permute.xlu0 %1176
      %1178 = vrot.lane.b32.xlu0 %v657, 96
      %v1179 = vpop.permute.xlu0 %1178
      %1180 = vrot.lane.b32.xlu0 %v653, 96
      %v1181 = vpop.permute.xlu0 %1180
      %1182 = vrot.lane.b32.xlu0 %v659, 96
      %v1183 = vpop.permute.xlu0 %1182
      %vm1184 = vcmp.lt.s32.totalorder %v361, 96
      %v1185 = vsel %vm1184, %v1177, %v1181
      %v1186 = vsel %vm1184, %v1179, %v1183
      %v1187 = vsel %vm1184, %v1181, %v1177
      %v1188 = vsel %vm1184, %v1183, %v1179
      %v1189 = vmul.f32 %v399, %v481
      %v1190 = vmul.f32 %v400, %v482
      %v1191 = vmul.f32 %v1185, %v1189
      %v1192 = vmul.f32 %v1187, %v1190
      %v1193 = vmul.f32 %v1186, %v1189
      %v1194 = vmul.f32 %v1188, %v1190
      %1195 = vst [vmem:[#allocation2 + $0x2c0] sm:$0xff] %v1191
      %1196 = vst [vmem:[#allocation2 + $0x2c8] sm:$0xff] %v1192
      %1197 = vst [vmem:[#allocation2 + $0x2d0] sm:$0xff] %v1193
      %1198 = vst [vmem:[#allocation2 + $0x2d8] sm:$0xff] %v1194
      %1199 = vrot.lane.b32.xlu0 %v651, 95
      %v1200 = vpop.permute.xlu0 %1199
      %1201 = vrot.lane.b32.xlu0 %v657, 95
      %v1202 = vpop.permute.xlu0 %1201
      %1203 = vrot.lane.b32.xlu0 %v653, 95
      %v1204 = vpop.permute.xlu0 %1203
      %1205 = vrot.lane.b32.xlu0 %v659, 95
      %v1206 = vpop.permute.xlu0 %1205
      %vm1207 = vcmp.lt.s32.totalorder %v361, 95
      %v1208 = vsel %vm1207, %v1200, %v1204
      %v1209 = vsel %vm1207, %v1202, %v1206
      %v1210 = vsel %vm1207, %v1204, %v1200
      %v1211 = vsel %vm1207, %v1206, %v1202
      %v1212 = vmul.f32 %v411, %v481
      %v1213 = vmul.f32 %v412, %v482
      %v1214 = vmul.f32 %v1208, %v1212
      %v1215 = vmul.f32 %v1210, %v1213
      %v1216 = vmul.f32 %v1209, %v1212
      %v1217 = vmul.f32 %v1211, %v1213
      %1218 = vst [vmem:[#allocation2 + $0x2e0] sm:$0xff] %v1214
      %1219 = vst [vmem:[#allocation2 + $0x2e8] sm:$0xff] %v1215
      %1220 = vst [vmem:[#allocation2 + $0x2f0] sm:$0xff] %v1216
      %1221 = vst [vmem:[#allocation2 + $0x2f8] sm:$0xff] %v1217
      %1222 = vrot.lane.b32.xlu0 %v651, 94
      %v1223 = vpop.permute.xlu0 %1222
      %1224 = vrot.lane.b32.xlu0 %v657, 94
      %v1225 = vpop.permute.xlu0 %1224
      %1226 = vrot.lane.b32.xlu0 %v653, 94
      %v1227 = vpop.permute.xlu0 %1226
      %1228 = vrot.lane.b32.xlu0 %v659, 94
      %v1229 = vpop.permute.xlu0 %1228
      %vm1230 = vcmp.lt.s32.totalorder %v361, 94
      %v1231 = vsel %vm1230, %v1223, %v1227
      %v1232 = vsel %vm1230, %v1225, %v1229
      %v1233 = vsel %vm1230, %v1227, %v1223
      %v1234 = vsel %vm1230, %v1229, %v1225
      %v1235 = vmul.f32 %v423, %v481
      %v1236 = vmul.f32 %v424, %v482
      %v1237 = vmul.f32 %v1231, %v1235
      %v1238 = vmul.f32 %v1233, %v1236
      %v1239 = vmul.f32 %v1232, %v1235
      %v1240 = vmul.f32 %v1234, %v1236
      %1241 = vst [vmem:[#allocation2 + $0x300] sm:$0xff] %v1237
      %1242 = vst [vmem:[#allocation2 + $0x308] sm:$0xff] %v1238
      %1243 = vst [vmem:[#allocation2 + $0x310] sm:$0xff] %v1239
      %1244 = vst [vmem:[#allocation2 + $0x318] sm:$0xff] %v1240
      %v1245 = vld [vmem:[%s3] sm:$0xff]
      %v1246 = vld [vmem:[%s3 + $0x8] sm:$0xff]
      %v1247 = vld [vmem:[%s3 + $0x10] sm:$0xff]
      %v1248 = vld [vmem:[%s3 + $0x18] sm:$0xff]
      %v1249 = vld [vmem:[%s3 + $0x20] sm:$0xff]
      %v1250 = vld [vmem:[%s3 + $0x28] sm:$0xff]
      %v1251 = vld [vmem:[%s3 + $0x30] sm:$0xff]
      %v1252 = vld [vmem:[%s3 + $0x38] sm:$0xff]
      %v1253 = vld [vmem:[#allocation2] sm:$0xff]
      %v1254 = vld [vmem:[#allocation2 + $0x8] sm:$0xff]
      %v1255 = vld [vmem:[#allocation2 + $0x10] sm:$0xff]
      %v1256 = vld [vmem:[#allocation2 + $0x18] sm:$0xff]
      %v1257 = vld [vmem:[#allocation2 + $0x20] sm:$0xff]
      %v1258 = vld [vmem:[#allocation2 + $0x28] sm:$0xff]
      %v1259 = vld [vmem:[#allocation2 + $0x30] sm:$0xff]
      %v1260 = vld [vmem:[#allocation2 + $0x38] sm:$0xff]
      %v1261 = vld [vmem:[#allocation2 + $0x40] sm:$0xff]
      %v1262 = vld [vmem:[#allocation2 + $0x48] sm:$0xff]
      %v1263 = vld [vmem:[#allocation2 + $0x50] sm:$0xff]
      %v1264 = vld [vmem:[#allocation2 + $0x58] sm:$0xff]
      %v1265 = vld [vmem:[#allocation2 + $0x60] sm:$0xff]
      %v1266 = vld [vmem:[#allocation2 + $0x68] sm:$0xff]
      %v1267 = vld [vmem:[#allocation2 + $0x70] sm:$0xff]
      %v1268 = vld [vmem:[#allocation2 + $0x78] sm:$0xff]
      %v1269 = vld [vmem:[#allocation2 + $0x80] sm:$0xff]
      %v1270 = vld [vmem:[#allocation2 + $0x88] sm:$0xff]
      %v1271 = vld [vmem:[#allocation2 + $0x90] sm:$0xff]
      %v1272 = vld [vmem:[#allocation2 + $0x98] sm:$0xff]
      %v1273 = vld [vmem:[#allocation2 + $0xa0] sm:$0xff]
      %v1274 = vld [vmem:[#allocation2 + $0xa8] sm:$0xff]
      %v1275 = vld [vmem:[#allocation2 + $0xb0] sm:$0xff]
      %v1276 = vld [vmem:[#allocation2 + $0xb8] sm:$0xff]
      %v1277 = vld [vmem:[#allocation2 + $0xc0] sm:$0xff]
      %v1278 = vld [vmem:[#allocation2 + $0xc8] sm:$0xff]
      %v1279 = vld [vmem:[#allocation2 + $0xd0] sm:$0xff]
      %v1280 = vld [vmem:[#allocation2 + $0xd8] sm:$0xff]
      %v1281 = vld [vmem:[#allocation2 + $0xe0] sm:$0xff]
      %v1282 = vld [vmem:[#allocation2 + $0xe8] sm:$0xff]
      %v1283 = vld [vmem:[#allocation2 + $0xf0] sm:$0xff]
      %v1284 = vld [vmem:[#allocation2 + $0xf8] sm:$0xff]
      %v1285 = vld [vmem:[#allocation2 + $0x100] sm:$0xff]
      %v1286 = vld [vmem:[#allocation2 + $0x108] sm:$0xff]
      %v1287 = vld [vmem:[#allocation2 + $0x110] sm:$0xff]
      %v1288 = vld [vmem:[#allocation2 + $0x118] sm:$0xff]
      %v1289 = vld [vmem:[#allocation2 + $0x120] sm:$0xff]
      %v1290 = vld [vmem:[#allocation2 + $0x128] sm:$0xff]
      %v1291 = vld [vmem:[#allocation2 + $0x130] sm:$0xff]
      %v1292 = vld [vmem:[#allocation2 + $0x138] sm:$0xff]
      %v1293 = vld [vmem:[#allocation2 + $0x140] sm:$0xff]
      %v1294 = vld [vmem:[#allocation2 + $0x148] sm:$0xff]
      %v1295 = vld [vmem:[#allocation2 + $0x150] sm:$0xff]
      %v1296 = vld [vmem:[#allocation2 + $0x158] sm:$0xff]
      %v1297 = vld [vmem:[#allocation2 + $0x160] sm:$0xff]
      %v1298 = vld [vmem:[#allocation2 + $0x168] sm:$0xff]
      %v1299 = vld [vmem:[#allocation2 + $0x170] sm:$0xff]
      %v1300 = vld [vmem:[#allocation2 + $0x178] sm:$0xff]
      %v1301 = vld [vmem:[#allocation2 + $0x180] sm:$0xff]
      %v1302 = vld [vmem:[#allocation2 + $0x188] sm:$0xff]
      %v1303 = vld [vmem:[#allocation2 + $0x190] sm:$0xff]
      %v1304 = vld [vmem:[#allocation2 + $0x198] sm:$0xff]
      %v1305 = vld [vmem:[#allocation2 + $0x1a0] sm:$0xff]
      %v1306 = vld [vmem:[#allocation2 + $0x1a8] sm:$0xff]
      %v1307 = vld [vmem:[#allocation2 + $0x1b0] sm:$0xff]
      %v1308 = vld [vmem:[#allocation2 + $0x1b8] sm:$0xff]
      %v1309 = vld [vmem:[#allocation2 + $0x1c0] sm:$0xff]
      %v1310 = vld [vmem:[#allocation2 + $0x1c8] sm:$0xff]
      %v1311 = vld [vmem:[#allocation2 + $0x1d0] sm:$0xff]
      %v1312 = vld [vmem:[#allocation2 + $0x1d8] sm:$0xff]
      %v1313 = vld [vmem:[#allocation2 + $0x1e0] sm:$0xff]
      %v1314 = vld [vmem:[#allocation2 + $0x1e8] sm:$0xff]
      %v1315 = vld [vmem:[#allocation2 + $0x1f0] sm:$0xff]
      %v1316 = vld [vmem:[#allocation2 + $0x1f8] sm:$0xff]
      %v1317 = vld [vmem:[#allocation2 + $0x200] sm:$0xff]
      %v1318 = vld [vmem:[#allocation2 + $0x208] sm:$0xff]
      %v1319 = vld [vmem:[#allocation2 + $0x210] sm:$0xff]
      %v1320 = vld [vmem:[#allocation2 + $0x218] sm:$0xff]
      %v1321 = vld [vmem:[#allocation2 + $0x220] sm:$0xff]
      %v1322 = vld [vmem:[#allocation2 + $0x228] sm:$0xff]
      %v1323 = vld [vmem:[#allocation2 + $0x230] sm:$0xff]
      %v1324 = vld [vmem:[#allocation2 + $0x238] sm:$0xff]
      %v1325 = vld [vmem:[#allocation2 + $0x240] sm:$0xff]
      %v1326 = vld [vmem:[#allocation2 + $0x248] sm:$0xff]
      %v1327 = vld [vmem:[#allocation2 + $0x250] sm:$0xff]
      %v1328 = vld [vmem:[#allocation2 + $0x258] sm:$0xff]
      %v1329 = vld [vmem:[#allocation2 + $0x260] sm:$0xff]
      %v1330 = vld [vmem:[#allocation2 + $0x268] sm:$0xff]
      %v1331 = vld [vmem:[#allocation2 + $0x270] sm:$0xff]
      %v1332 = vld [vmem:[#allocation2 + $0x278] sm:$0xff]
      %v1333 = vld [vmem:[#allocation2 + $0x280] sm:$0xff]
      %v1334 = vld [vmem:[#allocation2 + $0x288] sm:$0xff]
      %v1335 = vld [vmem:[#allocation2 + $0x290] sm:$0xff]
      %v1336 = vld [vmem:[#allocation2 + $0x298] sm:$0xff]
      %v1337 = vld [vmem:[#allocation2 + $0x2a0] sm:$0xff]
      %v1338 = vld [vmem:[#allocation2 + $0x2a8] sm:$0xff]
      %v1339 = vld [vmem:[#allocation2 + $0x2b0] sm:$0xff]
      %v1340 = vld [vmem:[#allocation2 + $0x2b8] sm:$0xff]
      %v1341 = vld [vmem:[#allocation2 + $0x2c0] sm:$0xff]
      %v1342 = vld [vmem:[#allocation2 + $0x2c8] sm:$0xff]
      %v1343 = vld [vmem:[#allocation2 + $0x2d0] sm:$0xff]
      %v1344 = vld [vmem:[#allocation2 + $0x2d8] sm:$0xff]
      %v1345 = vld [vmem:[#allocation2 + $0x2e0] sm:$0xff]
      %v1346 = vld [vmem:[#allocation2 + $0x2e8] sm:$0xff]
      %v1347 = vld [vmem:[#allocation2 + $0x2f0] sm:$0xff]
      %v1348 = vld [vmem:[#allocation2 + $0x2f8] sm:$0xff]
      %v1349 = vld [vmem:[#allocation2 + $0x300] sm:$0xff]
      %v1350 = vld [vmem:[#allocation2 + $0x308] sm:$0xff]
      %v1351 = vld [vmem:[#allocation2 + $0x310] sm:$0xff]
      %v1352 = vld [vmem:[#allocation2 + $0x318] sm:$0xff]
      %v1353 = vld [vmem:[%s4] sm:$0xff]
      %v1354 = vld [vmem:[%s4 + $0x8] sm:$0xff]
      %1356 = vset.pattern.permute.xlu0 0
      %1357 = vperm.xlu0 %1356, %v1353
      %v1358 = vpop.permute.xlu0 %1357
      %1361 = vset.pattern.permute.xlu0 0
      %1362 = vperm.xlu0 %1361, %v1354
      %v1363 = vpop.permute.xlu0 %1362
      %vm1365 = vcmask 130048
      %v1367 = vsel %vm1365, %v1248, 0
      %v1370 = vsel %vm1365, %v1252, 0
      %1372 = vmatprep.subr.mxu0 %v1254
      %1373 = vmatpush1.msra.mxu0 %v1253
      %1374 = vmatprep.subr.mxu0 %v1256
      %1375 = vmatpush1.msra.mxu0 %v1255
      %1376 = vmatprep.subr.mxu0 %v1258
      %1377 = vmatpush1.msra.mxu0 %v1257
      %1378 = vmatprep.subr.mxu0 %v1260
      %1379 = vmatpush1.msra.mxu0 %v1259
      %1380 = vmatprep.subr.mxu0 %v1262
      %1381 = vmatpush1.msra.mxu0 %v1261
      %1382 = vmatprep.subr.mxu0 %v1264
      %1383 = vmatpush1.msra.mxu0 %v1263
      %1384 = vmatprep.subr.mxu0 %v1266
      %1385 = vmatpush1.msra.mxu0 %v1265
      %1386 = vmatprep.subr.mxu0 %v1268
      %1387 = vmatpush1.msra.mxu0 %v1267
      %1388 = vmatprep.subr.mxu0 %v1270
      %1389 = vmatpush1.msra.mxu0 %v1269
      %1390 = vmatprep.subr.mxu0 %v1272
      %1391 = vmatpush1.msra.mxu0 %v1271
      %1392 = vmatprep.subr.mxu0 %v1274
      %1393 = vmatpush1.msra.mxu0 %v1273
      %1394 = vmatprep.subr.mxu0 %v1276
      %1395 = vmatpush1.msra.mxu0 %v1275
      %1396 = vmatprep.subr.mxu0 %v1278
      %1397 = vmatpush1.msra.mxu0 %v1277
      %1398 = vmatprep.subr.mxu0 %v1280
      %1399 = vmatpush1.msra.mxu0 %v1279
      %1400 = vmatprep.subr.mxu0 %v1282
      %1401 = vmatpush1.msra.mxu0 %v1281
      %1402 = vmatprep.subr.mxu0 %v1284
      %1403 = vmatpush1.msra.mxu0 %v1283
      %1404 = vmatprep.subr.mxu0 %v1286
      %1405 = vmatpush1.msra.mxu0 %v1285
      %1406 = vmatprep.subr.mxu0 %v1288
      %1407 = vmatpush1.msra.mxu0 %v1287
      %1408 = vmatprep.subr.mxu0 %v1290
      %1409 = vmatpush1.msra.mxu0 %v1289
      %1410 = vmatprep.subr.mxu0 %v1292
      %1411 = vmatpush1.msra.mxu0 %v1291
      %1412 = vmatprep.subr.mxu0 %v1294
      %1413 = vmatpush1.msra.mxu0 %v1293
      %1414 = vmatprep.subr.mxu0 %v1296
      %1415 = vmatpush1.msra.mxu0 %v1295
      %1416 = vmatprep.subr.mxu0 %v1298
      %1417 = vmatpush1.msra.mxu0 %v1297
      %1418 = vmatprep.subr.mxu0 %v1300
      %1419 = vmatpush1.msra.mxu0 %v1299
      %1420 = vmatprep.subr.mxu0 %v1302
      %1421 = vmatpush1.msra.mxu0 %v1301
      %1422 = vmatprep.subr.mxu0 %v1304
      %1423 = vmatpush1.msra.mxu0 %v1303
      %1424 = vmatprep.subr.mxu0 %v1306
      %1425 = vmatpush1.msra.mxu0 %v1305
      %1426 = vmatprep.subr.mxu0 %v1308
      %1427 = vmatpush1.msra.mxu0 %v1307
      %1428 = vmatprep.subr.mxu0 %v1310
      %1429 = vmatpush1.msra.mxu0 %v1309
      %1430 = vmatprep.subr.mxu0 %v1312
      %1431 = vmatpush1.msra.mxu0 %v1311
      %1432 = vmatprep.subr.mxu0 %v1314
      %1433 = vmatpush1.msra.mxu0 %v1313
      %1434 = vmatprep.subr.mxu0 %v1316
      %1435 = vmatpush1.msra.mxu0 %v1315
      %1436 = vmatprep.mubr.f32.mxu0 %v1246
      %1437 = vmatmul.mubr.f32.gmra.mrb[0].mxu0 %v1245
      %v1438 = vpop.f32.mrb[0].mxu0
      %v1439 = vadd.f32 %v1358, %v1438
      %v1440 = vpop.f32.mrb[0].mxu0
      %v1441 = vadd.f32 %v1358, %v1440
      %1442 = vmatprep.mubr.f32.mxu0 %v1250
      %1443 = vmatmul.mubr.f32.gmra.mrb[0].mxu0 %v1249
      %v1444 = vpop.f32.mrb[0].mxu0
      %v1445 = vadd.f32 %v1363, %v1444
      %v1446 = vpop.f32.mrb[0].mxu0
      %v1447 = vadd.f32 %v1363, %v1446
      %1448 = vdwg.mxu0
      %1449 = vmatprep.subr.mxu0 %v1318
      %1450 = vmatpush1.msra.mxu0 %v1317
      %1451 = vmatprep.subr.mxu0 %v1320
      %1452 = vmatpush1.msra.mxu0 %v1319
      %1453 = vmatprep.subr.mxu0 %v1322
      %1454 = vmatpush1.msra.mxu0 %v1321
      %1455 = vmatprep.subr.mxu0 %v1324
      %1456 = vmatpush1.msra.mxu0 %v1323
      %1457 = vmatprep.subr.mxu0 %v1326
      %1458 = vmatpush1.msra.mxu0 %v1325
      %1459 = vmatprep.subr.mxu0 %v1328
      %1460 = vmatpush1.msra.mxu0 %v1327
      %1461 = vmatprep.subr.mxu0 %v1330
      %1462 = vmatpush1.msra.mxu0 %v1329
      %1463 = vmatprep.subr.mxu0 %v1332
      %1464 = vmatpush1.msra.mxu0 %v1331
      %1465 = vmatprep.subr.mxu0 %v1334
      %1466 = vmatpush1.msra.mxu0 %v1333
      %1467 = vmatprep.subr.mxu0 %v1336
      %1468 = vmatpush1.msra.mxu0 %v1335
      %1469 = vmatprep.subr.mxu0 %v1338
      %1470 = vmatpush1.msra.mxu0 %v1337
      %1471 = vmatprep.subr.mxu0 %v1340
      %1472 = vmatpush1.msra.mxu0 %v1339
      %1473 = vmatprep.subr.mxu0 %v1342
      %1474 = vmatpush1.msra.mxu0 %v1341
      %1475 = vmatprep.subr.mxu0 %v1344
      %1476 = vmatpush1.msra.mxu0 %v1343
      %1477 = vmatprep.subr.mxu0 %v1346
      %1478 = vmatpush1.msra.mxu0 %v1345
      %1479 = vmatprep.subr.mxu0 %v1348
      %1480 = vmatpush1.msra.mxu0 %v1347
      %1481 = vmatprep.subr.mxu0 %v1350
      %1482 = vmatpush1.msra.mxu0 %v1349
      %1483 = vmatprep.subr.mxu0 %v1352
      %1484 = vmatpush1.msra.mxu0 %v1351
      %1485 = vmatprep.subr.mxu0 0.0
      %1486 = vmatpush1.msra.mxu0 0.0
      %1487 = vmatprep.subr.mxu0 0.0
      %1488 = vmatpush1.msra.mxu0 0.0
      %1489 = vmatprep.subr.mxu0 0.0
      %1490 = vmatpush1.msra.mxu0 0.0
      %1491 = vmatprep.subr.mxu0 0.0
      %1492 = vmatpush1.msra.mxu0 0.0
      %1493 = vmatprep.subr.mxu0 0.0
      %1494 = vmatpush1.msra.mxu0 0.0
      %1495 = vmatprep.subr.mxu0 0.0
      %1496 = vmatpush1.msra.mxu0 0.0
      %1497 = vmatprep.subr.mxu0 0.0
      %1498 = vmatpush1.msra.mxu0 0.0
      %1499 = vmatprep.subr.mxu0 0.0
      %1500 = vmatpush1.msra.mxu0 0.0
      %1501 = vmatprep.subr.mxu0 0.0
      %1502 = vmatpush1.msra.mxu0 0.0
      %1503 = vmatprep.subr.mxu0 0.0
      %1504 = vmatpush1.msra.mxu0 0.0
      %1505 = vmatprep.subr.mxu0 0.0
      %1506 = vmatpush1.msra.mxu0 0.0
      %1507 = vmatprep.subr.mxu0 0.0
      %1508 = vmatpush1.msra.mxu0 0.0
      %1509 = vmatprep.subr.mxu0 0.0
      %1510 = vmatpush1.msra.mxu0 0.0
      %1511 = vmatprep.subr.mxu0 0.0
      %1512 = vmatpush1.msra.mxu0 0.0
      %1513 = vmatprep.mubr.f32.mxu0 %v1367
      %1514 = vmatmul.mubr.f32.gmra.mrb[0].mxu0 %v1247
      %v1515 = vpop.f32.mrb[0].mxu0
      %v1516 = vadd.f32 %v1439, %v1515
      %v1517 = vpop.f32.mrb[0].mxu0
      %v1518 = vadd.f32 %v1441, %v1517
      %1519 = vmatprep.mubr.f32.mxu0 %v1370
      %1520 = vmatmul.mubr.f32.gmra.mrb[0].mxu0 %v1251
      %v1521 = vpop.f32.mrb[0].mxu0
      %v1522 = vadd.f32 %v1445, %v1521
      %v1523 = vpop.f32.mrb[0].mxu0
      %v1524 = vadd.f32 %v1447, %v1523
      %1525 = vdwg.mxu0
      %1526 = vst [vmem:[%s359 + $0x20] sm:$0xff] %v1516
      %1527 = vst [vmem:[%s359 + $0x28] sm:$0xff] %v1518
      %1528 = vst [vmem:[%s359 + $0x30] sm:$0xff] %v1522
      %1529 = vst [vmem:[%s359 + $0x38] sm:$0xff] %v1524
      %1530 = vrot.lane.b32.xlu0 %v663, 17
      %v1531 = vpop.permute.xlu0 %1530
      %1532 = vrot.lane.b32.xlu0 %v669, 17
      %v1533 = vpop.permute.xlu0 %1532
      %1534 = vrot.lane.b32.xlu0 %v665, 17
      %v1535 = vpop.permute.xlu0 %1534
      %1536 = vrot.lane.b32.xlu0 %v671, 17
      %v1537 = vpop.permute.xlu0 %1536
      %v1538 = vsel %vm835, %v1531, %v1535
      %v1539 = vsel %vm835, %v1533, %v1537
      %v1540 = vsel %vm835, %v1535, %v1531
      %v1541 = vsel %vm835, %v1537, %v1533
      %v1542 = vmul.f32 %v1540, %v840
      %v1543 = vmul.f32 %v1538, %v841
      %v1544 = vmul.f32 %v1541, %v840
      %v1545 = vmul.f32 %v1539, %v841
      %1546 = vst [vmem:[#allocation2] sm:$0xff] %v1542
      %1547 = vst [vmem:[#allocation2 + $0x8] sm:$0xff] %v1543
      %1548 = vst [vmem:[#allocation2 + $0x10] sm:$0xff] %v1544
      %1549 = vst [vmem:[#allocation2 + $0x18] sm:$0xff] %v1545
      %1550 = vrot.lane.b32.xlu0 %v663, 16
      %v1551 = vpop.permute.xlu0 %1550
      %1552 = vrot.lane.b32.xlu0 %v669, 16
      %v1553 = vpop.permute.xlu0 %1552
      %1554 = vrot.lane.b32.xlu0 %v665, 16
      %v1555 = vpop.permute.xlu0 %1554
      %1556 = vrot.lane.b32.xlu0 %v671, 16
      %v1557 = vpop.permute.xlu0 %1556
      %v1558 = vsel %vm858, %v1551, %v1555
      %v1559 = vsel %vm858, %v1553, %v1557
      %v1560 = vsel %vm858, %v1555, %v1551
      %v1561 = vsel %vm858, %v1557, %v1553
      %v1562 = vmul.f32 %v1560, %v863
      %v1563 = vmul.f32 %v1558, %v864
      %v1564 = vmul.f32 %v1561, %v863
      %v1565 = vmul.f32 %v1559, %v864
      %1566 = vst [vmem:[#allocation2 + $0x20] sm:$0xff] %v1562
      %1567 = vst [vmem:[#allocation2 + $0x28] sm:$0xff] %v1563
      %1568 = vst [vmem:[#allocation2 + $0x30] sm:$0xff] %v1564
      %1569 = vst [vmem:[#allocation2 + $0x38] sm:$0xff] %v1565
      %1570 = vrot.lane.b32.xlu0 %v663, 15
      %v1571 = vpop.permute.xlu0 %1570
      %1572 = vrot.lane.b32.xlu0 %v669, 15
      %v1573 = vpop.permute.xlu0 %1572
      %1574 = vrot.lane.b32.xlu0 %v665, 15
      %v1575 = vpop.permute.xlu0 %1574
      %1576 = vrot.lane.b32.xlu0 %v671, 15
      %v1577 = vpop.permute.xlu0 %1576
      %v1578 = vsel %vm881, %v1571, %v1575
      %v1579 = vsel %vm881, %v1573, %v1577
      %v1580 = vsel %vm881, %v1575, %v1571
      %v1581 = vsel %vm881, %v1577, %v1573
      %v1582 = vmul.f32 %v1580, %v886
      %v1583 = vmul.f32 %v1578, %v887
      %v1584 = vmul.f32 %v1581, %v886
      %v1585 = vmul.f32 %v1579, %v887
      %1586 = vst [vmem:[#allocation2 + $0x40] sm:$0xff] %v1582
      %1587 = vst [vmem:[#allocation2 + $0x48] sm:$0xff] %v1583
      %1588 = vst [vmem:[#allocation2 + $0x50] sm:$0xff] %v1584
      %1589 = vst [vmem:[#allocation2 + $0x58] sm:$0xff] %v1585
      %1590 = vrot.lane.b32.xlu0 %v663, 1
      %v1591 = vpop.permute.xlu0 %1590
      %1592 = vrot.lane.b32.xlu0 %v669, 1
      %v1593 = vpop.permute.xlu0 %1592
      %1594 = vrot.lane.b32.xlu0 %v665, 1
      %v1595 = vpop.permute.xlu0 %1594
      %1596 = vrot.lane.b32.xlu0 %v671, 1
      %v1597 = vpop.permute.xlu0 %1596
      %v1598 = vsel %vm950, %v1591, %v1595
      %v1599 = vsel %vm950, %v1593, %v1597
      %v1600 = vsel %vm950, %v1595, %v1591
      %v1601 = vsel %vm950, %v1597, %v1593
      %v1602 = vmul.f32 %v1600, %v955
      %v1603 = vmul.f32 %v1598, %v956
      %v1604 = vmul.f32 %v1601, %v955
      %v1605 = vmul.f32 %v1599, %v956
      %1606 = vst [vmem:[#allocation2 + $0x60] sm:$0xff] %v1602
      %1607 = vst [vmem:[#allocation2 + $0x68] sm:$0xff] %v1603
      %1608 = vst [vmem:[#allocation2 + $0x70] sm:$0xff] %v1604
      %1609 = vst [vmem:[#allocation2 + $0x78] sm:$0xff] %v1605
      %1610 = vst [vmem:[#allocation2 + $0x80] sm:$0xff] %v663
      %1611 = vst [vmem:[#allocation2 + $0x88] sm:$0xff] %v665
      %1612 = vst [vmem:[#allocation2 + $0x90] sm:$0xff] %v669
      %1613 = vst [vmem:[#allocation2 + $0x98] sm:$0xff] %v671
      %1614 = vrot.lane.b32.xlu0 %v663, 127
      %v1615 = vpop.permute.xlu0 %1614
      %1616 = vrot.lane.b32.xlu0 %v669, 127
      %v1617 = vpop.permute.xlu0 %1616
      %1618 = vrot.lane.b32.xlu0 %v665, 127
      %v1619 = vpop.permute.xlu0 %1618
      %1620 = vrot.lane.b32.xlu0 %v671, 127
      %v1621 = vpop.permute.xlu0 %1620
      %v1622 = vsel %vm977, %v1615, %v1619
      %v1623 = vsel %vm977, %v1617, %v1621
      %v1624 = vsel %vm977, %v1619, %v1615
      %v1625 = vsel %vm977, %v1621, %v1617
      %v1626 = vmul.f32 %v1622, %v982
      %v1627 = vmul.f32 %v1624, %v983
      %v1628 = vmul.f32 %v1623, %v982
      %v1629 = vmul.f32 %v1625, %v983
      %1630 = vst [vmem:[#allocation2 + $0xa0] sm:$0xff] %v1626
      %1631 = vst [vmem:[#allocation2 + $0xa8] sm:$0xff] %v1627
      %1632 = vst [vmem:[#allocation2 + $0xb0] sm:$0xff] %v1628
      %1633 = vst [vmem:[#allocation2 + $0xb8] sm:$0xff] %v1629
      %1634 = vrot.lane.b32.xlu0 %v663, 113
      %v1635 = vpop.permute.xlu0 %1634
      %1636 = vrot.lane.b32.xlu0 %v669, 113
      %v1637 = vpop.permute.xlu0 %1636
      %1638 = vrot.lane.b32.xlu0 %v665, 113
      %v1639 = vpop.permute.xlu0 %1638
      %1640 = vrot.lane.b32.xlu0 %v671, 113
      %v1641 = vpop.permute.xlu0 %1640
      %v1642 = vsel %vm1046, %v1635, %v1639
      %v1643 = vsel %vm1046, %v1637, %v1641
      %v1644 = vsel %vm1046, %v1639, %v1635
      %v1645 = vsel %vm1046, %v1641, %v1637
      %v1646 = vmul.f32 %v1642, %v1051
      %v1647 = vmul.f32 %v1644, %v1052
      %v1648 = vmul.f32 %v1643, %v1051
      %v1649 = vmul.f32 %v1645, %v1052
      %1650 = vst [vmem:[#allocation2 + $0xc0] sm:$0xff] %v1646
      %1651 = vst [vmem:[#allocation2 + $0xc8] sm:$0xff] %v1647
      %1652 = vst [vmem:[#allocation2 + $0xd0] sm:$0xff] %v1648
      %1653 = vst [vmem:[#allocation2 + $0xd8] sm:$0xff] %v1649
      %1654 = vrot.lane.b32.xlu0 %v663, 112
      %v1655 = vpop.permute.xlu0 %1654
      %1656 = vrot.lane.b32.xlu0 %v669, 112
      %v1657 = vpop.permute.xlu0 %1656
      %1658 = vrot.lane.b32.xlu0 %v665, 112
      %v1659 = vpop.permute.xlu0 %1658
      %1660 = vrot.lane.b32.xlu0 %v671, 112
      %v1661 = vpop.permute.xlu0 %1660
      %v1662 = vsel %vm1069, %v1655, %v1659
      %v1663 = vsel %vm1069, %v1657, %v1661
      %v1664 = vsel %vm1069, %v1659, %v1655
      %v1665 = vsel %vm1069, %v1661, %v1657
      %v1666 = vmul.f32 %v1662, %v1074
      %v1667 = vmul.f32 %v1664, %v1075
      %v1668 = vmul.f32 %v1663, %v1074
      %v1669 = vmul.f32 %v1665, %v1075
      %1670 = vst [vmem:[#allocation2 + $0xe0] sm:$0xff] %v1666
      %1671 = vst [vmem:[#allocation2 + $0xe8] sm:$0xff] %v1667
      %1672 = vst [vmem:[#allocation2 + $0xf0] sm:$0xff] %v1668
      %1673 = vst [vmem:[#allocation2 + $0xf8] sm:$0xff] %v1669
      %1674 = vrot.lane.b32.xlu0 %v663, 111
      %v1675 = vpop.permute.xlu0 %1674
      %1676 = vrot.lane.b32.xlu0 %v669, 111
      %v1677 = vpop.permute.xlu0 %1676
      %1678 = vrot.lane.b32.xlu0 %v665, 111
      %v1679 = vpop.permute.xlu0 %1678
      %1680 = vrot.lane.b32.xlu0 %v671, 111
      %v1681 = vpop.permute.xlu0 %1680
      %v1682 = vsel %vm1092, %v1675, %v1679
      %v1683 = vsel %vm1092, %v1677, %v1681
      %v1684 = vsel %vm1092, %v1679, %v1675
      %v1685 = vsel %vm1092, %v1681, %v1677
      %v1686 = vmul.f32 %v1682, %v1097
      %v1687 = vmul.f32 %v1684, %v1098
      %v1688 = vmul.f32 %v1683, %v1097
      %v1689 = vmul.f32 %v1685, %v1098
      %1690 = vst [vmem:[#allocation2 + $0x100] sm:$0xff] %v1686
      %1691 = vst [vmem:[#allocation2 + $0x108] sm:$0xff] %v1687
      %1692 = vst [vmem:[#allocation2 + $0x110] sm:$0xff] %v1688
      %1693 = vst [vmem:[#allocation2 + $0x118] sm:$0xff] %v1689
      %v1694 = vld [vmem:[%s5] sm:$0xff]
      %v1695 = vld [vmem:[%s5 + $0x8] sm:$0xff]
      %v1696 = vld [vmem:[%s5 + $0x10] sm:$0xff]
      %v1697 = vld [vmem:[%s5 + $0x18] sm:$0xff]
      %v1698 = vld [vmem:[#allocation2] sm:$0xff]
      %v1699 = vld [vmem:[#allocation2 + $0x8] sm:$0xff]
      %v1700 = vld [vmem:[#allocation2 + $0x10] sm:$0xff]
      %v1701 = vld [vmem:[#allocation2 + $0x18] sm:$0xff]
      %v1702 = vld [vmem:[#allocation2 + $0x20] sm:$0xff]
      %v1703 = vld [vmem:[#allocation2 + $0x28] sm:$0xff]
      %v1704 = vld [vmem:[#allocation2 + $0x30] sm:$0xff]
      %v1705 = vld [vmem:[#allocation2 + $0x38] sm:$0xff]
      %v1706 = vld [vmem:[#allocation2 + $0x40] sm:$0xff]
      %v1707 = vld [vmem:[#allocation2 + $0x48] sm:$0xff]
      %v1708 = vld [vmem:[#allocation2 + $0x50] sm:$0xff]
      %v1709 = vld [vmem:[#allocation2 + $0x58] sm:$0xff]
      %v1710 = vld [vmem:[#allocation2 + $0x60] sm:$0xff]
      %v1711 = vld [vmem:[#allocation2 + $0x68] sm:$0xff]
      %v1712 = vld [vmem:[#allocation2 + $0x70] sm:$0xff]
      %v1713 = vld [vmem:[#allocation2 + $0x78] sm:$0xff]
      %v1714 = vld [vmem:[#allocation2 + $0x80] sm:$0xff]
      %v1715 = vld [vmem:[#allocation2 + $0x88] sm:$0xff]
      %v1716 = vld [vmem:[#allocation2 + $0x90] sm:$0xff]
      %v1717 = vld [vmem:[#allocation2 + $0x98] sm:$0xff]
      %v1718 = vld [vmem:[#allocation2 + $0xa0] sm:$0xff]
      %v1719 = vld [vmem:[#allocation2 + $0xa8] sm:$0xff]
      %v1720 = vld [vmem:[#allocation2 + $0xb0] sm:$0xff]
      %v1721 = vld [vmem:[#allocation2 + $0xb8] sm:$0xff]
      %v1722 = vld [vmem:[#allocation2 + $0xc0] sm:$0xff]
      %v1723 = vld [vmem:[#allocation2 + $0xc8] sm:$0xff]
      %v1724 = vld [vmem:[#allocation2 + $0xd0] sm:$0xff]
      %v1725 = vld [vmem:[#allocation2 + $0xd8] sm:$0xff]
      %v1726 = vld [vmem:[#allocation2 + $0xe0] sm:$0xff]
      %v1727 = vld [vmem:[#allocation2 + $0xe8] sm:$0xff]
      %v1728 = vld [vmem:[#allocation2 + $0xf0] sm:$0xff]
      %v1729 = vld [vmem:[#allocation2 + $0xf8] sm:$0xff]
      %v1730 = vld [vmem:[#allocation2 + $0x100] sm:$0xff]
      %v1731 = vld [vmem:[#allocation2 + $0x108] sm:$0xff]
      %v1732 = vld [vmem:[#allocation2 + $0x110] sm:$0xff]
      %v1733 = vld [vmem:[#allocation2 + $0x118] sm:$0xff]
      %v1734 = vld [vmem:[%s6] sm:$0xff]
      %v1735 = vld [vmem:[%s6 + $0x8] sm:$0xff]
      %1737 = vset.pattern.permute.xlu0 0
      %1738 = vperm.xlu0 %1737, %v1734
      %v1739 = vpop.permute.xlu0 %1738
      %1742 = vset.pattern.permute.xlu0 0
      %1743 = vperm.xlu0 %1742, %v1735
      %v1744 = vpop.permute.xlu0 %1743
      %v1747 = vsel %vm1365, %v1695, 0
      %v1750 = vsel %vm1365, %v1697, 0
      %1752 = vmatprep.subr.mxu0 %v1699
      %1753 = vmatpush1.msra.mxu0 %v1698
      %1754 = vmatprep.subr.mxu0 %v1701
      %1755 = vmatpush1.msra.mxu0 %v1700
      %1756 = vmatprep.subr.mxu0 %v1703
      %1757 = vmatpush1.msra.mxu0 %v1702
      %1758 = vmatprep.subr.mxu0 %v1705
      %1759 = vmatpush1.msra.mxu0 %v1704
      %1760 = vmatprep.subr.mxu0 %v1707
      %1761 = vmatpush1.msra.mxu0 %v1706
      %1762 = vmatprep.subr.mxu0 %v1709
      %1763 = vmatpush1.msra.mxu0 %v1708
      %1764 = vmatprep.subr.mxu0 %v1711
      %1765 = vmatpush1.msra.mxu0 %v1710
      %1766 = vmatprep.subr.mxu0 %v1713
      %1767 = vmatpush1.msra.mxu0 %v1712
      %1768 = vmatprep.subr.mxu0 %v1715
      %1769 = vmatpush1.msra.mxu0 %v1714
      %1770 = vmatprep.subr.mxu0 %v1717
      %1771 = vmatpush1.msra.mxu0 %v1716
      %1772 = vmatprep.subr.mxu0 %v1719
      %1773 = vmatpush1.msra.mxu0 %v1718
      %1774 = vmatprep.subr.mxu0 %v1721
      %1775 = vmatpush1.msra.mxu0 %v1720
      %1776 = vmatprep.subr.mxu0 %v1723
      %1777 = vmatpush1.msra.mxu0 %v1722
      %1778 = vmatprep.subr.mxu0 %v1725
      %1779 = vmatpush1.msra.mxu0 %v1724
      %1780 = vmatprep.subr.mxu0 %v1727
      %1781 = vmatpush1.msra.mxu0 %v1726
      %1782 = vmatprep.subr.mxu0 %v1729
      %1783 = vmatpush1.msra.mxu0 %v1728
      %1784 = vmatprep.subr.mxu0 %v1731
      %1785 = vmatpush1.msra.mxu0 %v1730
      %1786 = vmatprep.subr.mxu0 %v1733
      %1787 = vmatpush1.msra.mxu0 %v1732
      %1788 = vmatprep.subr.mxu0 0.0
      %1789 = vmatpush1.msra.mxu0 0.0
      %1790 = vmatprep.subr.mxu0 0.0
      %1791 = vmatpush1.msra.mxu0 0.0
      %1792 = vmatprep.subr.mxu0 0.0
      %1793 = vmatpush1.msra.mxu0 0.0
      %1794 = vmatprep.subr.mxu0 0.0
      %1795 = vmatpush1.msra.mxu0 0.0
      %1796 = vmatprep.subr.mxu0 0.0
      %1797 = vmatpush1.msra.mxu0 0.0
      %1798 = vmatprep.subr.mxu0 0.0
      %1799 = vmatpush1.msra.mxu0 0.0
      %1800 = vmatprep.subr.mxu0 0.0
      %1801 = vmatpush1.msra.mxu0 0.0
      %1802 = vmatprep.subr.mxu0 0.0
      %1803 = vmatpush1.msra.mxu0 0.0
      %1804 = vmatprep.subr.mxu0 0.0
      %1805 = vmatpush1.msra.mxu0 0.0
      %1806 = vmatprep.subr.mxu0 0.0
      %1807 = vmatpush1.msra.mxu0 0.0
      %1808 = vmatprep.subr.mxu0 0.0
      %1809 = vmatpush1.msra.mxu0 0.0
      %1810 = vmatprep.subr.mxu0 0.0
      %1811 = vmatpush1.msra.mxu0 0.0
      %1812 = vmatprep.subr.mxu0 0.0
      %1813 = vmatpush1.msra.mxu0 0.0
      %1814 = vmatprep.subr.mxu0 0.0
      %1815 = vmatpush1.msra.mxu0 0.0
      %1816 = vmatprep.mubr.f32.mxu0 %v1747
      %1817 = vmatmul.mubr.f32.gmra.mrb[0].mxu0 %v1694
      %v1818 = vpop.f32.mrb[0].mxu0
      %v1819 = vadd.f32 %v1739, %v1818
      %v1820 = vpop.f32.mrb[0].mxu0
      %v1821 = vadd.f32 %v1739, %v1820
      %1822 = vmatprep.mubr.f32.mxu0 %v1750
      %1823 = vmatmul.mubr.f32.gmra.mrb[0].mxu0 %v1696
      %v1824 = vpop.f32.mrb[0].mxu0
      %v1825 = vadd.f32 %v1744, %v1824
      %v1826 = vpop.f32.mrb[0].mxu0
      %v1827 = vadd.f32 %v1744, %v1826
      %1828 = vdwg.mxu0
      %1829 = vrot.lane.b32.xlu0 %v1819, 17
      %v1830 = vpop.permute.xlu0 %1829
      %1831 = vrot.lane.b32.xlu0 %v1825, 17
      %v1832 = vpop.permute.xlu0 %1831
      %1833 = vrot.lane.b32.xlu0 %v1821, 17
      %v1834 = vpop.permute.xlu0 %1833
      %1835 = vrot.lane.b32.xlu0 %v1827, 17
      %v1836 = vpop.permute.xlu0 %1835
      %v1837 = vsel %vm835, %v1830, %v1834
      %v1838 = vsel %vm835, %v1832, %v1836
      %v1839 = vsel %vm835, %v1834, %v1830
      %v1840 = vsel %vm835, %v1836, %v1832
      %v1841 = vmul.f32 %v1839, %v840
      %v1842 = vmul.f32 %v1837, %v841
      %v1843 = vmul.f32 %v1840, %v840
      %v1844 = vmul.f32 %v1838, %v841
      %1845 = vst [vmem:[#allocation2] sm:$0xff] %v1841
      %1846 = vst [vmem:[#allocation2 + $0x8] sm:$0xff] %v1842
      %1847 = vst [vmem:[#allocation2 + $0x10] sm:$0xff] %v1843
      %1848 = vst [vmem:[#allocation2 + $0x18] sm:$0xff] %v1844
      %1849 = vrot.lane.b32.xlu0 %v1819, 16
      %v1850 = vpop.permute.xlu0 %1849
      %1851 = vrot.lane.b32.xlu0 %v1825, 16
      %v1852 = vpop.permute.xlu0 %1851
      %1853 = vrot.lane.b32.xlu0 %v1821, 16
      %v1854 = vpop.permute.xlu0 %1853
      %1855 = vrot.lane.b32.xlu0 %v1827, 16
      %v1856 = vpop.permute.xlu0 %1855
      %v1857 = vsel %vm858, %v1850, %v1854
      %v1858 = vsel %vm858, %v1852, %v1856
      %v1859 = vsel %vm858, %v1854, %v1850
      %v1860 = vsel %vm858, %v1856, %v1852
      %v1861 = vmul.f32 %v1859, %v863
      %v1862 = vmul.f32 %v1857, %v864
      %v1863 = vmul.f32 %v1860, %v863
      %v1864 = vmul.f32 %v1858, %v864
      %1865 = vst [vmem:[#allocation2 + $0x20] sm:$0xff] %v1861
      %1866 = vst [vmem:[#allocation2 + $0x28] sm:$0xff] %v1862
      %1867 = vst [vmem:[#allocation2 + $0x30] sm:$0xff] %v1863
      %1868 = vst [vmem:[#allocation2 + $0x38] sm:$0xff] %v1864
      %1869 = vrot.lane.b32.xlu0 %v1819, 15
      %v1870 = vpop.permute.xlu0 %1869
      %1871 = vrot.lane.b32.xlu0 %v1825, 15
      %v1872 = vpop.permute.xlu0 %1871
      %1873 = vrot.lane.b32.xlu0 %v1821, 15
      %v1874 = vpop.permute.xlu0 %1873
      %1875 = vrot.lane.b32.xlu0 %v1827, 15
      %v1876 = vpop.permute.xlu0 %1875
      %v1877 = vsel %vm881, %v1870, %v1874
      %v1878 = vsel %vm881, %v1872, %v1876
      %v1879 = vsel %vm881, %v1874, %v1870
      %v1880 = vsel %vm881, %v1876, %v1872
      %v1881 = vmul.f32 %v1879, %v886
      %v1882 = vmul.f32 %v1877, %v887
      %v1883 = vmul.f32 %v1880, %v886
      %v1884 = vmul.f32 %v1878, %v887
      %1885 = vst [vmem:[#allocation2 + $0x40] sm:$0xff] %v1881
      %1886 = vst [vmem:[#allocation2 + $0x48] sm:$0xff] %v1882
      %1887 = vst [vmem:[#allocation2 + $0x50] sm:$0xff] %v1883
      %1888 = vst [vmem:[#allocation2 + $0x58] sm:$0xff] %v1884
      %1889 = vrot.lane.b32.xlu0 %v1819, 1
      %v1890 = vpop.permute.xlu0 %1889
      %1891 = vrot.lane.b32.xlu0 %v1825, 1
      %v1892 = vpop.permute.xlu0 %1891
      %1893 = vrot.lane.b32.xlu0 %v1821, 1
      %v1894 = vpop.permute.xlu0 %1893
      %1895 = vrot.lane.b32.xlu0 %v1827, 1
      %v1896 = vpop.permute.xlu0 %1895
      %v1897 = vsel %vm950, %v1890, %v1894
      %v1898 = vsel %vm950, %v1892, %v1896
      %v1899 = vsel %vm950, %v1894, %v1890
      %v1900 = vsel %vm950, %v1896, %v1892
      %v1901 = vmul.f32 %v1899, %v955
      %v1902 = vmul.f32 %v1897, %v956
      %v1903 = vmul.f32 %v1900, %v955
      %v1904 = vmul.f32 %v1898, %v956
      %1905 = vst [vmem:[#allocation2 + $0x60] sm:$0xff] %v1901
      %1906 = vst [vmem:[#allocation2 + $0x68] sm:$0xff] %v1902
      %1907 = vst [vmem:[#allocation2 + $0x70] sm:$0xff] %v1903
      %1908 = vst [vmem:[#allocation2 + $0x78] sm:$0xff] %v1904
      %1909 = vst [vmem:[#allocation2 + $0x80] sm:$0xff] %v1819
      %1910 = vst [vmem:[#allocation2 + $0x88] sm:$0xff] %v1821
      %1911 = vst [vmem:[#allocation2 + $0x90] sm:$0xff] %v1825
      %1912 = vst [vmem:[#allocation2 + $0x98] sm:$0xff] %v1827
      %1913 = vrot.lane.b32.xlu0 %v1819, 127
      %v1914 = vpop.permute.xlu0 %1913
      %1915 = vrot.lane.b32.xlu0 %v1825, 127
      %v1916 = vpop.permute.xlu0 %1915
      %1917 = vrot.lane.b32.xlu0 %v1821, 127
      %v1918 = vpop.permute.xlu0 %1917
      %1919 = vrot.lane.b32.xlu0 %v1827, 127
      %v1920 = vpop.permute.xlu0 %1919
      %v1921 = vsel %vm977, %v1914, %v1918
      %v1922 = vsel %vm977, %v1916, %v1920
      %v1923 = vsel %vm977, %v1918, %v1914
      %v1924 = vsel %vm977, %v1920, %v1916
      %v1925 = vmul.f32 %v1921, %v982
      %v1926 = vmul.f32 %v1923, %v983
      %v1927 = vmul.f32 %v1922, %v982
      %v1928 = vmul.f32 %v1924, %v983
      %1929 = vst [vmem:[#allocation2 + $0xa0] sm:$0xff] %v1925
      %1930 = vst [vmem:[#allocation2 + $0xa8] sm:$0xff] %v1926
      %1931 = vst [vmem:[#allocation2 + $0xb0] sm:$0xff] %v1927
      %1932 = vst [vmem:[#allocation2 + $0xb8] sm:$0xff] %v1928
      %1933 = vrot.lane.b32.xlu0 %v1819, 113
      %v1934 = vpop.permute.xlu0 %1933
      %1935 = vrot.lane.b32.xlu0 %v1825, 113
      %v1936 = vpop.permute.xlu0 %1935
      %1937 = vrot.lane.b32.xlu0 %v1821, 113
      %v1938 = vpop.permute.xlu0 %1937
      %1939 = vrot.lane.b32.xlu0 %v1827, 113
      %v1940 = vpop.permute.xlu0 %1939
      %v1941 = vsel %vm1046, %v1934, %v1938
      %v1942 = vsel %vm1046, %v1936, %v1940
      %v1943 = vsel %vm1046, %v1938, %v1934
      %v1944 = vsel %vm1046, %v1940, %v1936
      %v1945 = vmul.f32 %v1941, %v1051
      %v1946 = vmul.f32 %v1943, %v1052
      %v1947 = vmul.f32 %v1942, %v1051
      %v1948 = vmul.f32 %v1944, %v1052
      %1949 = vst [vmem:[#allocation2 + $0xc0] sm:$0xff] %v1945
      %1950 = vst [vmem:[#allocation2 + $0xc8] sm:$0xff] %v1946
      %1951 = vst [vmem:[#allocation2 + $0xd0] sm:$0xff] %v1947
      %1952 = vst [vmem:[#allocation2 + $0xd8] sm:$0xff] %v1948
      %1953 = vrot.lane.b32.xlu0 %v1819, 112
      %v1954 = vpop.permute.xlu0 %1953
      %1955 = vrot.lane.b32.xlu0 %v1825, 112
      %v1956 = vpop.permute.xlu0 %1955
      %1957 = vrot.lane.b32.xlu0 %v1821, 112
      %v1958 = vpop.permute.xlu0 %1957
      %1959 = vrot.lane.b32.xlu0 %v1827, 112
      %v1960 = vpop.permute.xlu0 %1959
      %v1961 = vsel %vm1069, %v1954, %v1958
      %v1962 = vsel %vm1069, %v1956, %v1960
      %v1963 = vsel %vm1069, %v1958, %v1954
      %v1964 = vsel %vm1069, %v1960, %v1956
      %v1965 = vmul.f32 %v1961, %v1074
      %v1966 = vmul.f32 %v1963, %v1075
      %v1967 = vmul.f32 %v1962, %v1074
      %v1968 = vmul.f32 %v1964, %v1075
      %1969 = vst [vmem:[#allocation2 + $0xe0] sm:$0xff] %v1965
      %1970 = vst [vmem:[#allocation2 + $0xe8] sm:$0xff] %v1966
      %1971 = vst [vmem:[#allocation2 + $0xf0] sm:$0xff] %v1967
      %1972 = vst [vmem:[#allocation2 + $0xf8] sm:$0xff] %v1968
      %1973 = vrot.lane.b32.xlu0 %v1819, 111
      %v1974 = vpop.permute.xlu0 %1973
      %1975 = vrot.lane.b32.xlu0 %v1825, 111
      %v1976 = vpop.permute.xlu0 %1975
      %1977 = vrot.lane.b32.xlu0 %v1821, 111
      %v1978 = vpop.permute.xlu0 %1977
      %1979 = vrot.lane.b32.xlu0 %v1827, 111
      %v1980 = vpop.permute.xlu0 %1979
      %v1981 = vsel %vm1092, %v1974, %v1978
      %v1982 = vsel %vm1092, %v1976, %v1980
      %v1983 = vsel %vm1092, %v1978, %v1974
      %v1984 = vsel %vm1092, %v1980, %v1976
      %v1985 = vmul.f32 %v1981, %v1097
      %v1986 = vmul.f32 %v1983, %v1098
      %v1987 = vmul.f32 %v1982, %v1097
      %v1988 = vmul.f32 %v1984, %v1098
      %1989 = vst [vmem:[#allocation2 + $0x100] sm:$0xff] %v1985
      %1990 = vst [vmem:[#allocation2 + $0x108] sm:$0xff] %v1986
      %1991 = vst [vmem:[#allocation2 + $0x110] sm:$0xff] %v1987
      %1992 = vst [vmem:[#allocation2 + $0x118] sm:$0xff] %v1988
      %v1993 = vld [vmem:[%s7] sm:$0xff]
      %v1994 = vld [vmem:[%s7 + $0x8] sm:$0xff]
      %v1995 = vld [vmem:[%s7 + $0x10] sm:$0xff]
      %v1996 = vld [vmem:[%s7 + $0x18] sm:$0xff]
      %v1997 = vld [vmem:[#allocation2] sm:$0xff]
      %v1998 = vld [vmem:[#allocation2 + $0x8] sm:$0xff]
      %v1999 = vld [vmem:[#allocation2 + $0x10] sm:$0xff]
      %v2000 = vld [vmem:[#allocation2 + $0x18] sm:$0xff]
      %v2001 = vld [vmem:[#allocation2 + $0x20] sm:$0xff]
      %v2002 = vld [vmem:[#allocation2 + $0x28] sm:$0xff]
      %v2003 = vld [vmem:[#allocation2 + $0x30] sm:$0xff]
      %v2004 = vld [vmem:[#allocation2 + $0x38] sm:$0xff]
      %v2005 = vld [vmem:[#allocation2 + $0x40] sm:$0xff]
      %v2006 = vld [vmem:[#allocation2 + $0x48] sm:$0xff]
      %v2007 = vld [vmem:[#allocation2 + $0x50] sm:$0xff]
      %v2008 = vld [vmem:[#allocation2 + $0x58] sm:$0xff]
      %v2009 = vld [vmem:[#allocation2 + $0x60] sm:$0xff]
      %v2010 = vld [vmem:[#allocation2 + $0x68] sm:$0xff]
      %v2011 = vld [vmem:[#allocation2 + $0x70] sm:$0xff]
      %v2012 = vld [vmem:[#allocation2 + $0x78] sm:$0xff]
      %v2013 = vld [vmem:[#allocation2 + $0x80] sm:$0xff]
      %v2014 = vld [vmem:[#allocation2 + $0x88] sm:$0xff]
      %v2015 = vld [vmem:[#allocation2 + $0x90] sm:$0xff]
      %v2016 = vld [vmem:[#allocation2 + $0x98] sm:$0xff]
      %v2017 = vld [vmem:[#allocation2 + $0xa0] sm:$0xff]
      %v2018 = vld [vmem:[#allocation2 + $0xa8] sm:$0xff]
      %v2019 = vld [vmem:[#allocation2 + $0xb0] sm:$0xff]
      %v2020 = vld [vmem:[#allocation2 + $0xb8] sm:$0xff]
      %v2021 = vld [vmem:[#allocation2 + $0xc0] sm:$0xff]
      %v2022 = vld [vmem:[#allocation2 + $0xc8] sm:$0xff]
      %v2023 = vld [vmem:[#allocation2 + $0xd0] sm:$0xff]
      %v2024 = vld [vmem:[#allocation2 + $0xd8] sm:$0xff]
      %v2025 = vld [vmem:[#allocation2 + $0xe0] sm:$0xff]
      %v2026 = vld [vmem:[#allocation2 + $0xe8] sm:$0xff]
      %v2027 = vld [vmem:[#allocation2 + $0xf0] sm:$0xff]
      %v2028 = vld [vmem:[#allocation2 + $0xf8] sm:$0xff]
      %v2029 = vld [vmem:[#allocation2 + $0x100] sm:$0xff]
      %v2030 = vld [vmem:[#allocation2 + $0x108] sm:$0xff]
      %v2031 = vld [vmem:[#allocation2 + $0x110] sm:$0xff]
      %v2032 = vld [vmem:[#allocation2 + $0x118] sm:$0xff]
      %v2033 = vld [vmem:[%s8] sm:$0xff]
      %v2034 = vld [vmem:[%s8 + $0x8] sm:$0xff]
      %2036 = vset.pattern.permute.xlu0 0
      %2037 = vperm.xlu0 %2036, %v2033
      %v2038 = vpop.permute.xlu0 %2037
      %2041 = vset.pattern.permute.xlu0 0
      %2042 = vperm.xlu0 %2041, %v2034
      %v2043 = vpop.permute.xlu0 %2042
      %v2046 = vsel %vm1365, %v1994, 0
      %v2049 = vsel %vm1365, %v1996, 0
      %2051 = vmatprep.subr.mxu0 %v1998
      %2052 = vmatpush1.msra.mxu0 %v1997
      %2053 = vmatprep.subr.mxu0 %v2000
      %2054 = vmatpush1.msra.mxu0 %v1999
      %2055 = vmatprep.subr.mxu0 %v2002
      %2056 = vmatpush1.msra.mxu0 %v2001
      %2057 = vmatprep.subr.mxu0 %v2004
      %2058 = vmatpush1.msra.mxu0 %v2003
      %2059 = vmatprep.subr.mxu0 %v2006
      %2060 = vmatpush1.msra.mxu0 %v2005
      %2061 = vmatprep.subr.mxu0 %v2008
      %2062 = vmatpush1.msra.mxu0 %v2007
      %2063 = vmatprep.subr.mxu0 %v2010
      %2064 = vmatpush1.msra.mxu0 %v2009
      %2065 = vmatprep.subr.mxu0 %v2012
      %2066 = vmatpush1.msra.mxu0 %v2011
      %2067 = vmatprep.subr.mxu0 %v2014
      %2068 = vmatpush1.msra.mxu0 %v2013
      %2069 = vmatprep.subr.mxu0 %v2016
      %2070 = vmatpush1.msra.mxu0 %v2015
      %2071 = vmatprep.subr.mxu0 %v2018
      %2072 = vmatpush1.msra.mxu0 %v2017
      %2073 = vmatprep.subr.mxu0 %v2020
      %2074 = vmatpush1.msra.mxu0 %v2019
      %2075 = vmatprep.subr.mxu0 %v2022
      %2076 = vmatpush1.msra.mxu0 %v2021
      %2077 = vmatprep.subr.mxu0 %v2024
      %2078 = vmatpush1.msra.mxu0 %v2023
      %2079 = vmatprep.subr.mxu0 %v2026
      %2080 = vmatpush1.msra.mxu0 %v2025
      %2081 = vmatprep.subr.mxu0 %v2028
      %2082 = vmatpush1.msra.mxu0 %v2027
      %2083 = vmatprep.subr.mxu0 %v2030
      %2084 = vmatpush1.msra.mxu0 %v2029
      %2085 = vmatprep.subr.mxu0 %v2032
      %2086 = vmatpush1.msra.mxu0 %v2031
      %2087 = vmatprep.subr.mxu0 0.0
      %2088 = vmatpush1.msra.mxu0 0.0
      %2089 = vmatprep.subr.mxu0 0.0
      %2090 = vmatpush1.msra.mxu0 0.0
      %2091 = vmatprep.subr.mxu0 0.0
      %2092 = vmatpush1.msra.mxu0 0.0
      %2093 = vmatprep.subr.mxu0 0.0
      %2094 = vmatpush1.msra.mxu0 0.0
      %2095 = vmatprep.subr.mxu0 0.0
      %2096 = vmatpush1.msra.mxu0 0.0
      %2097 = vmatprep.subr.mxu0 0.0
      %2098 = vmatpush1.msra.mxu0 0.0
      %2099 = vmatprep.subr.mxu0 0.0
      %2100 = vmatpush1.msra.mxu0 0.0
      %2101 = vmatprep.subr.mxu0 0.0
      %2102 = vmatpush1.msra.mxu0 0.0
      %2103 = vmatprep.subr.mxu0 0.0
      %2104 = vmatpush1.msra.mxu0 0.0
      %2105 = vmatprep.subr.mxu0 0.0
      %2106 = vmatpush1.msra.mxu0 0.0
      %2107 = vmatprep.subr.mxu0 0.0
      %2108 = vmatpush1.msra.mxu0 0.0
      %2109 = vmatprep.subr.mxu0 0.0
      %2110 = vmatpush1.msra.mxu0 0.0
      %2111 = vmatprep.subr.mxu0 0.0
      %2112 = vmatpush1.msra.mxu0 0.0
      %2113 = vmatprep.subr.mxu0 0.0
      %2114 = vmatpush1.msra.mxu0 0.0
      %2115 = vmatprep.mubr.f32.mxu0 %v2046
      %2116 = vmatmul.mubr.f32.gmra.mrb[0].mxu0 %v1993
      %v2117 = vpop.f32.mrb[0].mxu0
      %v2118 = vadd.f32 %v2038, %v2117
      %v2119 = vpop.f32.mrb[0].mxu0
      %v2120 = vadd.f32 %v2038, %v2119
      %2121 = vmatprep.mubr.f32.mxu0 %v2049
      %2122 = vmatmul.mubr.f32.gmra.mrb[0].mxu0 %v1995
      %v2123 = vpop.f32.mrb[0].mxu0
      %v2124 = vadd.f32 %v2043, %v2123
      %v2125 = vpop.f32.mrb[0].mxu0
      %v2126 = vadd.f32 %v2043, %v2125
      %2127 = vdwg.mxu0
      %2128 = vst [vmem:[%s359 + $0x40] sm:$0xff] %v2118
      %2129 = vst [vmem:[%s359 + $0x48] sm:$0xff] %v2120
      %2130 = vst [vmem:[%s359 + $0x50] sm:$0xff] %v2124
      %2131 = vst [vmem:[%s359 + $0x58] sm:$0xff] %v2126
      %2132 = vrot.lane.b32.xlu0 %v675, 1
      %v2133 = vpop.permute.xlu0 %2132
      %2134 = vrot.lane.b32.xlu0 %v681, 1
      %v2135 = vpop.permute.xlu0 %2134
      %2136 = vrot.lane.b32.xlu0 %v677, 1
      %v2137 = vpop.permute.xlu0 %2136
      %2138 = vrot.lane.b32.xlu0 %v683, 1
      %v2139 = vpop.permute.xlu0 %2138
      %v2140 = vsel %vm950, %v2133, %v2137
      %v2141 = vsel %vm950, %v2135, %v2139
      %v2142 = vsel %vm950, %v2137, %v2133
      %v2143 = vsel %vm950, %v2139, %v2135
      %v2144 = vmul.f32 %v2142, %v955
      %v2145 = vmul.f32 %v2140, %v956
      %v2146 = vmul.f32 %v2143, %v955
      %v2147 = vmul.f32 %v2141, %v956
      %v2148 = vadd.f32 %v675, %v2144
      %v2149 = vadd.f32 %v677, %v2145
      %v2150 = vadd.f32 %v681, %v2146
      %v2151 = vadd.f32 %v683, %v2147
      %2152 = vrot.lane.b32.xlu0 %v675, 127
      %v2153 = vpop.permute.xlu0 %2152
      %2154 = vrot.lane.b32.xlu0 %v681, 127
      %v2155 = vpop.permute.xlu0 %2154
      %2156 = vrot.lane.b32.xlu0 %v677, 127
      %v2157 = vpop.permute.xlu0 %2156
      %2158 = vrot.lane.b32.xlu0 %v683, 127
      %v2159 = vpop.permute.xlu0 %2158
      %v2160 = vsel %vm977, %v2153, %v2157
      %v2161 = vsel %vm977, %v2155, %v2159
      %v2162 = vsel %vm977, %v2157, %v2153
      %v2163 = vsel %vm977, %v2159, %v2155
      %v2164 = vmul.f32 %v2160, %v982
      %v2165 = vmul.f32 %v2162, %v983
      %v2166 = vmul.f32 %v2161, %v982
      %v2167 = vmul.f32 %v2163, %v983
      %v2168 = vadd.f32 %v2148, %v2164
      %v2169 = vadd.f32 %v2149, %v2165
      %v2170 = vadd.f32 %v2150, %v2166
      %v2171 = vadd.f32 %v2151, %v2167
      %2172 = vrot.lane.b32.xlu0 %v2168, 16
      %v2173 = vpop.permute.xlu0 %2172
      %2174 = vrot.lane.b32.xlu0 %v2170, 16
      %v2175 = vpop.permute.xlu0 %2174
      %2176 = vrot.lane.b32.xlu0 %v2169, 16
      %v2177 = vpop.permute.xlu0 %2176
      %2178 = vrot.lane.b32.xlu0 %v2171, 16
      %v2179 = vpop.permute.xlu0 %2178
      %v2180 = vsel %vm858, %v2173, %v2177
      %v2181 = vsel %vm858, %v2175, %v2179
      %v2182 = vsel %vm858, %v2177, %v2173
      %v2183 = vsel %vm858, %v2179, %v2175
      %v2184 = vmul.f32 %v2182, %v863
      %v2185 = vmul.f32 %v2180, %v864
      %v2186 = vmul.f32 %v2183, %v863
      %v2187 = vmul.f32 %v2181, %v864
      %v2188 = vadd.f32 %v2168, %v2184
      %v2189 = vadd.f32 %v2169, %v2185
      %v2190 = vadd.f32 %v2170, %v2186
      %v2191 = vadd.f32 %v2171, %v2187
      %2192 = vrot.lane.b32.xlu0 %v2168, 112
      %v2193 = vpop.permute.xlu0 %2192
      %2194 = vrot.lane.b32.xlu0 %v2170, 112
      %v2195 = vpop.permute.xlu0 %2194
      %2196 = vrot.lane.b32.xlu0 %v2169, 112
      %v2197 = vpop.permute.xlu0 %2196
      %2198 = vrot.lane.b32.xlu0 %v2171, 112
      %v2199 = vpop.permute.xlu0 %2198
      %v2200 = vsel %vm1069, %v2193, %v2197
      %v2201 = vsel %vm1069, %v2195, %v2199
      %v2202 = vsel %vm1069, %v2197, %v2193
      %v2203 = vsel %vm1069, %v2199, %v2195
      %v2204 = vmul.f32 %v2200, %v1074
      %v2205 = vmul.f32 %v2202, %v1075
      %v2206 = vmul.f32 %v2201, %v1074
      %v2207 = vmul.f32 %v2203, %v1075
      %v2208 = vadd.f32 %v2188, %v2204
      %v2209 = vadd.f32 %v2189, %v2205
      %v2210 = vadd.f32 %v2190, %v2206
      %v2211 = vadd.f32 %v2191, %v2207
      %v2212 = vmul.f32 %v2208, 0.11111111
      %v2213 = vmul.f32 %v2209, 0.11111111
      %v2214 = vmul.f32 %v2210, 0.11111111
      %v2215 = vmul.f32 %v2211, 0.11111111
      %v2216 = vld [vmem:[%s9] sm:$0xff]
      %v2217 = vld [vmem:[%s9 + $0x8] sm:$0xff]
      %2219 = vset.pattern.permute.xlu0 0
      %2220 = vperm.xlu0 %2219, %v2216
      %v2221 = vpop.permute.xlu0 %2220
      %2224 = vset.pattern.permute.xlu0 0
      %2225 = vperm.xlu0 %2224, %v2217
      %v2226 = vpop.permute.xlu0 %2225
      %v2228 = vadd.f32 %v2212, %v2221
      %v2229 = vadd.f32 %v2213, %v2221
      %v2230 = vadd.f32 %v2214, %v2226
      %v2231 = vadd.f32 %v2215, %v2226
      %2232 = vst [vmem:[%s359 + $0x60] sm:$0xff] %v2228
      %2233 = vst [vmem:[%s359 + $0x68] sm:$0xff] %v2229
      %2234 = vst [vmem:[%s359 + $0x70] sm:$0xff] %v2230
      %2235 = vst [vmem:[%s359 + $0x78] sm:$0xff] %v2231
      %p2236 = scmp.lt.s32.totalorder %s21, 1
      %s2237 = scalar_select %p2236, %s21, 1
      %s2238 = smul.addr %s2237, 16
      %s2239 = smul.addr %s2238, 8
      %s2240 = scalar_lea.vmem %s10, %s2239
      // Predicated region
      $region61: #{inception_forward.1} parent=59 // pred_check
        %p2241 = pneg %p254
      $region62: #{inception_forward.1} parent=59 // pred_check_branch
        %2243 = sbr.rel (%p2241) target = $region64
      $region63: #{inception_forward.1} parent=59 // pred_region
        _
      $region64: #{inception_forward.1} parent=59 // pred_fallthru
        _
    $region60: #{inception_forward.1} parent=5 // pred_fallthru
      _
    %p2244 = scmp.le.s32.totalorder 2, %s16
    // Predicated region
    $region65: #{inception_forward.1} parent=5 // pred_check
      %p2245 = pneg %p2244
    $region66: #{inception_forward.1} parent=5 // pred_check_branch
      %2247 = sbr.rel (%p2245) target = $region68
    $region67: #{inception_forward.1} parent=5 // pred_region
      %s2248 = ssub.s32 %s16, 2
      // Predicated region
      $region69: #{inception_forward.1} parent=67 // pred_check
        %p2249 = pneg %p260
      $region70: #{inception_forward.1} parent=67 // pred_check_branch
        %2251 = sbr.rel (%p2249) target = $region72
      $region71: #{inception_forward.1} parent=67 // pred_region
        %p2252 = scmp.lt.s32.totalorder %s22, 1
        %s2253 = scalar_select %p2252, %s22, 1
        %s2254 = smul.addr %s2253, 16
        %s2255 = smul.addr %s2254, 8
        %s2256 = scalar_lea.vmem %s10, %s2255
      $region72: #{inception_forward.1} parent=67 // pred_fallthru
        _
    $region68: #{inception_forward.1} parent=5 // pred_fallthru
      _
  $region6: #{inception_forward.1} parent=0 // loop_footer
    %s20 = sadd.s32 1, %s16
  $region7: #{inception_forward.1} parent=0 // loop_footer_branch
    %15 = sbr.rel target = $region3
  $region8: #{inception_forward.1} parent=0 // loop_exit
    _

</llo_original>
